<compile_context>
chip_gen: v7x
topology: tpu7x:2x2x1
jax: 0.10.0
libtpu: 0.0.40
codegen_flags: <defaults>
</compile_context>

<pallas_src>
import jax
import jax.numpy as jnp
from jax.experimental import pallas as pl
from jax.experimental.pallas import tpu as pltpu

IN_DIM = 784
H1 = 512
H2 = 256
OUT_DIM = 1
OUT_PAD = 128          # pad the final N=1 layer to a full lane group for the MXU
LEAKY_SLOPE = 0.2


def _round_up(n, m):
    return ((n + m - 1) // m) * m


def _leaky_relu(x, slope):
    return jnp.where(x > 0, x, slope * x)


def discriminator_kernel(x_ref, w1_ref, b1_ref, w2_ref, b2_ref, w3_ref, b3_ref,
                         o_ref):
    # One fused pass per batch tile: three MXU matmuls (bf16 operands, f32
    # accumulation) with f32 bias / LeakyReLU epilogues on the VPU.
    x = x_ref[...]                                               # (TB, 784) bf16

    h1 = jnp.dot(x, w1_ref[...], preferred_element_type=jnp.float32)
    h1 = _leaky_relu(h1 + b1_ref[...], LEAKY_SLOPE)              # (TB, 512) f32

    h2 = jnp.dot(h1.astype(jnp.bfloat16), w2_ref[...],
                 preferred_element_type=jnp.float32)
    h2 = _leaky_relu(h2 + b2_ref[...], LEAKY_SLOPE)              # (TB, 256) f32

    h3 = jnp.dot(h2.astype(jnp.bfloat16), w3_ref[...],
                 preferred_element_type=jnp.float32)
    h3 = h3 + b3_ref[...]                                        # (TB, 128) f32

    # Only column 0 is real: slice before the sigmoid (no EUP work on the 127
    # padded columns) and store a tiny lane-1 (TB, 1) tile.
    o_ref[...] = jax.nn.sigmoid(h3[:, 0:1]).astype(o_ref.dtype)


def _batch_dim_semantics(num_tiles):
    """CORE_PARALLEL on v7x (2 TensorCores) when there is >1 tile; else 'parallel'."""
    try:
        kind = jax.devices()[0].device_kind.lower()
    except Exception:
        kind = ""
    if "v7" in kind and num_tiles >= 2:
        return (pltpu.CORE_PARALLEL,)
    return ("parallel",)


def discriminator_forward(x, params, *, batch_tile=512):
    """x: (B, 784) float32.  Returns (B, 1) float32 in (0, 1)."""
    w1, b1, w2, b2, w3, b3 = params
    B = x.shape[0]
    assert batch_tile % 128 == 0

    # Batch tile: multiple of 128 (MXU M alignment / bf16 sublane packing),
    # capped at batch_tile.  Small batches pad to a single tile / single grid
    # step -- no forced 2-way split (that only doubled fixed overhead on
    # single-TensorCore v5e/v6e).
    tb = min(batch_tile, _round_up(B, 128))
    Bp = _round_up(B, tb)
    grid = (Bp // tb,)

    # Pad batch with zero rows (sliced off below).
    if Bp != B:
        x = jnp.pad(x, ((0, Bp - B), (0, 0)))

    # bf16 operands for the MXU; biases stay f32.
    bf = jnp.bfloat16
    x_bf = x.astype(bf)
    w1_bf = w1.astype(bf)
    w2_bf = w2.astype(bf)

    # Pad the final layer to 128 output columns (zero weights/bias) so the last
    # matmul has a full MXU N; the kernel keeps only column 0.
    w3_bf = jnp.zeros((H2, OUT_PAD), bf).at[:, :OUT_DIM].set(w3.astype(bf))
    b3_p = jnp.zeros((1, OUT_PAD), jnp.float32).at[:, :OUT_DIM].set(b3)

    full = lambda i: (0, 0)  # weights / biases: same resident block every step

    cost = pl.CostEstimate(
        flops=2 * Bp * (IN_DIM * H1 + H1 * H2 + H2 * OUT_PAD),
        transcendentals=Bp,
        bytes_accessed=(Bp * IN_DIM * 2
                        + 2 * (IN_DIM * H1 + H1 * H2 + H2 * OUT_PAD)
                        + 4 * (H1 + H2 + OUT_PAD)
                        + Bp * 4),
    )

    def _call(dim_sem):
        return pl.pallas_call(
            discriminator_kernel,
            out_shape=jax.ShapeDtypeStruct((Bp, OUT_DIM), jnp.float32),
            grid_spec=pltpu.PrefetchScalarGridSpec(
                num_scalar_prefetch=0,
                grid=grid,
                in_specs=[
                    pl.BlockSpec((tb, IN_DIM), lambda i: (i, 0)),
                    pl.BlockSpec((IN_DIM, H1), full),
                    pl.BlockSpec((1, H1), full),
                    pl.BlockSpec((H1, H2), full),
                    pl.BlockSpec((1, H2), full),
                    pl.BlockSpec((H2, OUT_PAD), full),
                    pl.BlockSpec((1, OUT_PAD), full),
                ],
                out_specs=pl.BlockSpec((tb, OUT_DIM), lambda i: (i, 0)),
            ),
            compiler_params=pltpu.CompilerParams(dimension_semantics=dim_sem),
            cost_estimate=cost,
        )(x_bf, w1_bf, b1, w2_bf, b2, w3_bf, b3_p)

    dim_sem = _batch_dim_semantics(grid[0])
    try:
        out = _call(dim_sem)
    except Exception:
        if dim_sem == ("parallel",):
            raise
        # Fallback if CORE_PARALLEL is rejected for this chip / grid shape.
        out = _call(("parallel",))

    return out if Bp == B else out[:B]


def init_params(key):
    """Deterministic init mirroring PyTorch nn.Linear default (U(-k, k), k=1/sqrt(fan_in)).
    Weights are stored transposed: (in_features, out_features)."""
    keys = jax.random.split(key, 6)

    def linear(kw, kb, fan_in, fan_out):
        bound = 1.0 / jnp.sqrt(fan_in)
        w = jax.random.uniform(kw, (fan_in, fan_out), jnp.float32, -bound, bound)
        b = jax.random.uniform(kb, (1, fan_out), jnp.float32, -bound, bound)
        return w, b

    w1, b1 = linear(keys[0], keys[1], IN_DIM, H1)
    w2, b2 = linear(keys[2], keys[3], H1, H2)
    w3, b3 = linear(keys[4], keys[5], H2, OUT_DIM)
    return (w1, b1, w2, b2, w3, b3)


def reference_forward(x, params):
    """Pure-JAX reference with the same bf16-operand / f32-accumulate precision."""
    w1, b1, w2, b2, w3, b3 = params
    bf = jnp.bfloat16
    h = jnp.dot(x.astype(bf), w1.astype(bf),
                preferred_element_type=jnp.float32) + b1
    h = jnp.where(h > 0, h, LEAKY_SLOPE * h)
    h = jnp.dot(h.astype(bf), w2.astype(bf),
                preferred_element_type=jnp.float32) + b2
    h = jnp.where(h > 0, h, LEAKY_SLOPE * h)
    h = jnp.dot(h.astype(bf), w3.astype(bf),
                preferred_element_type=jnp.float32) + b3
    return jax.nn.sigmoid(h)


if __name__ == "__main__":
    key = jax.random.PRNGKey(0)
    k_params, k_x1, k_x2 = jax.random.split(key, 3)

    params = init_params(k_params)

    # Small batch: pads to a single 128-row tile, single grid step.
    x_small = jax.random.normal(k_x1, (24, IN_DIM), jnp.float32)
    out_small = jax.block_until_ready(discriminator_forward(x_small, params))
    ref_small = reference_forward(x_small, params)
    assert out_small.shape == (24, OUT_DIM)
    assert bool(jnp.all((out_small > 0.0) & (out_small < 1.0)))
    assert jnp.allclose(out_small, ref_small, atol=1e-3, rtol=1e-3), "small-batch mismatch"

    # Larger batch: exercises the multi-tile (pipelined / core-sharded) path.
    x_big = jax.random.normal(k_x2, (600, IN_DIM), jnp.float32)
    out_big = jax.block_until_ready(discriminator_forward(x_big, params))
    ref_big = reference_forward(x_big, params)
    assert out_big.shape == (600, OUT_DIM)
    assert jnp.allclose(out_big, ref_big, atol=1e-3, rtol=1e-3), "big-batch mismatch"

    print("KERNEL_OK")
</pallas_src>

<mosaic_0001>
module attributes {stable_mosaic.version = 11 : i64} {
  func.func @discriminator_kernel(%arg0: i32, %arg1: memref<128x784xbf16, #tpu.memory_space<vmem>>, %arg2: memref<784x512xbf16, #tpu.memory_space<vmem>>, %arg3: memref<1x512xf32, #tpu.memory_space<vmem>>, %arg4: memref<512x256xbf16, #tpu.memory_space<vmem>>, %arg5: memref<1x256xf32, #tpu.memory_space<vmem>>, %arg6: memref<256x128xbf16, #tpu.memory_space<vmem>>, %arg7: memref<1x128xf32, #tpu.memory_space<vmem>>, %arg8: memref<128x1xf32, #tpu.memory_space<vmem>>) attributes {dimension_semantics = [#tpu.dimension_semantics<parallel>], iteration_bounds = array<i64: 1>, scalar_prefetch = 0 : i64, scratch_operands = 0 : i64, tpu.core_type = #tpu.core_type<tc>, window_params = [{transform_indices = @transform_0, window_bounds = array<i64: 128, 784>}, {pipeline_mode = #tpu.pipeline_mode<synchronous>, transform_indices = @transform_1, window_bounds = array<i64: 784, 512>}, {pipeline_mode = #tpu.pipeline_mode<synchronous>, transform_indices = @transform_2, window_bounds = array<i64: 1, 512>}, {pipeline_mode = #tpu.pipeline_mode<synchronous>, transform_indices = @transform_3, window_bounds = array<i64: 512, 256>}, {pipeline_mode = #tpu.pipeline_mode<synchronous>, transform_indices = @transform_4, window_bounds = array<i64: 1, 256>}, {pipeline_mode = #tpu.pipeline_mode<synchronous>, transform_indices = @transform_5, window_bounds = array<i64: 256, 128>}, {pipeline_mode = #tpu.pipeline_mode<synchronous>, transform_indices = @transform_6, window_bounds = array<i64: 1, 128>}, {transform_indices = @transform_7, window_bounds = array<i64: 128, 1>}]} {
    %c0 = arith.constant 0 : index
    %c0_0 = arith.constant 0 : index
    %0 = vector.load %arg1[%c0, %c0_0] : memref<128x784xbf16, #tpu.memory_space<vmem>>, vector<128x784xbf16>
    %c0_1 = arith.constant 0 : index
    %c0_2 = arith.constant 0 : index
    %1 = vector.load %arg2[%c0_1, %c0_2] : memref<784x512xbf16, #tpu.memory_space<vmem>>, vector<784x512xbf16>
    %cst = arith.constant dense<0.000000e+00> : vector<128x512xf32>
    %2 = tpu.matmul %0, %1, %cst {dimension_numbers = #tpu.dot_dimension_numbers<[1], [0], [0], [1], [0, 0, 1, 1], [], []>} : vector<128x784xbf16>, vector<784x512xbf16>, vector<128x512xf32> -> vector<128x512xf32>
    %c0_3 = arith.constant 0 : index
    %c0_4 = arith.constant 0 : index
    %3 = vector.load %arg3[%c0_3, %c0_4] : memref<1x512xf32, #tpu.memory_space<vmem>>, vector<1x512xf32>
    %4 = vector.broadcast %3 : vector<1x512xf32> to vector<128x512xf32>
    %5 = arith.addf %2, %4 : vector<128x512xf32>
    %cst_5 = arith.constant 0.000000e+00 : f32
    %6 = vector.broadcast %cst_5 : f32 to vector<128x512xf32>
    %7 = arith.cmpf ogt, %5, %6 : vector<128x512xf32>
    %cst_6 = arith.constant 2.000000e-01 : f32
    %8 = vector.broadcast %cst_6 : f32 to vector<128x512xf32>
    %9 = arith.mulf %8, %5 : vector<128x512xf32>
    %10 = arith.select %7, %5, %9 : vector<128x512xi1>, vector<128x512xf32>
    %11 = arith.truncf %10 : vector<128x512xf32> to vector<128x512xbf16>
    %c0_7 = arith.constant 0 : index
    %c0_8 = arith.constant 0 : index
    %12 = vector.load %arg4[%c0_7, %c0_8] : memref<512x256xbf16, #tpu.memory_space<vmem>>, vector<512x256xbf16>
    %cst_9 = arith.constant dense<0.000000e+00> : vector<128x256xf32>
    %13 = tpu.matmul %11, %12, %cst_9 {dimension_numbers = #tpu.dot_dimension_numbers<[1], [0], [0], [1], [0, 0, 1, 1], [], []>} : vector<128x512xbf16>, vector<512x256xbf16>, vector<128x256xf32> -> vector<128x256xf32>
    %c0_10 = arith.constant 0 : index
    %c0_11 = arith.constant 0 : index
    %14 = vector.load %arg5[%c0_10, %c0_11] : memref<1x256xf32, #tpu.memory_space<vmem>>, vector<1x256xf32>
    %15 = vector.broadcast %14 : vector<1x256xf32> to vector<128x256xf32>
    %16 = arith.addf %13, %15 : vector<128x256xf32>
    %cst_12 = arith.constant 0.000000e+00 : f32
    %17 = vector.broadcast %cst_12 : f32 to vector<128x256xf32>
    %18 = arith.cmpf ogt, %16, %17 : vector<128x256xf32>
    %cst_13 = arith.constant 2.000000e-01 : f32
    %19 = vector.broadcast %cst_13 : f32 to vector<128x256xf32>
    %20 = arith.mulf %19, %16 : vector<128x256xf32>
    %21 = arith.select %18, %16, %20 : vector<128x256xi1>, vector<128x256xf32>
    %22 = arith.truncf %21 : vector<128x256xf32> to vector<128x256xbf16>
    %c0_14 = arith.constant 0 : index
    %c0_15 = arith.constant 0 : index
    %23 = vector.load %arg6[%c0_14, %c0_15] : memref<256x128xbf16, #tpu.memory_space<vmem>>, vector<256x128xbf16>
    %cst_16 = arith.constant dense<0.000000e+00> : vector<128x128xf32>
    %24 = tpu.matmul %22, %23, %cst_16 {dimension_numbers = #tpu.dot_dimension_numbers<[1], [0], [0], [1], [0, 0, 1, 1], [], []>} : vector<128x256xbf16>, vector<256x128xbf16>, vector<128x128xf32> -> vector<128x128xf32>
    %c0_17 = arith.constant 0 : index
    %c0_18 = arith.constant 0 : index
    %25 = vector.load %arg7[%c0_17, %c0_18] : memref<1x128xf32, #tpu.memory_space<vmem>>, vector<1x128xf32>
    %26 = vector.broadcast %25 : vector<1x128xf32> to vector<128x128xf32>
    %27 = arith.addf %24, %26 : vector<128x128xf32>
    %28 = vector.extract_strided_slice %27 {offsets = [0, 0], sizes = [128, 1], strides = [1, 1]} : vector<128x128xf32> to vector<128x1xf32>
    %29 = arith.negf %28 : vector<128x1xf32>
    %30 = math.exp %29 : vector<128x1xf32>
    %cst_19 = arith.constant 1.000000e+00 : f32
    %31 = vector.broadcast %cst_19 : f32 to vector<128x1xf32>
    %32 = arith.addf %31, %30 : vector<128x1xf32>
    %33 = arith.divf %31, %32 : vector<128x1xf32>
    %c0_20 = arith.constant 0 : index
    %c0_21 = arith.constant 0 : index
    %34 = vector.load %arg8[%c0_20, %c0_21] : memref<128x1xf32, #tpu.memory_space<vmem>>, vector<128x1xf32>
    tpu.vector_store %arg8[%c0_20, %c0_21], %33 {strides = array<i32>} : memref<128x1xf32, #tpu.memory_space<vmem>>, vector<128x1xf32>,
    return
  }
  func.func @transform_0(%arg0: i32) -> (i32, i32) {
    %c0_i32 = arith.constant 0 : i32
    %c0_i32_0 = arith.constant 0 : i32
    return %arg0, %c0_i32 : i32, i32
  }
  func.func @transform_1(%arg0: i32) -> (i32, i32) {
    %c0_i32 = arith.constant 0 : i32
    %c0_i32_0 = arith.constant 0 : i32
    %c0_i32_1 = arith.constant 0 : i32
    return %c0_i32, %c0_i32_0 : i32, i32
  }
  func.func @transform_2(%arg0: i32) -> (i32, i32) {
    %c0_i32 = arith.constant 0 : i32
    %c0_i32_0 = arith.constant 0 : i32
    %c0_i32_1 = arith.constant 0 : i32
    return %c0_i32, %c0_i32_0 : i32, i32
  }
  func.func @transform_3(%arg0: i32) -> (i32, i32) {
    %c0_i32 = arith.constant 0 : i32
    %c0_i32_0 = arith.constant 0 : i32
    %c0_i32_1 = arith.constant 0 : i32
    return %c0_i32, %c0_i32_0 : i32, i32
  }
  func.func @transform_4(%arg0: i32) -> (i32, i32) {
    %c0_i32 = arith.constant 0 : i32
    %c0_i32_0 = arith.constant 0 : i32
    %c0_i32_1 = arith.constant 0 : i32
    return %c0_i32, %c0_i32_0 : i32, i32
  }
  func.func @transform_5(%arg0: i32) -> (i32, i32) {
    %c0_i32 = arith.constant 0 : i32
    %c0_i32_0 = arith.constant 0 : i32
    %c0_i32_1 = arith.constant 0 : i32
    return %c0_i32, %c0_i32_0 : i32, i32
  }
  func.func @transform_6(%arg0: i32) -> (i32, i32) {
    %c0_i32 = arith.constant 0 : i32
    %c0_i32_0 = arith.constant 0 : i32
    %c0_i32_1 = arith.constant 0 : i32
    return %c0_i32, %c0_i32_0 : i32, i32
  }
  func.func @transform_7(%arg0: i32) -> (i32, i32) {
    %c0_i32 = arith.constant 0 : i32
    %c0_i32_0 = arith.constant 0 : i32
    return %arg0, %c0_i32 : i32, i32
  }
}

</mosaic_0001>

<llo_original>
// kernel: tpu_custom_call.1
$region0: #{tpu_custom_call.1}
  #allocation0 [shape = 'u32[]', space=smem, size = 0x4, offset = 0x4, fixed_abs, tag = 'smem constant byte address 0x4 - core index']
  #allocation1 [shape = 'u32[144,128]{1,0:T(1,128)}', space=vmem, size = 0x12000, scoped, tag = 'internal scratch']
  %s0 = inlined_call_operand.vmem [shape: bf16[128,784], index: 0, kind: input, shape index: {}]
  %s1 = inlined_call_operand.hbm [shape: bf16[784,512], index: 1, kind: input, shape index: {}]
  %s2 = inlined_call_operand.vmem [shape: f32[1,512], index: 2, kind: input, shape index: {}]
  %s3 = inlined_call_operand.vmem [shape: bf16[512,256], index: 3, kind: input, shape index: {}]
  %s4 = inlined_call_operand.vmem [shape: f32[1,256], index: 4, kind: input, shape index: {}]
  %s5 = inlined_call_operand.vmem [shape: bf16[256,128], index: 5, kind: input, shape index: {}]
  %s6 = inlined_call_operand.vmem [shape: f32[1,128], index: 6, kind: input, shape index: {}]
  %s7 = inlined_call_operand.vmem [shape: f32[128,1], index: 7, kind: output, shape index: {}]
  %s8 = sld [smem:[#allocation0]]
  $region42: #{tpu_custom_call.1} parent=0
    _
  %s10 = ssub.s32 1, %s8
  %s11 = scalar_select 0, %s10, %s8
  $region1: #{tpu_custom_call.1} parent=0
    #allocation2 [shape = 'u8[802816]{0}', space=vmem, size = 0xc4000, scoped, tag = 'input window, operand 1, single buffered']
    #allocation3 [shape = 's32[1]{0}', space=sflag, size = 0x4, scoped, tag = 'scoped memory for tpu_custom_call.1']
    %12 = vsyncpa [#allocation3], 0
    // Predicated region
    $region2: #{tpu_custom_call.1} parent=1 // pred_check
      _
    $region3: #{tpu_custom_call.1} parent=1 // pred_check_branch
      %14 = sbr.rel (0) target = $region5
    $region4: #{tpu_custom_call.1} parent=1 // pred_region
      _
    $region5: #{tpu_custom_call.1} parent=1 // pred_fallthru
      _
    // Predicated region
    $region6: #{tpu_custom_call.1} parent=1 // pred_check
      _
    $region7: #{tpu_custom_call.1} parent=1 // pred_check_branch
      %16 = sbr.rel (0) target = $region9
    $region8: #{tpu_custom_call.1} parent=1 // pred_region
      %s18 = ssub.s32 25088, 25088
      %19 = vsyncadd [#allocation3], %s18
      %s20 = sshll.u32 [#allocation2], 4
      %s21 = int_to_ptr.vmem [resolvable:$true] %s20
      %26 = dma.hbm_to_vmem [thread:$0]  %s1, 25088, %s21, [#allocation3], 256, 256, 16
    $region9: #{tpu_custom_call.1} parent=1 // pred_fallthru
      _
    // Predicated region
    $region10: #{tpu_custom_call.1} parent=1 // pred_check
      _
    $region11: #{tpu_custom_call.1} parent=1 // pred_check_branch
      %28 = sbr.rel (0) target = $region13
    $region12: #{tpu_custom_call.1} parent=1 // pred_region
      _
    $region13: #{tpu_custom_call.1} parent=1 // pred_fallthru
      _
    // Predicated region
    $region14: #{tpu_custom_call.1} parent=1 // pred_check
      _
    $region15: #{tpu_custom_call.1} parent=1 // pred_check_branch
      %30 = sbr.rel (0) target = $region17
    $region16: #{tpu_custom_call.1} parent=1 // pred_region
      _
    $region17: #{tpu_custom_call.1} parent=1 // pred_fallthru
      _
    // Predicated region
    $region18: #{tpu_custom_call.1} parent=1 // pred_check
      _
    $region19: #{tpu_custom_call.1} parent=1 // pred_check_branch
      %32 = sbr.rel (0) target = $region21
    $region20: #{tpu_custom_call.1} parent=1 // pred_region
      _
    $region21: #{tpu_custom_call.1} parent=1 // pred_fallthru
      _
    // Predicated region
    $region22: #{tpu_custom_call.1} parent=1 // pred_check
      _
    $region23: #{tpu_custom_call.1} parent=1 // pred_check_branch
      %34 = sbr.rel (0) target = $region25
    $region24: #{tpu_custom_call.1} parent=1 // pred_region
      _
    $region25: #{tpu_custom_call.1} parent=1 // pred_fallthru
      _
    // Predicated region
    $region26: #{tpu_custom_call.1} parent=1 // pred_check
      _
    $region27: #{tpu_custom_call.1} parent=1 // pred_check_branch
      %36 = sbr.rel (0) target = $region29
    $region28: #{tpu_custom_call.1} parent=1 // pred_region
      _
    $region29: #{tpu_custom_call.1} parent=1 // pred_fallthru
      _
    // Predicated region
    $region30: #{tpu_custom_call.1} parent=1 // pred_check
      _
    $region31: #{tpu_custom_call.1} parent=1 // pred_check_branch
      %38 = sbr.rel (0) target = $region33
    $region32: #{tpu_custom_call.1} parent=1 // pred_region
      %39 = dma.done [#allocation3], 25088
    $region33: #{tpu_custom_call.1} parent=1 // pred_fallthru
      _
    %v41 = vld [vmem:[%s0] sm:$0xff]
    %v42 = vld [vmem:[%s0 + $0x8] sm:$0xff]
    %v43 = vld [vmem:[%s0 + $0x10] sm:$0xff]
    %v44 = vld [vmem:[%s0 + $0x18] sm:$0xf]
    %v45 = vld [vmem:[%s0 + $0x1c] sm:$0xff]
    %v46 = vld [vmem:[%s0 + $0x24] sm:$0xff]
    %v47 = vld [vmem:[%s0 + $0x2c] sm:$0xff]
    %v48 = vld [vmem:[%s0 + $0x34] sm:$0xf]
    %v49 = vld [vmem:[%s0 + $0x38] sm:$0xff]
    %v50 = vld [vmem:[%s0 + $0x40] sm:$0xff]
    %v51 = vld [vmem:[%s0 + $0x48] sm:$0xff]
    %v52 = vld [vmem:[%s0 + $0x50] sm:$0xf]
    %v53 = vld [vmem:[%s0 + $0x54] sm:$0xff]
    %v54 = vld [vmem:[%s0 + $0x5c] sm:$0xff]
    %v55 = vld [vmem:[%s0 + $0x64] sm:$0xff]
    %v56 = vld [vmem:[%s0 + $0x6c] sm:$0xf]
    %v57 = vld [vmem:[%s0 + $0x70] sm:$0xff]
    %v58 = vld [vmem:[%s0 + $0x78] sm:$0xff]
    %v59 = vld [vmem:[%s0 + $0x80] sm:$0xff]
    %v60 = vld [vmem:[%s0 + $0x88] sm:$0xf]
    %v61 = vld [vmem:[%s0 + $0x8c] sm:$0xff]
    %v62 = vld [vmem:[%s0 + $0x94] sm:$0xff]
    %v63 = vld [vmem:[%s0 + $0x9c] sm:$0xff]
    %v64 = vld [vmem:[%s0 + $0xa4] sm:$0xf]
    %v65 = vld [vmem:[%s0 + $0xa8] sm:$0xff]
    %v66 = vld [vmem:[%s0 + $0xb0] sm:$0xff]
    %v67 = vld [vmem:[%s0 + $0xb8] sm:$0xff]
    %v68 = vld [vmem:[%s0 + $0xc0] sm:$0xf]
    %v69 = vld [vmem:[%s0 + $0xc4] sm:$0xff]
    %v70 = vld [vmem:[%s0 + $0xcc] sm:$0xff]
    %v71 = vld [vmem:[%s0 + $0xd4] sm:$0xff]
    %v72 = vld [vmem:[%s0 + $0xdc] sm:$0xf]
    %v73 = vld [vmem:[%s0 + $0xe0] sm:$0xff]
    %v74 = vld [vmem:[%s0 + $0xe8] sm:$0xff]
    %v75 = vld [vmem:[%s0 + $0xf0] sm:$0xff]
    %v76 = vld [vmem:[%s0 + $0xf8] sm:$0xf]
    %v77 = vld [vmem:[%s0 + $0xfc] sm:$0xff]
    %v78 = vld [vmem:[%s0 + $0x104] sm:$0xff]
    %v79 = vld [vmem:[%s0 + $0x10c] sm:$0xff]
    %v80 = vld [vmem:[%s0 + $0x114] sm:$0xf]
    %v81 = vld [vmem:[%s0 + $0x118] sm:$0xff]
    %v82 = vld [vmem:[%s0 + $0x120] sm:$0xff]
    %v83 = vld [vmem:[%s0 + $0x128] sm:$0xff]
    %v84 = vld [vmem:[%s0 + $0x130] sm:$0xf]
    %v85 = vld [vmem:[%s0 + $0x134] sm:$0xff]
    %v86 = vld [vmem:[%s0 + $0x13c] sm:$0xff]
    %v87 = vld [vmem:[%s0 + $0x144] sm:$0xff]
    %v88 = vld [vmem:[%s0 + $0x14c] sm:$0xf]
    %v89 = vld [vmem:[%s0 + $0x150] sm:$0xff]
    %v90 = vld [vmem:[%s0 + $0x158] sm:$0xff]
    %v91 = vld [vmem:[%s0 + $0x160] sm:$0xff]
    %v92 = vld [vmem:[%s0 + $0x168] sm:$0xf]
    %v93 = vld [vmem:[%s0 + $0x16c] sm:$0xff]
    %v94 = vld [vmem:[%s0 + $0x174] sm:$0xff]
    %v95 = vld [vmem:[%s0 + $0x17c] sm:$0xff]
    %v96 = vld [vmem:[%s0 + $0x184] sm:$0xf]
    %v97 = vld [vmem:[%s0 + $0x188] sm:$0xff]
    %v98 = vld [vmem:[%s0 + $0x190] sm:$0xff]
    %v99 = vld [vmem:[%s0 + $0x198] sm:$0xff]
    %v100 = vld [vmem:[%s0 + $0x1a0] sm:$0xf]
    %v101 = vld [vmem:[%s0 + $0x1a4] sm:$0xff]
    %v102 = vld [vmem:[%s0 + $0x1ac] sm:$0xff]
    %v103 = vld [vmem:[%s0 + $0x1b4] sm:$0xff]
    %v104 = vld [vmem:[%s0 + $0x1bc] sm:$0xf]
    %v105 = vld [vmem:[#allocation2] sm:$0xff]
    %v106 = vld [vmem:[#allocation2 + $0x8] sm:$0xff]
    %v107 = vld [vmem:[#allocation2 + $0x10] sm:$0xff]
    %v108 = vld [vmem:[#allocation2 + $0x18] sm:$0xff]
    %v109 = vld [vmem:[#allocation2 + $0x20] sm:$0xff]
    %v110 = vld [vmem:[#allocation2 + $0x28] sm:$0xff]
    %v111 = vld [vmem:[#allocation2 + $0x30] sm:$0xff]
    %v112 = vld [vmem:[#allocation2 + $0x38] sm:$0xff]
    %v113 = vld [vmem:[#allocation2 + $0x40] sm:$0xff]
    %v114 = vld [vmem:[#allocation2 + $0x48] sm:$0xff]
    %v115 = vld [vmem:[#allocation2 + $0x50] sm:$0xff]
    %v116 = vld [vmem:[#allocation2 + $0x58] sm:$0xff]
    %v117 = vld [vmem:[#allocation2 + $0x60] sm:$0xff]
    %v118 = vld [vmem:[#allocation2 + $0x68] sm:$0xff]
    %v119 = vld [vmem:[#allocation2 + $0x70] sm:$0xff]
    %v120 = vld [vmem:[#allocation2 + $0x78] sm:$0xff]
    %v121 = vld [vmem:[#allocation2 + $0x80] sm:$0xff]
    %v122 = vld [vmem:[#allocation2 + $0x88] sm:$0xff]
    %v123 = vld [vmem:[#allocation2 + $0x90] sm:$0xff]
    %v124 = vld [vmem:[#allocation2 + $0x98] sm:$0xff]
    %v125 = vld [vmem:[#allocation2 + $0xa0] sm:$0xff]
    %v126 = vld [vmem:[#allocation2 + $0xa8] sm:$0xff]
    %v127 = vld [vmem:[#allocation2 + $0xb0] sm:$0xff]
    %v128 = vld [vmem:[#allocation2 + $0xb8] sm:$0xff]
    %v129 = vld [vmem:[#allocation2 + $0xc0] sm:$0xff]
    %v130 = vld [vmem:[#allocation2 + $0xc8] sm:$0xff]
    %v131 = vld [vmem:[#allocation2 + $0xd0] sm:$0xff]
    %v132 = vld [vmem:[#allocation2 + $0xd8] sm:$0xff]
    %v133 = vld [vmem:[#allocation2 + $0xe0] sm:$0xff]
    %v134 = vld [vmem:[#allocation2 + $0xe8] sm:$0xff]
    %v135 = vld [vmem:[#allocation2 + $0xf0] sm:$0xff]
    %v136 = vld [vmem:[#allocation2 + $0xf8] sm:$0xff]
    %v137 = vld [vmem:[#allocation2 + $0x100] sm:$0xff]
    %v138 = vld [vmem:[#allocation2 + $0x108] sm:$0xff]
    %v139 = vld [vmem:[#allocation2 + $0x110] sm:$0xff]
    %v140 = vld [vmem:[#allocation2 + $0x118] sm:$0xff]
    %v141 = vld [vmem:[#allocation2 + $0x120] sm:$0xff]
    %v142 = vld [vmem:[#allocation2 + $0x128] sm:$0xff]
    %v143 = vld [vmem:[#allocation2 + $0x130] sm:$0xff]
    %v144 = vld [vmem:[#allocation2 + $0x138] sm:$0xff]
    %v145 = vld [vmem:[#allocation2 + $0x140] sm:$0xff]
    %v146 = vld [vmem:[#allocation2 + $0x148] sm:$0xff]
    %v147 = vld [vmem:[#allocation2 + $0x150] sm:$0xff]
    %v148 = vld [vmem:[#allocation2 + $0x158] sm:$0xff]
    %v149 = vld [vmem:[#allocation2 + $0x160] sm:$0xff]
    %v150 = vld [vmem:[#allocation2 + $0x168] sm:$0xff]
    %v151 = vld [vmem:[#allocation2 + $0x170] sm:$0xff]
    %v152 = vld [vmem:[#allocation2 + $0x178] sm:$0xff]
    %v153 = vld [vmem:[#allocation2 + $0x180] sm:$0xff]
    %v154 = vld [vmem:[#allocation2 + $0x188] sm:$0xff]
    %v155 = vld [vmem:[#allocation2 + $0x190] sm:$0xff]
    %v156 = vld [vmem:[#allocation2 + $0x198] sm:$0xff]
    %v157 = vld [vmem:[#allocation2 + $0x1a0] sm:$0xff]
    %v158 = vld [vmem:[#allocation2 + $0x1a8] sm:$0xff]
    %v159 = vld [vmem:[#allocation2 + $0x1b0] sm:$0xff]
    %v160 = vld [vmem:[#allocation2 + $0x1b8] sm:$0xff]
    %v161 = vld [vmem:[#allocation2 + $0x1c0] sm:$0xff]
    %v162 = vld [vmem:[#allocation2 + $0x1c8] sm:$0xff]
    %v163 = vld [vmem:[#allocation2 + $0x1d0] sm:$0xff]
    %v164 = vld [vmem:[#allocation2 + $0x1d8] sm:$0xff]
    %v165 = vld [vmem:[#allocation2 + $0x1e0] sm:$0xff]
    %v166 = vld [vmem:[#allocation2 + $0x1e8] sm:$0xff]
    %v167 = vld [vmem:[#allocation2 + $0x1f0] sm:$0xff]
    %v168 = vld [vmem:[#allocation2 + $0x1f8] sm:$0xff]
    %v169 = vld [vmem:[#allocation2 + $0x200] sm:$0xff]
    %v170 = vld [vmem:[#allocation2 + $0x208] sm:$0xff]
    %v171 = vld [vmem:[#allocation2 + $0x210] sm:$0xff]
    %v172 = vld [vmem:[#allocation2 + $0x218] sm:$0xff]
    %v173 = vld [vmem:[#allocation2 + $0x220] sm:$0xff]
    %v174 = vld [vmem:[#allocation2 + $0x228] sm:$0xff]
    %v175 = vld [vmem:[#allocation2 + $0x230] sm:$0xff]
    %v176 = vld [vmem:[#allocation2 + $0x238] sm:$0xff]
    %v177 = vld [vmem:[#allocation2 + $0x240] sm:$0xff]
    %v178 = vld [vmem:[#allocation2 + $0x248] sm:$0xff]
    %v179 = vld [vmem:[#allocation2 + $0x250] sm:$0xff]
    %v180 = vld [vmem:[#allocation2 + $0x258] sm:$0xff]
    %v181 = vld [vmem:[#allocation2 + $0x260] sm:$0xff]
    %v182 = vld [vmem:[#allocation2 + $0x268] sm:$0xff]
    %v183 = vld [vmem:[#allocation2 + $0x270] sm:$0xff]
    %v184 = vld [vmem:[#allocation2 + $0x278] sm:$0xff]
    %v185 = vld [vmem:[#allocation2 + $0x280] sm:$0xff]
    %v186 = vld [vmem:[#allocation2 + $0x288] sm:$0xff]
    %v187 = vld [vmem:[#allocation2 + $0x290] sm:$0xff]
    %v188 = vld [vmem:[#allocation2 + $0x298] sm:$0xff]
    %v189 = vld [vmem:[#allocation2 + $0x2a0] sm:$0xff]
    %v190 = vld [vmem:[#allocation2 + $0x2a8] sm:$0xff]
    %v191 = vld [vmem:[#allocation2 + $0x2b0] sm:$0xff]
    %v192 = vld [vmem:[#allocation2 + $0x2b8] sm:$0xff]
    %v193 = vld [vmem:[#allocation2 + $0x2c0] sm:$0xff]
    %v194 = vld [vmem:[#allocation2 + $0x2c8] sm:$0xff]
    %v195 = vld [vmem:[#allocation2 + $0x2d0] sm:$0xff]
    %v196 = vld [vmem:[#allocation2 + $0x2d8] sm:$0xff]
    %v197 = vld [vmem:[#allocation2 + $0x2e0] sm:$0xff]
    %v198 = vld [vmem:[#allocation2 + $0x2e8] sm:$0xff]
    %v199 = vld [vmem:[#allocation2 + $0x2f0] sm:$0xff]
    %v200 = vld [vmem:[#allocation2 + $0x2f8] sm:$0xff]
    %v201 = vld [vmem:[#allocation2 + $0x300] sm:$0xff]
    %v202 = vld [vmem:[#allocation2 + $0x308] sm:$0xff]
    %v203 = vld [vmem:[#allocation2 + $0x310] sm:$0xff]
    %v204 = vld [vmem:[#allocation2 + $0x318] sm:$0xff]
    %v205 = vld [vmem:[#allocation2 + $0x320] sm:$0xff]
    %v206 = vld [vmem:[#allocation2 + $0x328] sm:$0xff]
    %v207 = vld [vmem:[#allocation2 + $0x330] sm:$0xff]
    %v208 = vld [vmem:[#allocation2 + $0x338] sm:$0xff]
    %v209 = vld [vmem:[#allocation2 + $0x340] sm:$0xff]
    %v210 = vld [vmem:[#allocation2 + $0x348] sm:$0xff]
    %v211 = vld [vmem:[#allocation2 + $0x350] sm:$0xff]
    %v212 = vld [vmem:[#allocation2 + $0x358] sm:$0xff]
    %v213 = vld [vmem:[#allocation2 + $0x360] sm:$0xff]
    %v214 = vld [vmem:[#allocation2 + $0x368] sm:$0xff]
    %v215 = vld [vmem:[#allocation2 + $0x370] sm:$0xff]
    %v216 = vld [vmem:[#allocation2 + $0x378] sm:$0xff]
    %v217 = vld [vmem:[#allocation2 + $0x380] sm:$0xff]
    %v218 = vld [vmem:[#allocation2 + $0x388] sm:$0xff]
    %v219 = vld [vmem:[#allocation2 + $0x390] sm:$0xff]
    %v220 = vld [vmem:[#allocation2 + $0x398] sm:$0xff]
    %v221 = vld [vmem:[#allocation2 + $0x3a0] sm:$0xff]
    %v222 = vld [vmem:[#allocation2 + $0x3a8] sm:$0xff]
    %v223 = vld [vmem:[#allocation2 + $0x3b0] sm:$0xff]
    %v224 = vld [vmem:[#allocation2 + $0x3b8] sm:$0xff]
    %v225 = vld [vmem:[#allocation2 + $0x3c0] sm:$0xff]
    %v226 = vld [vmem:[#allocation2 + $0x3c8] sm:$0xff]
    %v227 = vld [vmem:[#allocation2 + $0x3d0] sm:$0xff]
    %v228 = vld [vmem:[#allocation2 + $0x3d8] sm:$0xff]
    %v229 = vld [vmem:[#allocation2 + $0x3e0] sm:$0xff]
    %v230 = vld [vmem:[#allocation2 + $0x3e8] sm:$0xff]
    %v231 = vld [vmem:[#allocation2 + $0x3f0] sm:$0xff]
    %v232 = vld [vmem:[#allocation2 + $0x3f8] sm:$0xff]
    %v233 = vld [vmem:[#allocation2 + $0x400] sm:$0xff]
    %v234 = vld [vmem:[#allocation2 + $0x408] sm:$0xff]
    %v235 = vld [vmem:[#allocation2 + $0x410] sm:$0xff]
    %v236 = vld [vmem:[#allocation2 + $0x418] sm:$0xff]
    %v237 = vld [vmem:[#allocation2 + $0x420] sm:$0xff]
    %v238 = vld [vmem:[#allocation2 + $0x428] sm:$0xff]
    %v239 = vld [vmem:[#allocation2 + $0x430] sm:$0xff]
    %v240 = vld [vmem:[#allocation2 + $0x438] sm:$0xff]
    %v241 = vld [vmem:[#allocation2 + $0x440] sm:$0xff]
    %v242 = vld [vmem:[#allocation2 + $0x448] sm:$0xff]
    %v243 = vld [vmem:[#allocation2 + $0x450] sm:$0xff]
    %v244 = vld [vmem:[#allocation2 + $0x458] sm:$0xff]
    %v245 = vld [vmem:[#allocation2 + $0x460] sm:$0xff]
    %v246 = vld [vmem:[#allocation2 + $0x468] sm:$0xff]
    %v247 = vld [vmem:[#allocation2 + $0x470] sm:$0xff]
    %v248 = vld [vmem:[#allocation2 + $0x478] sm:$0xff]
    %v249 = vld [vmem:[#allocation2 + $0x480] sm:$0xff]
    %v250 = vld [vmem:[#allocation2 + $0x488] sm:$0xff]
    %v251 = vld [vmem:[#allocation2 + $0x490] sm:$0xff]
    %v252 = vld [vmem:[#allocation2 + $0x498] sm:$0xff]
    %v253 = vld [vmem:[#allocation2 + $0x4a0] sm:$0xff]
    %v254 = vld [vmem:[#allocation2 + $0x4a8] sm:$0xff]
    %v255 = vld [vmem:[#allocation2 + $0x4b0] sm:$0xff]
    %v256 = vld [vmem:[#allocation2 + $0x4b8] sm:$0xff]
    %v257 = vld [vmem:[#allocation2 + $0x4c0] sm:$0xff]
    %v258 = vld [vmem:[#allocation2 + $0x4c8] sm:$0xff]
    %v259 = vld [vmem:[#allocation2 + $0x4d0] sm:$0xff]
    %v260 = vld [vmem:[#allocation2 + $0x4d8] sm:$0xff]
    %v261 = vld [vmem:[#allocation2 + $0x4e0] sm:$0xff]
    %v262 = vld [vmem:[#allocation2 + $0x4e8] sm:$0xff]
    %v263 = vld [vmem:[#allocation2 + $0x4f0] sm:$0xff]
    %v264 = vld [vmem:[#allocation2 + $0x4f8] sm:$0xff]
    %v265 = vld [vmem:[#allocation2 + $0x500] sm:$0xff]
    %v266 = vld [vmem:[#allocation2 + $0x508] sm:$0xff]
    %v267 = vld [vmem:[#allocation2 + $0x510] sm:$0xff]
    %v268 = vld [vmem:[#allocation2 + $0x518] sm:$0xff]
    %v269 = vld [vmem:[#allocation2 + $0x520] sm:$0xff]
    %v270 = vld [vmem:[#allocation2 + $0x528] sm:$0xff]
    %v271 = vld [vmem:[#allocation2 + $0x530] sm:$0xff]
    %v272 = vld [vmem:[#allocation2 + $0x538] sm:$0xff]
    %v273 = vld [vmem:[#allocation2 + $0x540] sm:$0xff]
    %v274 = vld [vmem:[#allocation2 + $0x548] sm:$0xff]
    %v275 = vld [vmem:[#allocation2 + $0x550] sm:$0xff]
    %v276 = vld [vmem:[#allocation2 + $0x558] sm:$0xff]
    %v277 = vld [vmem:[#allocation2 + $0x560] sm:$0xff]
    %v278 = vld [vmem:[#allocation2 + $0x568] sm:$0xff]
    %v279 = vld [vmem:[#allocation2 + $0x570] sm:$0xff]
    %v280 = vld [vmem:[#allocation2 + $0x578] sm:$0xff]
    %v281 = vld [vmem:[#allocation2 + $0x580] sm:$0xff]
    %v282 = vld [vmem:[#allocation2 + $0x588] sm:$0xff]
    %v283 = vld [vmem:[#allocation2 + $0x590] sm:$0xff]
    %v284 = vld [vmem:[#allocation2 + $0x598] sm:$0xff]
    %v285 = vld [vmem:[#allocation2 + $0x5a0] sm:$0xff]
    %v286 = vld [vmem:[#allocation2 + $0x5a8] sm:$0xff]
    %v287 = vld [vmem:[#allocation2 + $0x5b0] sm:$0xff]
    %v288 = vld [vmem:[#allocation2 + $0x5b8] sm:$0xff]
    %v289 = vld [vmem:[#allocation2 + $0x5c0] sm:$0xff]
    %v290 = vld [vmem:[#allocation2 + $0x5c8] sm:$0xff]
    %v291 = vld [vmem:[#allocation2 + $0x5d0] sm:$0xff]
    %v292 = vld [vmem:[#allocation2 + $0x5d8] sm:$0xff]
    %v293 = vld [vmem:[#allocation2 + $0x5e0] sm:$0xff]
    %v294 = vld [vmem:[#allocation2 + $0x5e8] sm:$0xff]
    %v295 = vld [vmem:[#allocation2 + $0x5f0] sm:$0xff]
    %v296 = vld [vmem:[#allocation2 + $0x5f8] sm:$0xff]
    %v297 = vld [vmem:[#allocation2 + $0x600] sm:$0xff]
    %v298 = vld [vmem:[#allocation2 + $0x608] sm:$0xff]
    %v299 = vld [vmem:[#allocation2 + $0x610] sm:$0xff]
    %v300 = vld [vmem:[#allocation2 + $0x618] sm:$0xff]
    %v301 = vld [vmem:[%s2] sm:$0xf]
    %v303 = vlaneseq
    %v304 = vshrl.u32 %v303, 7
    %v305 = vsub.s32 0, %v304
    %v306 = vrot.slane %v301, %v305
    %v307 = vlaneseq
    %v308 = vshrl.u32 %v307, 7
    %v309 = vsub.s32 1, %v308
    %v310 = vrot.slane %v301, %v309
    %v311 = vlaneseq
    %v312 = vshrl.u32 %v311, 7
    %v313 = vsub.s32 2, %v312
    %v314 = vrot.slane %v301, %v313
    %v315 = vlaneseq
    %v316 = vshrl.u32 %v315, 7
    %v317 = vsub.s32 3, %v316
    %v318 = vrot.slane %v301, %v317
    %v387 = vunpack.c.l.b16 %v41
    %v388 = vunpack.c.h.b16 %v41
    %v389 = vunpack.c.l.b16 %v42
    %v390 = vunpack.c.h.b16 %v42
    %v391 = vunpack.c.l.b16 %v43
    %v392 = vunpack.c.h.b16 %v43
    %v393 = vunpack.c.l.b16 %v44
    %v394 = vunpack.c.l.b16 %v45
    %v395 = vunpack.c.h.b16 %v45
    %v396 = vunpack.c.l.b16 %v46
    %v397 = vunpack.c.h.b16 %v46
    %v398 = vunpack.c.l.b16 %v47
    %v399 = vunpack.c.h.b16 %v47
    %v400 = vunpack.c.l.b16 %v48
    %v401 = vunpack.c.l.b16 %v49
    %v402 = vunpack.c.h.b16 %v49
    %v403 = vunpack.c.l.b16 %v50
    %v404 = vunpack.c.h.b16 %v50
    %v405 = vunpack.c.l.b16 %v51
    %v406 = vunpack.c.h.b16 %v51
    %v407 = vunpack.c.l.b16 %v52
    %v408 = vunpack.c.l.b16 %v53
    %v409 = vunpack.c.h.b16 %v53
    %v410 = vunpack.c.l.b16 %v54
    %v411 = vunpack.c.h.b16 %v54
    %v412 = vunpack.c.l.b16 %v55
    %v413 = vunpack.c.h.b16 %v55
    %v414 = vunpack.c.l.b16 %v56
    %v415 = vunpack.c.l.b16 %v57
    %v416 = vunpack.c.h.b16 %v57
    %v417 = vunpack.c.l.b16 %v58
    %v418 = vunpack.c.h.b16 %v58
    %v419 = vunpack.c.l.b16 %v59
    %v420 = vunpack.c.h.b16 %v59
    %v421 = vunpack.c.l.b16 %v60
    %v422 = vunpack.c.l.b16 %v61
    %v423 = vunpack.c.h.b16 %v61
    %v424 = vunpack.c.l.b16 %v62
    %v425 = vunpack.c.h.b16 %v62
    %v426 = vunpack.c.l.b16 %v63
    %v427 = vunpack.c.h.b16 %v63
    %v428 = vunpack.c.l.b16 %v64
    %v429 = vunpack.c.l.b16 %v65
    %v430 = vunpack.c.h.b16 %v65
    %v431 = vunpack.c.l.b16 %v66
    %v432 = vunpack.c.h.b16 %v66
    %v433 = vunpack.c.l.b16 %v67
    %v434 = vunpack.c.h.b16 %v67
    %v435 = vunpack.c.l.b16 %v68
    %v436 = vunpack.c.l.b16 %v69
    %v437 = vunpack.c.h.b16 %v69
    %v438 = vunpack.c.l.b16 %v70
    %v439 = vunpack.c.h.b16 %v70
    %v440 = vunpack.c.l.b16 %v71
    %v441 = vunpack.c.h.b16 %v71
    %v442 = vunpack.c.l.b16 %v72
    %v443 = vunpack.c.l.b16 %v73
    %v444 = vunpack.c.h.b16 %v73
    %v445 = vunpack.c.l.b16 %v74
    %v446 = vunpack.c.h.b16 %v74
    %v447 = vunpack.c.l.b16 %v75
    %v448 = vunpack.c.h.b16 %v75
    %v449 = vunpack.c.l.b16 %v76
    %v450 = vunpack.c.l.b16 %v77
    %v451 = vunpack.c.h.b16 %v77
    %v452 = vunpack.c.l.b16 %v78
    %v453 = vunpack.c.h.b16 %v78
    %v454 = vunpack.c.l.b16 %v79
    %v455 = vunpack.c.h.b16 %v79
    %v456 = vunpack.c.l.b16 %v80
    %v457 = vunpack.c.l.b16 %v81
    %v458 = vunpack.c.h.b16 %v81
    %v459 = vunpack.c.l.b16 %v82
    %v460 = vunpack.c.h.b16 %v82
    %v461 = vunpack.c.l.b16 %v83
    %v462 = vunpack.c.h.b16 %v83
    %v463 = vunpack.c.l.b16 %v84
    %v464 = vunpack.c.l.b16 %v85
    %v465 = vunpack.c.h.b16 %v85
    %v466 = vunpack.c.l.b16 %v86
    %v467 = vunpack.c.h.b16 %v86
    %v468 = vunpack.c.l.b16 %v87
    %v469 = vunpack.c.h.b16 %v87
    %v470 = vunpack.c.l.b16 %v88
    %v471 = vunpack.c.l.b16 %v89
    %v472 = vunpack.c.h.b16 %v89
    %v473 = vunpack.c.l.b16 %v90
    %v474 = vunpack.c.h.b16 %v90
    %v475 = vunpack.c.l.b16 %v91
    %v476 = vunpack.c.h.b16 %v91
    %v477 = vunpack.c.l.b16 %v92
    %v478 = vunpack.c.l.b16 %v93
    %v479 = vunpack.c.h.b16 %v93
    %v480 = vunpack.c.l.b16 %v94
    %v481 = vunpack.c.h.b16 %v94
    %v482 = vunpack.c.l.b16 %v95
    %v483 = vunpack.c.h.b16 %v95
    %v484 = vunpack.c.l.b16 %v96
    %v485 = vunpack.c.l.b16 %v97
    %v486 = vunpack.c.h.b16 %v97
    %v487 = vunpack.c.l.b16 %v98
    %v488 = vunpack.c.h.b16 %v98
    %v489 = vunpack.c.l.b16 %v99
    %v490 = vunpack.c.h.b16 %v99
    %v491 = vunpack.c.l.b16 %v100
    %v492 = vunpack.c.l.b16 %v101
    %v493 = vunpack.c.h.b16 %v101
    %v494 = vunpack.c.l.b16 %v102
    %v495 = vunpack.c.h.b16 %v102
    %v496 = vunpack.c.l.b16 %v103
    %v497 = vunpack.c.h.b16 %v103
    %v498 = vunpack.c.l.b16 %v104
    %v499 = vpack.c.b16 %v394, %v387
    %v500 = vpack.c.b16 %v395, %v388
    %v501 = vpack.c.b16 %v396, %v389
    %v502 = vpack.c.b16 %v397, %v390
    %v503 = vpack.c.b16 %v398, %v391
    %v504 = vpack.c.b16 %v399, %v392
    %v505 = vpack.c.b16 %v400, %v393
    %v506 = vpack.c.b16 %v408, %v401
    %v507 = vpack.c.b16 %v409, %v402
    %v508 = vpack.c.b16 %v410, %v403
    %v509 = vpack.c.b16 %v411, %v404
    %v510 = vpack.c.b16 %v412, %v405
    %v511 = vpack.c.b16 %v413, %v406
    %v512 = vpack.c.b16 %v414, %v407
    %v513 = vpack.c.b16 %v422, %v415
    %v514 = vpack.c.b16 %v423, %v416
    %v515 = vpack.c.b16 %v424, %v417
    %v516 = vpack.c.b16 %v425, %v418
    %v517 = vpack.c.b16 %v426, %v419
    %v518 = vpack.c.b16 %v427, %v420
    %v519 = vpack.c.b16 %v428, %v421
    %v520 = vpack.c.b16 %v436, %v429
    %v521 = vpack.c.b16 %v437, %v430
    %v522 = vpack.c.b16 %v438, %v431
    %v523 = vpack.c.b16 %v439, %v432
    %v524 = vpack.c.b16 %v440, %v433
    %v525 = vpack.c.b16 %v441, %v434
    %v526 = vpack.c.b16 %v442, %v435
    %v527 = vpack.c.b16 %v450, %v443
    %v528 = vpack.c.b16 %v451, %v444
    %v529 = vpack.c.b16 %v452, %v445
    %v530 = vpack.c.b16 %v453, %v446
    %v531 = vpack.c.b16 %v454, %v447
    %v532 = vpack.c.b16 %v455, %v448
    %v533 = vpack.c.b16 %v456, %v449
    %v534 = vpack.c.b16 %v464, %v457
    %v535 = vpack.c.b16 %v465, %v458
    %v536 = vpack.c.b16 %v466, %v459
    %v537 = vpack.c.b16 %v467, %v460
    %v538 = vpack.c.b16 %v468, %v461
    %v539 = vpack.c.b16 %v469, %v462
    %v540 = vpack.c.b16 %v470, %v463
    %v541 = vpack.c.b16 %v478, %v471
    %v542 = vpack.c.b16 %v479, %v472
    %v543 = vpack.c.b16 %v480, %v473
    %v544 = vpack.c.b16 %v481, %v474
    %v545 = vpack.c.b16 %v482, %v475
    %v546 = vpack.c.b16 %v483, %v476
    %v547 = vpack.c.b16 %v484, %v477
    %v548 = vpack.c.b16 %v492, %v485
    %v549 = vpack.c.b16 %v493, %v486
    %v550 = vpack.c.b16 %v494, %v487
    %v551 = vpack.c.b16 %v495, %v488
    %v552 = vpack.c.b16 %v496, %v489
    %v553 = vpack.c.b16 %v497, %v490
    %v554 = vpack.c.b16 %v498, %v491
    %v799 = vunpack.c.l.b16 %v105
    %v800 = vunpack.c.h.b16 %v105
    %v801 = vunpack.c.l.b16 %v106
    %v802 = vunpack.c.h.b16 %v106
    %v803 = vunpack.c.l.b16 %v107
    %v804 = vunpack.c.h.b16 %v107
    %v805 = vunpack.c.l.b16 %v108
    %v806 = vunpack.c.h.b16 %v108
    %v807 = vunpack.c.l.b16 %v109
    %v808 = vunpack.c.h.b16 %v109
    %v809 = vunpack.c.l.b16 %v110
    %v810 = vunpack.c.h.b16 %v110
    %v811 = vunpack.c.l.b16 %v111
    %v812 = vunpack.c.h.b16 %v111
    %v813 = vunpack.c.l.b16 %v112
    %v814 = vunpack.c.h.b16 %v112
    %v815 = vunpack.c.l.b16 %v113
    %v816 = vunpack.c.h.b16 %v113
    %v817 = vunpack.c.l.b16 %v114
    %v818 = vunpack.c.h.b16 %v114
    %v819 = vunpack.c.l.b16 %v115
    %v820 = vunpack.c.h.b16 %v115
    %v821 = vunpack.c.l.b16 %v116
    %v822 = vunpack.c.h.b16 %v116
    %v823 = vunpack.c.l.b16 %v117
    %v824 = vunpack.c.h.b16 %v117
    %v825 = vunpack.c.l.b16 %v118
    %v826 = vunpack.c.h.b16 %v118
    %v827 = vunpack.c.l.b16 %v119
    %v828 = vunpack.c.h.b16 %v119
    %v829 = vunpack.c.l.b16 %v120
    %v830 = vunpack.c.h.b16 %v120
    %v831 = vunpack.c.l.b16 %v121
    %v832 = vunpack.c.h.b16 %v121
    %v833 = vunpack.c.l.b16 %v122
    %v834 = vunpack.c.h.b16 %v122
    %v835 = vunpack.c.l.b16 %v123
    %v836 = vunpack.c.h.b16 %v123
    %v837 = vunpack.c.l.b16 %v124
    %v838 = vunpack.c.h.b16 %v124
    %v839 = vunpack.c.l.b16 %v125
    %v840 = vunpack.c.h.b16 %v125
    %v841 = vunpack.c.l.b16 %v126
    %v842 = vunpack.c.h.b16 %v126
    %v843 = vunpack.c.l.b16 %v127
    %v844 = vunpack.c.h.b16 %v127
    %v845 = vunpack.c.l.b16 %v128
    %v846 = vunpack.c.h.b16 %v128
    %v847 = vunpack.c.l.b16 %v129
    %v848 = vunpack.c.h.b16 %v129
    %v849 = vunpack.c.l.b16 %v130
    %v850 = vunpack.c.h.b16 %v130
    %v851 = vunpack.c.l.b16 %v131
    %v852 = vunpack.c.h.b16 %v131
    %v853 = vunpack.c.l.b16 %v132
    %v854 = vunpack.c.h.b16 %v132
    %v855 = vunpack.c.l.b16 %v133
    %v856 = vunpack.c.h.b16 %v133
    %v857 = vunpack.c.l.b16 %v134
    %v858 = vunpack.c.h.b16 %v134
    %v859 = vunpack.c.l.b16 %v135
    %v860 = vunpack.c.h.b16 %v135
    %v861 = vunpack.c.l.b16 %v136
    %v862 = vunpack.c.h.b16 %v136
    %v863 = vunpack.c.l.b16 %v137
    %v864 = vunpack.c.h.b16 %v137
    %v865 = vunpack.c.l.b16 %v138
    %v866 = vunpack.c.h.b16 %v138
    %v867 = vunpack.c.l.b16 %v139
    %v868 = vunpack.c.h.b16 %v139
    %v869 = vunpack.c.l.b16 %v140
    %v870 = vunpack.c.h.b16 %v140
    %v871 = vunpack.c.l.b16 %v141
    %v872 = vunpack.c.h.b16 %v141
    %v873 = vunpack.c.l.b16 %v142
    %v874 = vunpack.c.h.b16 %v142
    %v875 = vunpack.c.l.b16 %v143
    %v876 = vunpack.c.h.b16 %v143
    %v877 = vunpack.c.l.b16 %v144
    %v878 = vunpack.c.h.b16 %v144
    %v879 = vunpack.c.l.b16 %v145
    %v880 = vunpack.c.h.b16 %v145
    %v881 = vunpack.c.l.b16 %v146
    %v882 = vunpack.c.h.b16 %v146
    %v883 = vunpack.c.l.b16 %v147
    %v884 = vunpack.c.h.b16 %v147
    %v885 = vunpack.c.l.b16 %v148
    %v886 = vunpack.c.h.b16 %v148
    %v887 = vunpack.c.l.b16 %v149
    %v888 = vunpack.c.h.b16 %v149
    %v889 = vunpack.c.l.b16 %v150
    %v890 = vunpack.c.h.b16 %v150
    %v891 = vunpack.c.l.b16 %v151
    %v892 = vunpack.c.h.b16 %v151
    %v893 = vunpack.c.l.b16 %v152
    %v894 = vunpack.c.h.b16 %v152
    %v895 = vunpack.c.l.b16 %v153
    %v896 = vunpack.c.h.b16 %v153
    %v897 = vunpack.c.l.b16 %v154
    %v898 = vunpack.c.h.b16 %v154
    %v899 = vunpack.c.l.b16 %v155
    %v900 = vunpack.c.h.b16 %v155
    %v901 = vunpack.c.l.b16 %v156
    %v902 = vunpack.c.h.b16 %v156
    %v903 = vunpack.c.l.b16 %v157
    %v904 = vunpack.c.h.b16 %v157
    %v905 = vunpack.c.l.b16 %v158
    %v906 = vunpack.c.h.b16 %v158
    %v907 = vunpack.c.l.b16 %v159
    %v908 = vunpack.c.h.b16 %v159
    %v909 = vunpack.c.l.b16 %v160
    %v910 = vunpack.c.h.b16 %v160
    %v911 = vunpack.c.l.b16 %v161
    %v912 = vunpack.c.h.b16 %v161
    %v913 = vunpack.c.l.b16 %v162
    %v914 = vunpack.c.h.b16 %v162
    %v915 = vunpack.c.l.b16 %v163
    %v916 = vunpack.c.h.b16 %v163
    %v917 = vunpack.c.l.b16 %v164
    %v918 = vunpack.c.h.b16 %v164
    %v919 = vunpack.c.l.b16 %v165
    %v920 = vunpack.c.h.b16 %v165
    %v921 = vunpack.c.l.b16 %v166
    %v922 = vunpack.c.h.b16 %v166
    %v923 = vunpack.c.l.b16 %v167
    %v924 = vunpack.c.h.b16 %v167
    %v925 = vunpack.c.l.b16 %v168
    %v926 = vunpack.c.h.b16 %v168
    %v927 = vunpack.c.l.b16 %v169
    %v928 = vunpack.c.h.b16 %v169
    %v929 = vunpack.c.l.b16 %v170
    %v930 = vunpack.c.h.b16 %v170
    %v931 = vunpack.c.l.b16 %v171
    %v932 = vunpack.c.h.b16 %v171
    %v933 = vunpack.c.l.b16 %v172
    %v934 = vunpack.c.h.b16 %v172
    %v935 = vunpack.c.l.b16 %v173
    %v936 = vunpack.c.h.b16 %v173
    %v937 = vunpack.c.l.b16 %v174
    %v938 = vunpack.c.h.b16 %v174
    %v939 = vunpack.c.l.b16 %v175
    %v940 = vunpack.c.h.b16 %v175
    %v941 = vunpack.c.l.b16 %v176
    %v942 = vunpack.c.h.b16 %v176
    %v943 = vunpack.c.l.b16 %v177
    %v944 = vunpack.c.h.b16 %v177
    %v945 = vunpack.c.l.b16 %v178
    %v946 = vunpack.c.h.b16 %v178
    %v947 = vunpack.c.l.b16 %v179
    %v948 = vunpack.c.h.b16 %v179
    %v949 = vunpack.c.l.b16 %v180
    %v950 = vunpack.c.h.b16 %v180
    %v951 = vunpack.c.l.b16 %v181
    %v952 = vunpack.c.h.b16 %v181
    %v953 = vunpack.c.l.b16 %v182
    %v954 = vunpack.c.h.b16 %v182
    %v955 = vunpack.c.l.b16 %v183
    %v956 = vunpack.c.h.b16 %v183
    %v957 = vunpack.c.l.b16 %v184
    %v958 = vunpack.c.h.b16 %v184
    %v959 = vunpack.c.l.b16 %v185
    %v960 = vunpack.c.h.b16 %v185
    %v961 = vunpack.c.l.b16 %v186
    %v962 = vunpack.c.h.b16 %v186
    %v963 = vunpack.c.l.b16 %v187
    %v964 = vunpack.c.h.b16 %v187
    %v965 = vunpack.c.l.b16 %v188
    %v966 = vunpack.c.h.b16 %v188
    %v967 = vunpack.c.l.b16 %v189
    %v968 = vunpack.c.h.b16 %v189
    %v969 = vunpack.c.l.b16 %v190
    %v970 = vunpack.c.h.b16 %v190
    %v971 = vunpack.c.l.b16 %v191
    %v972 = vunpack.c.h.b16 %v191
    %v973 = vunpack.c.l.b16 %v192
    %v974 = vunpack.c.h.b16 %v192
    %v975 = vunpack.c.l.b16 %v193
    %v976 = vunpack.c.h.b16 %v193
    %v977 = vunpack.c.l.b16 %v194
    %v978 = vunpack.c.h.b16 %v194
    %v979 = vunpack.c.l.b16 %v195
    %v980 = vunpack.c.h.b16 %v195
    %v981 = vunpack.c.l.b16 %v196
    %v982 = vunpack.c.h.b16 %v196
    %v983 = vunpack.c.l.b16 %v197
    %v984 = vunpack.c.h.b16 %v197
    %v985 = vunpack.c.l.b16 %v198
    %v986 = vunpack.c.h.b16 %v198
    %v987 = vunpack.c.l.b16 %v199
    %v988 = vunpack.c.h.b16 %v199
    %v989 = vunpack.c.l.b16 %v200
    %v990 = vunpack.c.h.b16 %v200
    %v991 = vunpack.c.l.b16 %v201
    %v992 = vunpack.c.h.b16 %v201
    %v993 = vunpack.c.l.b16 %v202
    %v994 = vunpack.c.h.b16 %v202
    %v995 = vunpack.c.l.b16 %v203
    %v996 = vunpack.c.h.b16 %v203
    %v997 = vunpack.c.l.b16 %v204
    %v998 = vunpack.c.h.b16 %v204
    %v999 = vunpack.c.l.b16 %v205
    %v1000 = vunpack.c.h.b16 %v205
    %v1001 = vunpack.c.l.b16 %v206
    %v1002 = vunpack.c.h.b16 %v206
    %v1003 = vunpack.c.l.b16 %v207
    %v1004 = vunpack.c.h.b16 %v207
    %v1005 = vunpack.c.l.b16 %v208
    %v1006 = vunpack.c.h.b16 %v208
    %v1007 = vunpack.c.l.b16 %v209
    %v1008 = vunpack.c.h.b16 %v209
    %v1009 = vunpack.c.l.b16 %v210
    %v1010 = vunpack.c.h.b16 %v210
    %v1011 = vunpack.c.l.b16 %v211
    %v1012 = vunpack.c.h.b16 %v211
    %v1013 = vunpack.c.l.b16 %v212
    %v1014 = vunpack.c.h.b16 %v212
    %v1015 = vunpack.c.l.b16 %v213
    %v1016 = vunpack.c.h.b16 %v213
    %v1017 = vunpack.c.l.b16 %v214
    %v1018 = vunpack.c.h.b16 %v214
    %v1019 = vunpack.c.l.b16 %v215
    %v1020 = vunpack.c.h.b16 %v215
    %v1021 = vunpack.c.l.b16 %v216
    %v1022 = vunpack.c.h.b16 %v216
    %v1023 = vunpack.c.l.b16 %v217
    %v1024 = vunpack.c.h.b16 %v217
    %v1025 = vunpack.c.l.b16 %v218
    %v1026 = vunpack.c.h.b16 %v218
    %v1027 = vunpack.c.l.b16 %v219
    %v1028 = vunpack.c.h.b16 %v219
    %v1029 = vunpack.c.l.b16 %v220
    %v1030 = vunpack.c.h.b16 %v220
    %v1031 = vunpack.c.l.b16 %v221
    %v1032 = vunpack.c.h.b16 %v221
    %v1033 = vunpack.c.l.b16 %v222
    %v1034 = vunpack.c.h.b16 %v222
    %v1035 = vunpack.c.l.b16 %v223
    %v1036 = vunpack.c.h.b16 %v223
    %v1037 = vunpack.c.l.b16 %v224
    %v1038 = vunpack.c.h.b16 %v224
    %v1039 = vunpack.c.l.b16 %v225
    %v1040 = vunpack.c.h.b16 %v225
    %v1041 = vunpack.c.l.b16 %v226
    %v1042 = vunpack.c.h.b16 %v226
    %v1043 = vunpack.c.l.b16 %v227
    %v1044 = vunpack.c.h.b16 %v227
    %v1045 = vunpack.c.l.b16 %v228
    %v1046 = vunpack.c.h.b16 %v228
    %v1047 = vunpack.c.l.b16 %v229
    %v1048 = vunpack.c.h.b16 %v229
    %v1049 = vunpack.c.l.b16 %v230
    %v1050 = vunpack.c.h.b16 %v230
    %v1051 = vunpack.c.l.b16 %v231
    %v1052 = vunpack.c.h.b16 %v231
    %v1053 = vunpack.c.l.b16 %v232
    %v1054 = vunpack.c.h.b16 %v232
    %v1055 = vunpack.c.l.b16 %v233
    %v1056 = vunpack.c.h.b16 %v233
    %v1057 = vunpack.c.l.b16 %v234
    %v1058 = vunpack.c.h.b16 %v234
    %v1059 = vunpack.c.l.b16 %v235
    %v1060 = vunpack.c.h.b16 %v235
    %v1061 = vunpack.c.l.b16 %v236
    %v1062 = vunpack.c.h.b16 %v236
    %v1063 = vunpack.c.l.b16 %v237
    %v1064 = vunpack.c.h.b16 %v237
    %v1065 = vunpack.c.l.b16 %v238
    %v1066 = vunpack.c.h.b16 %v238
    %v1067 = vunpack.c.l.b16 %v239
    %v1068 = vunpack.c.h.b16 %v239
    %v1069 = vunpack.c.l.b16 %v240
    %v1070 = vunpack.c.h.b16 %v240
    %v1071 = vunpack.c.l.b16 %v241
    %v1072 = vunpack.c.h.b16 %v241
    %v1073 = vunpack.c.l.b16 %v242
    %v1074 = vunpack.c.h.b16 %v242
    %v1075 = vunpack.c.l.b16 %v243
    %v1076 = vunpack.c.h.b16 %v243
    %v1077 = vunpack.c.l.b16 %v244
    %v1078 = vunpack.c.h.b16 %v244
    %v1079 = vunpack.c.l.b16 %v245
    %v1080 = vunpack.c.h.b16 %v245
    %v1081 = vunpack.c.l.b16 %v246
    %v1082 = vunpack.c.h.b16 %v246
    %v1083 = vunpack.c.l.b16 %v247
    %v1084 = vunpack.c.h.b16 %v247
    %v1085 = vunpack.c.l.b16 %v248
    %v1086 = vunpack.c.h.b16 %v248
    %v1087 = vunpack.c.l.b16 %v249
    %v1088 = vunpack.c.h.b16 %v249
    %v1089 = vunpack.c.l.b16 %v250
    %v1090 = vunpack.c.h.b16 %v250
    %v1091 = vunpack.c.l.b16 %v251
    %v1092 = vunpack.c.h.b16 %v251
    %v1093 = vunpack.c.l.b16 %v252
    %v1094 = vunpack.c.h.b16 %v252
    %v1095 = vunpack.c.l.b16 %v253
    %v1096 = vunpack.c.h.b16 %v253
    %v1097 = vunpack.c.l.b16 %v254
    %v1098 = vunpack.c.h.b16 %v254
    %v1099 = vunpack.c.l.b16 %v255
    %v1100 = vunpack.c.h.b16 %v255
    %v1101 = vunpack.c.l.b16 %v256
    %v1102 = vunpack.c.h.b16 %v256
    %v1103 = vunpack.c.l.b16 %v257
    %v1104 = vunpack.c.h.b16 %v257
    %v1105 = vunpack.c.l.b16 %v258
    %v1106 = vunpack.c.h.b16 %v258
    %v1107 = vunpack.c.l.b16 %v259
    %v1108 = vunpack.c.h.b16 %v259
    %v1109 = vunpack.c.l.b16 %v260
    %v1110 = vunpack.c.h.b16 %v260
    %v1111 = vunpack.c.l.b16 %v261
    %v1112 = vunpack.c.h.b16 %v261
    %v1113 = vunpack.c.l.b16 %v262
    %v1114 = vunpack.c.h.b16 %v262
    %v1115 = vunpack.c.l.b16 %v263
    %v1116 = vunpack.c.h.b16 %v263
    %v1117 = vunpack.c.l.b16 %v264
    %v1118 = vunpack.c.h.b16 %v264
    %v1119 = vunpack.c.l.b16 %v265
    %v1120 = vunpack.c.h.b16 %v265
    %v1121 = vunpack.c.l.b16 %v266
    %v1122 = vunpack.c.h.b16 %v266
    %v1123 = vunpack.c.l.b16 %v267
    %v1124 = vunpack.c.h.b16 %v267
    %v1125 = vunpack.c.l.b16 %v268
    %v1126 = vunpack.c.h.b16 %v268
    %v1127 = vunpack.c.l.b16 %v269
    %v1128 = vunpack.c.h.b16 %v269
    %v1129 = vunpack.c.l.b16 %v270
    %v1130 = vunpack.c.h.b16 %v270
    %v1131 = vunpack.c.l.b16 %v271
    %v1132 = vunpack.c.h.b16 %v271
    %v1133 = vunpack.c.l.b16 %v272
    %v1134 = vunpack.c.h.b16 %v272
    %v1135 = vunpack.c.l.b16 %v273
    %v1136 = vunpack.c.h.b16 %v273
    %v1137 = vunpack.c.l.b16 %v274
    %v1138 = vunpack.c.h.b16 %v274
    %v1139 = vunpack.c.l.b16 %v275
    %v1140 = vunpack.c.h.b16 %v275
    %v1141 = vunpack.c.l.b16 %v276
    %v1142 = vunpack.c.h.b16 %v276
    %v1143 = vunpack.c.l.b16 %v277
    %v1144 = vunpack.c.h.b16 %v277
    %v1145 = vunpack.c.l.b16 %v278
    %v1146 = vunpack.c.h.b16 %v278
    %v1147 = vunpack.c.l.b16 %v279
    %v1148 = vunpack.c.h.b16 %v279
    %v1149 = vunpack.c.l.b16 %v280
    %v1150 = vunpack.c.h.b16 %v280
    %v1151 = vunpack.c.l.b16 %v281
    %v1152 = vunpack.c.h.b16 %v281
    %v1153 = vunpack.c.l.b16 %v282
    %v1154 = vunpack.c.h.b16 %v282
    %v1155 = vunpack.c.l.b16 %v283
    %v1156 = vunpack.c.h.b16 %v283
    %v1157 = vunpack.c.l.b16 %v284
    %v1158 = vunpack.c.h.b16 %v284
    %v1159 = vunpack.c.l.b16 %v285
    %v1160 = vunpack.c.h.b16 %v285
    %v1161 = vunpack.c.l.b16 %v286
    %v1162 = vunpack.c.h.b16 %v286
    %v1163 = vunpack.c.l.b16 %v287
    %v1164 = vunpack.c.h.b16 %v287
    %v1165 = vunpack.c.l.b16 %v288
    %v1166 = vunpack.c.h.b16 %v288
    %v1167 = vunpack.c.l.b16 %v289
    %v1168 = vunpack.c.h.b16 %v289
    %v1169 = vunpack.c.l.b16 %v290
    %v1170 = vunpack.c.h.b16 %v290
    %v1171 = vunpack.c.l.b16 %v291
    %v1172 = vunpack.c.h.b16 %v291
    %v1173 = vunpack.c.l.b16 %v292
    %v1174 = vunpack.c.h.b16 %v292
    %v1175 = vunpack.c.l.b16 %v293
    %v1176 = vunpack.c.h.b16 %v293
    %v1177 = vunpack.c.l.b16 %v294
    %v1178 = vunpack.c.h.b16 %v294
    %v1179 = vunpack.c.l.b16 %v295
    %v1180 = vunpack.c.h.b16 %v295
    %v1181 = vunpack.c.l.b16 %v296
    %v1182 = vunpack.c.h.b16 %v296
    %v1183 = vunpack.c.l.b16 %v297
    %v1184 = vunpack.c.h.b16 %v297
    %v1185 = vunpack.c.l.b16 %v298
    %v1186 = vunpack.c.h.b16 %v298
    %v1187 = vunpack.c.l.b16 %v299
    %v1188 = vunpack.c.h.b16 %v299
    %v1189 = vunpack.c.l.b16 %v300
    %v1190 = vunpack.c.h.b16 %v300
    %v1191 = vpack.c.b16 %v803, %v799
    %v1192 = vpack.c.b16 %v804, %v800
    %v1193 = vpack.c.b16 %v805, %v801
    %v1194 = vpack.c.b16 %v806, %v802
    %v1195 = vpack.c.b16 %v811, %v807
    %v1196 = vpack.c.b16 %v812, %v808
    %v1197 = vpack.c.b16 %v813, %v809
    %v1198 = vpack.c.b16 %v814, %v810
    %v1199 = vpack.c.b16 %v819, %v815
    %v1200 = vpack.c.b16 %v820, %v816
    %v1201 = vpack.c.b16 %v821, %v817
    %v1202 = vpack.c.b16 %v822, %v818
    %v1203 = vpack.c.b16 %v827, %v823
    %v1204 = vpack.c.b16 %v828, %v824
    %v1205 = vpack.c.b16 %v829, %v825
    %v1206 = vpack.c.b16 %v830, %v826
    %v1207 = vpack.c.b16 %v835, %v831
    %v1208 = vpack.c.b16 %v836, %v832
    %v1209 = vpack.c.b16 %v837, %v833
    %v1210 = vpack.c.b16 %v838, %v834
    %v1211 = vpack.c.b16 %v843, %v839
    %v1212 = vpack.c.b16 %v844, %v840
    %v1213 = vpack.c.b16 %v845, %v841
    %v1214 = vpack.c.b16 %v846, %v842
    %v1215 = vpack.c.b16 %v851, %v847
    %v1216 = vpack.c.b16 %v852, %v848
    %v1217 = vpack.c.b16 %v853, %v849
    %v1218 = vpack.c.b16 %v854, %v850
    %v1219 = vpack.c.b16 %v859, %v855
    %v1220 = vpack.c.b16 %v860, %v856
    %v1221 = vpack.c.b16 %v861, %v857
    %v1222 = vpack.c.b16 %v862, %v858
    %v1223 = vpack.c.b16 %v867, %v863
    %v1224 = vpack.c.b16 %v868, %v864
    %v1225 = vpack.c.b16 %v869, %v865
    %v1226 = vpack.c.b16 %v870, %v866
    %v1227 = vpack.c.b16 %v875, %v871
    %v1228 = vpack.c.b16 %v876, %v872
    %v1229 = vpack.c.b16 %v877, %v873
    %v1230 = vpack.c.b16 %v878, %v874
    %v1231 = vpack.c.b16 %v883, %v879
    %v1232 = vpack.c.b16 %v884, %v880
    %v1233 = vpack.c.b16 %v885, %v881
    %v1234 = vpack.c.b16 %v886, %v882
    %v1235 = vpack.c.b16 %v891, %v887
    %v1236 = vpack.c.b16 %v892, %v888
    %v1237 = vpack.c.b16 %v893, %v889
    %v1238 = vpack.c.b16 %v894, %v890
    %v1239 = vpack.c.b16 %v899, %v895
    %v1240 = vpack.c.b16 %v900, %v896
    %v1241 = vpack.c.b16 %v901, %v897
    %v1242 = vpack.c.b16 %v902, %v898
    %v1243 = vpack.c.b16 %v907, %v903
    %v1244 = vpack.c.b16 %v908, %v904
    %v1245 = vpack.c.b16 %v909, %v905
    %v1246 = vpack.c.b16 %v910, %v906
    %v1247 = vpack.c.b16 %v915, %v911
    %v1248 = vpack.c.b16 %v916, %v912
    %v1249 = vpack.c.b16 %v917, %v913
    %v1250 = vpack.c.b16 %v918, %v914
    %v1251 = vpack.c.b16 %v923, %v919
    %v1252 = vpack.c.b16 %v924, %v920
    %v1253 = vpack.c.b16 %v925, %v921
    %v1254 = vpack.c.b16 %v926, %v922
    %v1255 = vpack.c.b16 %v931, %v927
    %v1256 = vpack.c.b16 %v932, %v928
    %v1257 = vpack.c.b16 %v933, %v929
    %v1258 = vpack.c.b16 %v934, %v930
    %v1259 = vpack.c.b16 %v939, %v935
    %v1260 = vpack.c.b16 %v940, %v936
    %v1261 = vpack.c.b16 %v941, %v937
    %v1262 = vpack.c.b16 %v942, %v938
    %v1263 = vpack.c.b16 %v947, %v943
    %v1264 = vpack.c.b16 %v948, %v944
    %v1265 = vpack.c.b16 %v949, %v945
    %v1266 = vpack.c.b16 %v950, %v946
    %v1267 = vpack.c.b16 %v955, %v951
    %v1268 = vpack.c.b16 %v956, %v952
    %v1269 = vpack.c.b16 %v957, %v953
    %v1270 = vpack.c.b16 %v958, %v954
    %v1271 = vpack.c.b16 %v963, %v959
    %v1272 = vpack.c.b16 %v964, %v960
    %v1273 = vpack.c.b16 %v965, %v961
    %v1274 = vpack.c.b16 %v966, %v962
    %v1275 = vpack.c.b16 %v971, %v967
    %v1276 = vpack.c.b16 %v972, %v968
    %v1277 = vpack.c.b16 %v973, %v969
    %v1278 = vpack.c.b16 %v974, %v970
    %v1279 = vpack.c.b16 %v979, %v975
    %v1280 = vpack.c.b16 %v980, %v976
    %v1281 = vpack.c.b16 %v981, %v977
    %v1282 = vpack.c.b16 %v982, %v978
    %v1283 = vpack.c.b16 %v987, %v983
    %v1284 = vpack.c.b16 %v988, %v984
    %v1285 = vpack.c.b16 %v989, %v985
    %v1286 = vpack.c.b16 %v990, %v986
    %v1287 = vpack.c.b16 %v995, %v991
    %v1288 = vpack.c.b16 %v996, %v992
    %v1289 = vpack.c.b16 %v997, %v993
    %v1290 = vpack.c.b16 %v998, %v994
    %v1291 = vpack.c.b16 %v1003, %v999
    %v1292 = vpack.c.b16 %v1004, %v1000
    %v1293 = vpack.c.b16 %v1005, %v1001
    %v1294 = vpack.c.b16 %v1006, %v1002
    %v1295 = vpack.c.b16 %v1011, %v1007
    %v1296 = vpack.c.b16 %v1012, %v1008
    %v1297 = vpack.c.b16 %v1013, %v1009
    %v1298 = vpack.c.b16 %v1014, %v1010
    %v1299 = vpack.c.b16 %v1019, %v1015
    %v1300 = vpack.c.b16 %v1020, %v1016
    %v1301 = vpack.c.b16 %v1021, %v1017
    %v1302 = vpack.c.b16 %v1022, %v1018
    %v1303 = vpack.c.b16 %v1027, %v1023
    %v1304 = vpack.c.b16 %v1028, %v1024
    %v1305 = vpack.c.b16 %v1029, %v1025
    %v1306 = vpack.c.b16 %v1030, %v1026
    %v1307 = vpack.c.b16 %v1035, %v1031
    %v1308 = vpack.c.b16 %v1036, %v1032
    %v1309 = vpack.c.b16 %v1037, %v1033
    %v1310 = vpack.c.b16 %v1038, %v1034
    %v1311 = vpack.c.b16 %v1043, %v1039
    %v1312 = vpack.c.b16 %v1044, %v1040
    %v1313 = vpack.c.b16 %v1045, %v1041
    %v1314 = vpack.c.b16 %v1046, %v1042
    %v1315 = vpack.c.b16 %v1051, %v1047
    %v1316 = vpack.c.b16 %v1052, %v1048
    %v1317 = vpack.c.b16 %v1053, %v1049
    %v1318 = vpack.c.b16 %v1054, %v1050
    %v1319 = vpack.c.b16 %v1059, %v1055
    %v1320 = vpack.c.b16 %v1060, %v1056
    %v1321 = vpack.c.b16 %v1061, %v1057
    %v1322 = vpack.c.b16 %v1062, %v1058
    %v1323 = vpack.c.b16 %v1067, %v1063
    %v1324 = vpack.c.b16 %v1068, %v1064
    %v1325 = vpack.c.b16 %v1069, %v1065
    %v1326 = vpack.c.b16 %v1070, %v1066
    %v1327 = vpack.c.b16 %v1075, %v1071
    %v1328 = vpack.c.b16 %v1076, %v1072
    %v1329 = vpack.c.b16 %v1077, %v1073
    %v1330 = vpack.c.b16 %v1078, %v1074
    %v1331 = vpack.c.b16 %v1083, %v1079
    %v1332 = vpack.c.b16 %v1084, %v1080
    %v1333 = vpack.c.b16 %v1085, %v1081
    %v1334 = vpack.c.b16 %v1086, %v1082
    %v1335 = vpack.c.b16 %v1091, %v1087
    %v1336 = vpack.c.b16 %v1092, %v1088
    %v1337 = vpack.c.b16 %v1093, %v1089
    %v1338 = vpack.c.b16 %v1094, %v1090
    %v1339 = vpack.c.b16 %v1099, %v1095
    %v1340 = vpack.c.b16 %v1100, %v1096
    %v1341 = vpack.c.b16 %v1101, %v1097
    %v1342 = vpack.c.b16 %v1102, %v1098
    %v1343 = vpack.c.b16 %v1107, %v1103
    %v1344 = vpack.c.b16 %v1108, %v1104
    %v1345 = vpack.c.b16 %v1109, %v1105
    %v1346 = vpack.c.b16 %v1110, %v1106
    %v1347 = vpack.c.b16 %v1115, %v1111
    %v1348 = vpack.c.b16 %v1116, %v1112
    %v1349 = vpack.c.b16 %v1117, %v1113
    %v1350 = vpack.c.b16 %v1118, %v1114
    %v1351 = vpack.c.b16 %v1123, %v1119
    %v1352 = vpack.c.b16 %v1124, %v1120
    %v1353 = vpack.c.b16 %v1125, %v1121
    %v1354 = vpack.c.b16 %v1126, %v1122
    %v1355 = vpack.c.b16 %v1131, %v1127
    %v1356 = vpack.c.b16 %v1132, %v1128
    %v1357 = vpack.c.b16 %v1133, %v1129
    %v1358 = vpack.c.b16 %v1134, %v1130
    %v1359 = vpack.c.b16 %v1139, %v1135
    %v1360 = vpack.c.b16 %v1140, %v1136
    %v1361 = vpack.c.b16 %v1141, %v1137
    %v1362 = vpack.c.b16 %v1142, %v1138
    %v1363 = vpack.c.b16 %v1147, %v1143
    %v1364 = vpack.c.b16 %v1148, %v1144
    %v1365 = vpack.c.b16 %v1149, %v1145
    %v1366 = vpack.c.b16 %v1150, %v1146
    %v1367 = vpack.c.b16 %v1155, %v1151
    %v1368 = vpack.c.b16 %v1156, %v1152
    %v1369 = vpack.c.b16 %v1157, %v1153
    %v1370 = vpack.c.b16 %v1158, %v1154
    %v1371 = vpack.c.b16 %v1163, %v1159
    %v1372 = vpack.c.b16 %v1164, %v1160
    %v1373 = vpack.c.b16 %v1165, %v1161
    %v1374 = vpack.c.b16 %v1166, %v1162
    %v1375 = vpack.c.b16 %v1171, %v1167
    %v1376 = vpack.c.b16 %v1172, %v1168
    %v1377 = vpack.c.b16 %v1173, %v1169
    %v1378 = vpack.c.b16 %v1174, %v1170
    %v1379 = vpack.c.b16 %v1179, %v1175
    %v1380 = vpack.c.b16 %v1180, %v1176
    %v1381 = vpack.c.b16 %v1181, %v1177
    %v1382 = vpack.c.b16 %v1182, %v1178
    %v1383 = vpack.c.b16 %v1187, %v1183
    %v1384 = vpack.c.b16 %v1188, %v1184
    %v1385 = vpack.c.b16 %v1189, %v1185
    %v1386 = vpack.c.b16 %v1190, %v1186
    %vm1583 = vcmask 130048
    %v1585 = vsel %vm1583, %v505, 0
    %v1588 = vsel %vm1583, %v512, 0
    %v1591 = vsel %vm1583, %v519, 0
    %v1594 = vsel %vm1583, %v526, 0
    %v1597 = vsel %vm1583, %v533, 0
    %v1600 = vsel %vm1583, %v540, 0
    %v1603 = vsel %vm1583, %v547, 0
    %v1606 = vsel %vm1583, %v554, 0
    %1608 = vmatprep.subr.bf16.mxu0 %v1192
    %1609 = vmatpush1.bf16.msra.mxu0 %v1191
    %1610 = vmatprep.subr.bf16.mxu0 %v1196
    %1611 = vmatpush1.bf16.msra.mxu0 %v1195
    %1612 = vmatprep.subr.bf16.mxu0 %v1200
    %1613 = vmatpush1.bf16.msra.mxu0 %v1199
    %1614 = vmatprep.subr.bf16.mxu0 %v1204
    %1615 = vmatpush1.bf16.msra.mxu0 %v1203
    %1616 = vmatprep.subr.bf16.mxu0 %v1208
    %1617 = vmatpush1.bf16.msra.mxu0 %v1207
    %1618 = vmatprep.subr.bf16.mxu0 %v1212
    %1619 = vmatpush1.bf16.msra.mxu0 %v1211
    %1620 = vmatprep.subr.bf16.mxu0 %v1216
    %1621 = vmatpush1.bf16.msra.mxu0 %v1215
    %1622 = vmatprep.subr.bf16.mxu0 %v1220
    %1623 = vmatpush1.bf16.msra.mxu0 %v1219
    %1624 = vmatprep.subr.bf16.mxu0 %v1224
    %1625 = vmatpush1.bf16.msra.mxu0 %v1223
    %1626 = vmatprep.subr.bf16.mxu0 %v1228
    %1627 = vmatpush1.bf16.msra.mxu0 %v1227
    %1628 = vmatprep.subr.bf16.mxu0 %v1232
    %1629 = vmatpush1.bf16.msra.mxu0 %v1231
    %1630 = vmatprep.subr.bf16.mxu0 %v1236
    %1631 = vmatpush1.bf16.msra.mxu0 %v1235
    %1632 = vmatprep.subr.bf16.mxu0 %v1240
    %1633 = vmatpush1.bf16.msra.mxu0 %v1239
    %1634 = vmatprep.subr.bf16.mxu0 %v1244
    %1635 = vmatpush1.bf16.msra.mxu0 %v1243
    %1636 = vmatprep.subr.bf16.mxu0 %v1248
    %1637 = vmatpush1.bf16.msra.mxu0 %v1247
    %1638 = vmatprep.subr.bf16.mxu0 %v1252
    %1639 = vmatpush1.bf16.msra.mxu0 %v1251
    %1640 = vmatprep.mubr.bf16.mxu0 %v500
    %1641 = vmatmul.mubr.bf16.gmra.mrb[0].mxu0 %v499
    %v1642 = vpop.f32.mrb[0].mxu0
    %v1643 = vadd.f32 %v306, %v1642
    %v1644 = vpop.f32.mrb[0].mxu0
    %v1645 = vadd.f32 %v310, %v1644
    %v1646 = vpop.f32.mrb[0].mxu0
    %v1647 = vadd.f32 %v306, %v1646
    %v1648 = vpop.f32.mrb[0].mxu0
    %v1649 = vadd.f32 %v310, %v1648
    %1650 = vmatprep.mubr.bf16.mxu0 %v507
    %1651 = vmatmul.mubr.bf16.gmra.mrb[0].mxu0 %v506
    %v1652 = vpop.f32.mrb[0].mxu0
    %v1653 = vadd.f32 %v306, %v1652
    %v1654 = vpop.f32.mrb[0].mxu0
    %v1655 = vadd.f32 %v310, %v1654
    %v1656 = vpop.f32.mrb[0].mxu0
    %v1657 = vadd.f32 %v306, %v1656
    %v1658 = vpop.f32.mrb[0].mxu0
    %v1659 = vadd.f32 %v310, %v1658
    %1660 = vmatprep.mubr.bf16.mxu0 %v514
    %1661 = vmatmul.mubr.bf16.gmra.mrb[0].mxu0 %v513
    %v1662 = vpop.f32.mrb[0].mxu0
    %v1663 = vadd.f32 %v306, %v1662
    %v1664 = vpop.f32.mrb[0].mxu0
    %v1665 = vadd.f32 %v310, %v1664
    %v1666 = vpop.f32.mrb[0].mxu0
    %v1667 = vadd.f32 %v306, %v1666
    %v1668 = vpop.f32.mrb[0].mxu0
    %v1669 = vadd.f32 %v310, %v1668
    %1670 = vmatprep.mubr.bf16.mxu0 %v521
    %1671 = vmatmul.mubr.bf16.gmra.mrb[0].mxu0 %v520
    %v1672 = vpop.f32.mrb[0].mxu0
    %v1673 = vadd.f32 %v306, %v1672
    %v1674 = vpop.f32.mrb[0].mxu0
    %v1675 = vadd.f32 %v310, %v1674
    %v1676 = vpop.f32.mrb[0].mxu0
    %v1677 = vadd.f32 %v306, %v1676
    %v1678 = vpop.f32.mrb[0].mxu0
    %v1679 = vadd.f32 %v310, %v1678
    %1680 = vmatprep.mubr.bf16.mxu0 %v528
    %1681 = vmatmul.mubr.bf16.gmra.mrb[0].mxu0 %v527
    %v1682 = vpop.f32.mrb[0].mxu0
    %v1683 = vadd.f32 %v306, %v1682
    %v1684 = vpop.f32.mrb[0].mxu0
    %v1685 = vadd.f32 %v310, %v1684
    %v1686 = vpop.f32.mrb[0].mxu0
    %v1687 = vadd.f32 %v306, %v1686
    %v1688 = vpop.f32.mrb[0].mxu0
    %v1689 = vadd.f32 %v310, %v1688
    %1690 = vmatprep.mubr.bf16.mxu0 %v535
    %1691 = vmatmul.mubr.bf16.gmra.mrb[0].mxu0 %v534
    %v1692 = vpop.f32.mrb[0].mxu0
    %v1693 = vadd.f32 %v306, %v1692
    %v1694 = vpop.f32.mrb[0].mxu0
    %v1695 = vadd.f32 %v310, %v1694
    %v1696 = vpop.f32.mrb[0].mxu0
    %v1697 = vadd.f32 %v306, %v1696
    %v1698 = vpop.f32.mrb[0].mxu0
    %v1699 = vadd.f32 %v310, %v1698
    %1700 = vmatprep.mubr.bf16.mxu0 %v542
    %1701 = vmatmul.mubr.bf16.gmra.mrb[0].mxu0 %v541
    %v1702 = vpop.f32.mrb[0].mxu0
    %v1703 = vadd.f32 %v306, %v1702
    %v1704 = vpop.f32.mrb[0].mxu0
    %v1705 = vadd.f32 %v310, %v1704
    %v1706 = vpop.f32.mrb[0].mxu0
    %v1707 = vadd.f32 %v306, %v1706
    %v1708 = vpop.f32.mrb[0].mxu0
    %v1709 = vadd.f32 %v310, %v1708
    %1710 = vmatprep.mubr.bf16.mxu0 %v549
    %1711 = vmatmul.mubr.bf16.gmra.mrb[0].mxu0 %v548
    %v1712 = vpop.f32.mrb[0].mxu0
    %v1713 = vadd.f32 %v306, %v1712
    %v1714 = vpop.f32.mrb[0].mxu0
    %v1715 = vadd.f32 %v310, %v1714
    %v1716 = vpop.f32.mrb[0].mxu0
    %v1717 = vadd.f32 %v306, %v1716
    %v1718 = vpop.f32.mrb[0].mxu0
    %v1719 = vadd.f32 %v310, %v1718
    %1720 = vdwg.mxu0
    %1721 = vmatprep.subr.bf16.mxu0 %v1256
    %1722 = vmatpush1.bf16.msra.mxu0 %v1255
    %1723 = vmatprep.subr.bf16.mxu0 %v1260
    %1724 = vmatpush1.bf16.msra.mxu0 %v1259
    %1725 = vmatprep.subr.bf16.mxu0 %v1264
    %1726 = vmatpush1.bf16.msra.mxu0 %v1263
    %1727 = vmatprep.subr.bf16.mxu0 %v1268
    %1728 = vmatpush1.bf16.msra.mxu0 %v1267
    %1729 = vmatprep.subr.bf16.mxu0 %v1272
    %1730 = vmatpush1.bf16.msra.mxu0 %v1271
    %1731 = vmatprep.subr.bf16.mxu0 %v1276
    %1732 = vmatpush1.bf16.msra.mxu0 %v1275
    %1733 = vmatprep.subr.bf16.mxu0 %v1280
    %1734 = vmatpush1.bf16.msra.mxu0 %v1279
    %1735 = vmatprep.subr.bf16.mxu0 %v1284
    %1736 = vmatpush1.bf16.msra.mxu0 %v1283
    %1737 = vmatprep.subr.bf16.mxu0 %v1288
    %1738 = vmatpush1.bf16.msra.mxu0 %v1287
    %1739 = vmatprep.subr.bf16.mxu0 %v1292
    %1740 = vmatpush1.bf16.msra.mxu0 %v1291
    %1741 = vmatprep.subr.bf16.mxu0 %v1296
    %1742 = vmatpush1.bf16.msra.mxu0 %v1295
    %1743 = vmatprep.subr.bf16.mxu0 %v1300
    %1744 = vmatpush1.bf16.msra.mxu0 %v1299
    %1745 = vmatprep.subr.bf16.mxu0 %v1304
    %1746 = vmatpush1.bf16.msra.mxu0 %v1303
    %1747 = vmatprep.subr.bf16.mxu0 %v1308
    %1748 = vmatpush1.bf16.msra.mxu0 %v1307
    %1749 = vmatprep.subr.bf16.mxu0 %v1312
    %1750 = vmatpush1.bf16.msra.mxu0 %v1311
    %1751 = vmatprep.subr.bf16.mxu0 %v1316
    %1752 = vmatpush1.bf16.msra.mxu0 %v1315
    %1753 = vmatprep.mubr.bf16.mxu0 %v502
    %1754 = vmatmul.mubr.bf16.gmra.mrb[0].mxu0 %v501
    %v1755 = vpop.f32.mrb[0].mxu0
    %v1756 = vadd.f32 %v1643, %v1755
    %v1757 = vpop.f32.mrb[0].mxu0
    %v1758 = vadd.f32 %v1645, %v1757
    %v1759 = vpop.f32.mrb[0].mxu0
    %v1760 = vadd.f32 %v1647, %v1759
    %v1761 = vpop.f32.mrb[0].mxu0
    %v1762 = vadd.f32 %v1649, %v1761
    %1763 = vmatprep.mubr.bf16.mxu0 %v509
    %1764 = vmatmul.mubr.bf16.gmra.mrb[0].mxu0 %v508
    %v1765 = vpop.f32.mrb[0].mxu0
    %v1766 = vadd.f32 %v1653, %v1765
    %v1767 = vpop.f32.mrb[0].mxu0
    %v1768 = vadd.f32 %v1655, %v1767
    %v1769 = vpop.f32.mrb[0].mxu0
    %v1770 = vadd.f32 %v1657, %v1769
    %v1771 = vpop.f32.mrb[0].mxu0
    %v1772 = vadd.f32 %v1659, %v1771
    %1773 = vmatprep.mubr.bf16.mxu0 %v516
    %1774 = vmatmul.mubr.bf16.gmra.mrb[0].mxu0 %v515
    %v1775 = vpop.f32.mrb[0].mxu0
    %v1776 = vadd.f32 %v1663, %v1775
    %v1777 = vpop.f32.mrb[0].mxu0
    %v1778 = vadd.f32 %v1665, %v1777
    %v1779 = vpop.f32.mrb[0].mxu0
    %v1780 = vadd.f32 %v1667, %v1779
    %v1781 = vpop.f32.mrb[0].mxu0
    %v1782 = vadd.f32 %v1669, %v1781
    %1783 = vmatprep.mubr.bf16.mxu0 %v523
    %1784 = vmatmul.mubr.bf16.gmra.mrb[0].mxu0 %v522
    %v1785 = vpop.f32.mrb[0].mxu0
    %v1786 = vadd.f32 %v1673, %v1785
    %v1787 = vpop.f32.mrb[0].mxu0
    %v1788 = vadd.f32 %v1675, %v1787
    %v1789 = vpop.f32.mrb[0].mxu0
    %v1790 = vadd.f32 %v1677, %v1789
    %v1791 = vpop.f32.mrb[0].mxu0
    %v1792 = vadd.f32 %v1679, %v1791
    %1793 = vmatprep.mubr.bf16.mxu0 %v530
    %1794 = vmatmul.mubr.bf16.gmra.mrb[0].mxu0 %v529
    %v1795 = vpop.f32.mrb[0].mxu0
    %v1796 = vadd.f32 %v1683, %v1795
    %v1797 = vpop.f32.mrb[0].mxu0
    %v1798 = vadd.f32 %v1685, %v1797
    %v1799 = vpop.f32.mrb[0].mxu0
    %v1800 = vadd.f32 %v1687, %v1799
    %v1801 = vpop.f32.mrb[0].mxu0
    %v1802 = vadd.f32 %v1689, %v1801
    %1803 = vmatprep.mubr.bf16.mxu0 %v537
    %1804 = vmatmul.mubr.bf16.gmra.mrb[0].mxu0 %v536
    %v1805 = vpop.f32.mrb[0].mxu0
    %v1806 = vadd.f32 %v1693, %v1805
    %v1807 = vpop.f32.mrb[0].mxu0
    %v1808 = vadd.f32 %v1695, %v1807
    %v1809 = vpop.f32.mrb[0].mxu0
    %v1810 = vadd.f32 %v1697, %v1809
    %v1811 = vpop.f32.mrb[0].mxu0
    %v1812 = vadd.f32 %v1699, %v1811
    %1813 = vmatprep.mubr.bf16.mxu0 %v544
    %1814 = vmatmul.mubr.bf16.gmra.mrb[0].mxu0 %v543
    %v1815 = vpop.f32.mrb[0].mxu0
    %v1816 = vadd.f32 %v1703, %v1815
    %v1817 = vpop.f32.mrb[0].mxu0
    %v1818 = vadd.f32 %v1705, %v1817
    %v1819 = vpop.f32.mrb[0].mxu0
    %v1820 = vadd.f32 %v1707, %v1819
    %v1821 = vpop.f32.mrb[0].mxu0
    %v1822 = vadd.f32 %v1709, %v1821
    %1823 = vmatprep.mubr.bf16.mxu0 %v551
    %1824 = vmatmul.mubr.bf16.gmra.mrb[0].mxu0 %v550
    %v1825 = vpop.f32.mrb[0].mxu0
    %v1826 = vadd.f32 %v1713, %v1825
    %v1827 = vpop.f32.mrb[0].mxu0
    %v1828 = vadd.f32 %v1715, %v1827
    %v1829 = vpop.f32.mrb[0].mxu0
    %v1830 = vadd.f32 %v1717, %v1829
    %v1831 = vpop.f32.mrb[0].mxu0
    %v1832 = vadd.f32 %v1719, %v1831
    %1833 = vdwg.mxu0
    %1834 = vmatprep.subr.bf16.mxu0 %v1320
    %1835 = vmatpush1.bf16.msra.mxu0 %v1319
    %1836 = vmatprep.subr.bf16.mxu0 %v1324
    %1837 = vmatpush1.bf16.msra.mxu0 %v1323
    %1838 = vmatprep.subr.bf16.mxu0 %v1328
    %1839 = vmatpush1.bf16.msra.mxu0 %v1327
    %1840 = vmatprep.subr.bf16.mxu0 %v1332
    %1841 = vmatpush1.bf16.msra.mxu0 %v1331
    %1842 = vmatprep.subr.bf16.mxu0 %v1336
    %1843 = vmatpush1.bf16.msra.mxu0 %v1335
    %1844 = vmatprep.subr.bf16.mxu0 %v1340
    %1845 = vmatpush1.bf16.msra.mxu0 %v1339
    %1846 = vmatprep.subr.bf16.mxu0 %v1344
    %1847 = vmatpush1.bf16.msra.mxu0 %v1343
    %1848 = vmatprep.subr.bf16.mxu0 %v1348
    %1849 = vmatpush1.bf16.msra.mxu0 %v1347
    %1850 = vmatprep.subr.bf16.mxu0 %v1352
    %1851 = vmatpush1.bf16.msra.mxu0 %v1351
    %1852 = vmatprep.subr.bf16.mxu0 %v1356
    %1853 = vmatpush1.bf16.msra.mxu0 %v1355
    %1854 = vmatprep.subr.bf16.mxu0 %v1360
    %1855 = vmatpush1.bf16.msra.mxu0 %v1359
    %1856 = vmatprep.subr.bf16.mxu0 %v1364
    %1857 = vmatpush1.bf16.msra.mxu0 %v1363
    %1858 = vmatprep.subr.bf16.mxu0 %v1368
    %1859 = vmatpush1.bf16.msra.mxu0 %v1367
    %1860 = vmatprep.subr.bf16.mxu0 %v1372
    %1861 = vmatpush1.bf16.msra.mxu0 %v1371
    %1862 = vmatprep.subr.bf16.mxu0 %v1376
    %1863 = vmatpush1.bf16.msra.mxu0 %v1375
    %1864 = vmatprep.subr.bf16.mxu0 %v1380
    %1865 = vmatpush1.bf16.msra.mxu0 %v1379
    %1866 = vmatprep.mubr.bf16.mxu0 %v504
    %1867 = vmatmul.mubr.bf16.gmra.mrb[0].mxu0 %v503
    %v1868 = vpop.f32.mrb[0].mxu0
    %v1869 = vadd.f32 %v1756, %v1868
    %v1870 = vpop.f32.mrb[0].mxu0
    %v1871 = vadd.f32 %v1758, %v1870
    %v1872 = vpop.f32.mrb[0].mxu0
    %v1873 = vadd.f32 %v1760, %v1872
    %v1874 = vpop.f32.mrb[0].mxu0
    %v1875 = vadd.f32 %v1762, %v1874
    %1876 = vmatprep.mubr.bf16.mxu0 %v511
    %1877 = vmatmul.mubr.bf16.gmra.mrb[0].mxu0 %v510
    %v1878 = vpop.f32.mrb[0].mxu0
    %v1879 = vadd.f32 %v1766, %v1878
    %v1880 = vpop.f32.mrb[0].mxu0
    %v1881 = vadd.f32 %v1768, %v1880
    %v1882 = vpop.f32.mrb[0].mxu0
    %v1883 = vadd.f32 %v1770, %v1882
    %v1884 = vpop.f32.mrb[0].mxu0
    %v1885 = vadd.f32 %v1772, %v1884
    %1886 = vmatprep.mubr.bf16.mxu0 %v518
    %1887 = vmatmul.mubr.bf16.gmra.mrb[0].mxu0 %v517
    %v1888 = vpop.f32.mrb[0].mxu0
    %v1889 = vadd.f32 %v1776, %v1888
    %v1890 = vpop.f32.mrb[0].mxu0
    %v1891 = vadd.f32 %v1778, %v1890
    %v1892 = vpop.f32.mrb[0].mxu0
    %v1893 = vadd.f32 %v1780, %v1892
    %v1894 = vpop.f32.mrb[0].mxu0
    %v1895 = vadd.f32 %v1782, %v1894
    %1896 = vmatprep.mubr.bf16.mxu0 %v525
    %1897 = vmatmul.mubr.bf16.gmra.mrb[0].mxu0 %v524
    %v1898 = vpop.f32.mrb[0].mxu0
    %v1899 = vadd.f32 %v1786, %v1898
    %v1900 = vpop.f32.mrb[0].mxu0
    %v1901 = vadd.f32 %v1788, %v1900
    %v1902 = vpop.f32.mrb[0].mxu0
    %v1903 = vadd.f32 %v1790, %v1902
    %v1904 = vpop.f32.mrb[0].mxu0
    %v1905 = vadd.f32 %v1792, %v1904
    %1906 = vmatprep.mubr.bf16.mxu0 %v532
    %1907 = vmatmul.mubr.bf16.gmra.mrb[0].mxu0 %v531
    %v1908 = vpop.f32.mrb[0].mxu0
    %v1909 = vadd.f32 %v1796, %v1908
    %v1910 = vpop.f32.mrb[0].mxu0
    %v1911 = vadd.f32 %v1798, %v1910
    %v1912 = vpop.f32.mrb[0].mxu0
    %v1913 = vadd.f32 %v1800, %v1912
    %v1914 = vpop.f32.mrb[0].mxu0
    %v1915 = vadd.f32 %v1802, %v1914
    %1916 = vmatprep.mubr.bf16.mxu0 %v539
    %1917 = vmatmul.mubr.bf16.gmra.mrb[0].mxu0 %v538
    %v1918 = vpop.f32.mrb[0].mxu0
    %v1919 = vadd.f32 %v1806, %v1918
    %v1920 = vpop.f32.mrb[0].mxu0
    %v1921 = vadd.f32 %v1808, %v1920
    %v1922 = vpop.f32.mrb[0].mxu0
    %v1923 = vadd.f32 %v1810, %v1922
    %v1924 = vpop.f32.mrb[0].mxu0
    %v1925 = vadd.f32 %v1812, %v1924
    %1926 = vmatprep.mubr.bf16.mxu0 %v546
    %1927 = vmatmul.mubr.bf16.gmra.mrb[0].mxu0 %v545
    %v1928 = vpop.f32.mrb[0].mxu0
    %v1929 = vadd.f32 %v1816, %v1928
    %v1930 = vpop.f32.mrb[0].mxu0
    %v1931 = vadd.f32 %v1818, %v1930
    %v1932 = vpop.f32.mrb[0].mxu0
    %v1933 = vadd.f32 %v1820, %v1932
    %v1934 = vpop.f32.mrb[0].mxu0
    %v1935 = vadd.f32 %v1822, %v1934
    %1936 = vmatprep.mubr.bf16.mxu0 %v553
    %1937 = vmatmul.mubr.bf16.gmra.mrb[0].mxu0 %v552
    %v1938 = vpop.f32.mrb[0].mxu0
    %v1939 = vadd.f32 %v1826, %v1938
    %v1940 = vpop.f32.mrb[0].mxu0
    %v1941 = vadd.f32 %v1828, %v1940
    %v1942 = vpop.f32.mrb[0].mxu0
    %v1943 = vadd.f32 %v1830, %v1942
    %v1944 = vpop.f32.mrb[0].mxu0
    %v1945 = vadd.f32 %v1832, %v1944
    %1946 = vdwg.mxu0
    %1947 = vmatprep.subr.bf16.mxu0 %v1384
    %1948 = vmatpush1.bf16.msra.mxu0 %v1383
    %1949 = vmatprep.subr.bf16.mxu0 0
    %1950 = vmatpush1.bf16.msra.mxu0 0
    %1951 = vmatprep.subr.bf16.mxu0 0
    %1952 = vmatpush1.bf16.msra.mxu0 0
    %1953 = vmatprep.subr.bf16.mxu0 0
    %1954 = vmatpush1.bf16.msra.mxu0 0
    %1955 = vmatprep.subr.bf16.mxu0 0
    %1956 = vmatpush1.bf16.msra.mxu0 0
    %1957 = vmatprep.subr.bf16.mxu0 0
    %1958 = vmatpush1.bf16.msra.mxu0 0
    %1959 = vmatprep.subr.bf16.mxu0 0
    %1960 = vmatpush1.bf16.msra.mxu0 0
    %1961 = vmatprep.subr.bf16.mxu0 0
    %1962 = vmatpush1.bf16.msra.mxu0 0
    %1963 = vmatprep.subr.bf16.mxu0 0
    %1964 = vmatpush1.bf16.msra.mxu0 0
    %1965 = vmatprep.subr.bf16.mxu0 0
    %1966 = vmatpush1.bf16.msra.mxu0 0
    %1967 = vmatprep.subr.bf16.mxu0 0
    %1968 = vmatpush1.bf16.msra.mxu0 0
    %1969 = vmatprep.subr.bf16.mxu0 0
    %1970 = vmatpush1.bf16.msra.mxu0 0
    %1971 = vmatprep.subr.bf16.mxu0 0
    %1972 = vmatpush1.bf16.msra.mxu0 0
    %1973 = vmatprep.subr.bf16.mxu0 0
    %1974 = vmatpush1.bf16.msra.mxu0 0
    %1975 = vmatprep.subr.bf16.mxu0 0
    %1976 = vmatpush1.bf16.msra.mxu0 0
    %1977 = vmatprep.subr.bf16.mxu0 0
    %1978 = vmatpush1.bf16.msra.mxu0 0
    %1979 = vmatprep.mubr.bf16.mxu0 0
    %1980 = vmatmul.mubr.bf16.gmra.mrb[0].mxu0 %v1585
    %v1981 = vpop.f32.mrb[0].mxu0
    %v1982 = vadd.f32 %v1869, %v1981
    %v1983 = vpop.f32.mrb[0].mxu0
    %v1984 = vadd.f32 %v1871, %v1983
    %v1985 = vpop.f32.mrb[0].mxu0
    %v1986 = vadd.f32 %v1873, %v1985
    %v1987 = vpop.f32.mrb[0].mxu0
    %v1988 = vadd.f32 %v1875, %v1987
    %1989 = vmatprep.mubr.bf16.mxu0 0
    %1990 = vmatmul.mubr.bf16.gmra.mrb[0].mxu0 %v1588
    %v1991 = vpop.f32.mrb[0].mxu0
    %v1992 = vadd.f32 %v1879, %v1991
    %v1993 = vpop.f32.mrb[0].mxu0
    %v1994 = vadd.f32 %v1881, %v1993
    %v1995 = vpop.f32.mrb[0].mxu0
    %v1996 = vadd.f32 %v1883, %v1995
    %v1997 = vpop.f32.mrb[0].mxu0
    %v1998 = vadd.f32 %v1885, %v1997
    %1999 = vmatprep.mubr.bf16.mxu0 0
    %2000 = vmatmul.mubr.bf16.gmra.mrb[0].mxu0 %v1591
    %v2001 = vpop.f32.mrb[0].mxu0
    %v2002 = vadd.f32 %v1889, %v2001
    %v2003 = vpop.f32.mrb[0].mxu0
    %v2004 = vadd.f32 %v1891, %v2003
    %v2005 = vpop.f32.mrb[0].mxu0
    %v2006 = vadd.f32 %v1893, %v2005
    %v2007 = vpop.f32.mrb[0].mxu0
    %v2008 = vadd.f32 %v1895, %v2007
    %2009 = vmatprep.mubr.bf16.mxu0 0
    %2010 = vmatmul.mubr.bf16.gmra.mrb[0].mxu0 %v1594
    %v2011 = vpop.f32.mrb[0].mxu0
    %v2012 = vadd.f32 %v1899, %v2011
    %v2013 = vpop.f32.mrb[0].mxu0
    %v2014 = vadd.f32 %v1901, %v2013
    %v2015 = vpop.f32.mrb[0].mxu0
    %v2016 = vadd.f32 %v1903, %v2015
    %v2017 = vpop.f32.mrb[0].mxu0
    %v2018 = vadd.f32 %v1905, %v2017
    %2019 = vmatprep.mubr.bf16.mxu0 0
    %2020 = vmatmul.mubr.bf16.gmra.mrb[0].mxu0 %v1597
    %v2021 = vpop.f32.mrb[0].mxu0
    %v2022 = vadd.f32 %v1909, %v2021
    %v2023 = vpop.f32.mrb[0].mxu0
    %v2024 = vadd.f32 %v1911, %v2023
    %v2025 = vpop.f32.mrb[0].mxu0
    %v2026 = vadd.f32 %v1913, %v2025
    %v2027 = vpop.f32.mrb[0].mxu0
    %v2028 = vadd.f32 %v1915, %v2027
    %2029 = vmatprep.mubr.bf16.mxu0 0
    %2030 = vmatmul.mubr.bf16.gmra.mrb[0].mxu0 %v1600
    %v2031 = vpop.f32.mrb[0].mxu0
    %v2032 = vadd.f32 %v1919, %v2031
    %v2033 = vpop.f32.mrb[0].mxu0
    %v2034 = vadd.f32 %v1921, %v2033
    %v2035 = vpop.f32.mrb[0].mxu0
    %v2036 = vadd.f32 %v1923, %v2035
    %v2037 = vpop.f32.mrb[0].mxu0
    %v2038 = vadd.f32 %v1925, %v2037
    %2039 = vmatprep.mubr.bf16.mxu0 0
    %2040 = vmatmul.mubr.bf16.gmra.mrb[0].mxu0 %v1603
    %v2041 = vpop.f32.mrb[0].mxu0
    %v2042 = vadd.f32 %v1929, %v2041
    %v2043 = vpop.f32.mrb[0].mxu0
    %v2044 = vadd.f32 %v1931, %v2043
    %v2045 = vpop.f32.mrb[0].mxu0
    %v2046 = vadd.f32 %v1933, %v2045
    %v2047 = vpop.f32.mrb[0].mxu0
    %v2048 = vadd.f32 %v1935, %v2047
    %2049 = vmatprep.mubr.bf16.mxu0 0
    %2050 = vmatmul.mubr.bf16.gmra.mrb[0].mxu0 %v1606
    %v2051 = vpop.f32.mrb[0].mxu0
    %v2052 = vadd.f32 %v1939, %v2051
    %v2053 = vpop.f32.mrb[0].mxu0
    %v2054 = vadd.f32 %v1941, %v2053
    %v2055 = vpop.f32.mrb[0].mxu0
    %v2056 = vadd.f32 %v1943, %v2055
    %v2057 = vpop.f32.mrb[0].mxu0
    %v2058 = vadd.f32 %v1945, %v2057
    %2059 = vdwg.mxu0
    %2060 = vmatprep.subr.bf16.mxu0 %v1194
    %2061 = vmatpush1.bf16.msra.mxu0 %v1193
    %2062 = vmatprep.subr.bf16.mxu0 %v1198
    %2063 = vmatpush1.bf16.msra.mxu0 %v1197
    %2064 = vmatprep.subr.bf16.mxu0 %v1202
    %2065 = vmatpush1.bf16.msra.mxu0 %v1201
    %2066 = vmatprep.subr.bf16.mxu0 %v1206
    %2067 = vmatpush1.bf16.msra.mxu0 %v1205
    %2068 = vmatprep.subr.bf16.mxu0 %v1210
    %2069 = vmatpush1.bf16.msra.mxu0 %v1209
    %2070 = vmatprep.subr.bf16.mxu0 %v1214
    %2071 = vmatpush1.bf16.msra.mxu0 %v1213
    %2072 = vmatprep.subr.bf16.mxu0 %v1218
    %2073 = vmatpush1.bf16.msra.mxu0 %v1217
    %2074 = vmatprep.subr.bf16.mxu0 %v1222
    %2075 = vmatpush1.bf16.msra.mxu0 %v1221
    %2076 = vmatprep.subr.bf16.mxu0 %v1226
    %2077 = vmatpush1.bf16.msra.mxu0 %v1225
    %2078 = vmatprep.subr.bf16.mxu0 %v1230
    %2079 = vmatpush1.bf16.msra.mxu0 %v1229
    %2080 = vmatprep.subr.bf16.mxu0 %v1234
    %2081 = vmatpush1.bf16.msra.mxu0 %v1233
    %2082 = vmatprep.subr.bf16.mxu0 %v1238
    %2083 = vmatpush1.bf16.msra.mxu0 %v1237
    %2084 = vmatprep.subr.bf16.mxu0 %v1242
    %2085 = vmatpush1.bf16.msra.mxu0 %v1241
    %2086 = vmatprep.subr.bf16.mxu0 %v1246
    %2087 = vmatpush1.bf16.msra.mxu0 %v1245
    %2088 = vmatprep.subr.bf16.mxu0 %v1250
    %2089 = vmatpush1.bf16.msra.mxu0 %v1249
    %2090 = vmatprep.subr.bf16.mxu0 %v1254
    %2091 = vmatpush1.bf16.msra.mxu0 %v1253
    %2092 = vmatprep.mubr.bf16.mxu0 %v500
    %2093 = vmatmul.mubr.bf16.gmra.mrb[0].mxu0 %v499
    %v2094 = vpop.f32.mrb[0].mxu0
    %v2095 = vadd.f32 %v314, %v2094
    %v2096 = vpop.f32.mrb[0].mxu0
    %v2097 = vadd.f32 %v318, %v2096
    %v2098 = vpop.f32.mrb[0].mxu0
    %v2099 = vadd.f32 %v314, %v2098
    %v2100 = vpop.f32.mrb[0].mxu0
    %v2101 = vadd.f32 %v318, %v2100
    %2102 = vmatprep.mubr.bf16.mxu0 %v507
    %2103 = vmatmul.mubr.bf16.gmra.mrb[0].mxu0 %v506
    %v2104 = vpop.f32.mrb[0].mxu0
    %v2105 = vadd.f32 %v314, %v2104
    %v2106 = vpop.f32.mrb[0].mxu0
    %v2107 = vadd.f32 %v318, %v2106
    %v2108 = vpop.f32.mrb[0].mxu0
    %v2109 = vadd.f32 %v314, %v2108
    %v2110 = vpop.f32.mrb[0].mxu0
    %v2111 = vadd.f32 %v318, %v2110
    %2112 = vmatprep.mubr.bf16.mxu0 %v514
    %2113 = vmatmul.mubr.bf16.gmra.mrb[0].mxu0 %v513
    %v2114 = vpop.f32.mrb[0].mxu0
    %v2115 = vadd.f32 %v314, %v2114
    %v2116 = vpop.f32.mrb[0].mxu0
    %v2117 = vadd.f32 %v318, %v2116
    %v2118 = vpop.f32.mrb[0].mxu0
    %v2119 = vadd.f32 %v314, %v2118
    %v2120 = vpop.f32.mrb[0].mxu0
    %v2121 = vadd.f32 %v318, %v2120
    %2122 = vmatprep.mubr.bf16.mxu0 %v521
    %2123 = vmatmul.mubr.bf16.gmra.mrb[0].mxu0 %v520
    %v2124 = vpop.f32.mrb[0].mxu0
    %v2125 = vadd.f32 %v314, %v2124
    %v2126 = vpop.f32.mrb[0].mxu0
    %v2127 = vadd.f32 %v318, %v2126
    %v2128 = vpop.f32.mrb[0].mxu0
    %v2129 = vadd.f32 %v314, %v2128
    %v2130 = vpop.f32.mrb[0].mxu0
    %v2131 = vadd.f32 %v318, %v2130
    %2132 = vmatprep.mubr.bf16.mxu0 %v528
    %2133 = vmatmul.mubr.bf16.gmra.mrb[0].mxu0 %v527
    %v2134 = vpop.f32.mrb[0].mxu0
    %v2135 = vadd.f32 %v314, %v2134
    %v2136 = vpop.f32.mrb[0].mxu0
    %v2137 = vadd.f32 %v318, %v2136
    %v2138 = vpop.f32.mrb[0].mxu0
    %v2139 = vadd.f32 %v314, %v2138
    %v2140 = vpop.f32.mrb[0].mxu0
    %v2141 = vadd.f32 %v318, %v2140
    %2142 = vmatprep.mubr.bf16.mxu0 %v535
    %2143 = vmatmul.mubr.bf16.gmra.mrb[0].mxu0 %v534
    %v2144 = vpop.f32.mrb[0].mxu0
    %v2145 = vadd.f32 %v314, %v2144
    %v2146 = vpop.f32.mrb[0].mxu0
    %v2147 = vadd.f32 %v318, %v2146
    %v2148 = vpop.f32.mrb[0].mxu0
    %v2149 = vadd.f32 %v314, %v2148
    %v2150 = vpop.f32.mrb[0].mxu0
    %v2151 = vadd.f32 %v318, %v2150
    %2152 = vmatprep.mubr.bf16.mxu0 %v542
    %2153 = vmatmul.mubr.bf16.gmra.mrb[0].mxu0 %v541
    %v2154 = vpop.f32.mrb[0].mxu0
    %v2155 = vadd.f32 %v314, %v2154
    %v2156 = vpop.f32.mrb[0].mxu0
    %v2157 = vadd.f32 %v318, %v2156
    %v2158 = vpop.f32.mrb[0].mxu0
    %v2159 = vadd.f32 %v314, %v2158
    %v2160 = vpop.f32.mrb[0].mxu0
    %v2161 = vadd.f32 %v318, %v2160
    %2162 = vmatprep.mubr.bf16.mxu0 %v549
    %2163 = vmatmul.mubr.bf16.gmra.mrb[0].mxu0 %v548
    %v2164 = vpop.f32.mrb[0].mxu0
    %v2165 = vadd.f32 %v314, %v2164
    %v2166 = vpop.f32.mrb[0].mxu0
    %v2167 = vadd.f32 %v318, %v2166
    %v2168 = vpop.f32.mrb[0].mxu0
    %v2169 = vadd.f32 %v314, %v2168
    %v2170 = vpop.f32.mrb[0].mxu0
    %v2171 = vadd.f32 %v318, %v2170
    %2172 = vdwg.mxu0
    %2173 = vmatprep.subr.bf16.mxu0 %v1258
    %2174 = vmatpush1.bf16.msra.mxu0 %v1257
    %2175 = vmatprep.subr.bf16.mxu0 %v1262
    %2176 = vmatpush1.bf16.msra.mxu0 %v1261
    %2177 = vmatprep.subr.bf16.mxu0 %v1266
    %2178 = vmatpush1.bf16.msra.mxu0 %v1265
    %2179 = vmatprep.subr.bf16.mxu0 %v1270
    %2180 = vmatpush1.bf16.msra.mxu0 %v1269
    %2181 = vmatprep.subr.bf16.mxu0 %v1274
    %2182 = vmatpush1.bf16.msra.mxu0 %v1273
    %2183 = vmatprep.subr.bf16.mxu0 %v1278
    %2184 = vmatpush1.bf16.msra.mxu0 %v1277
    %2185 = vmatprep.subr.bf16.mxu0 %v1282
    %2186 = vmatpush1.bf16.msra.mxu0 %v1281
    %2187 = vmatprep.subr.bf16.mxu0 %v1286
    %2188 = vmatpush1.bf16.msra.mxu0 %v1285
    %2189 = vmatprep.subr.bf16.mxu0 %v1290
    %2190 = vmatpush1.bf16.msra.mxu0 %v1289
    %2191 = vmatprep.subr.bf16.mxu0 %v1294
    %2192 = vmatpush1.bf16.msra.mxu0 %v1293
    %2193 = vmatprep.subr.bf16.mxu0 %v1298
    %2194 = vmatpush1.bf16.msra.mxu0 %v1297
    %2195 = vmatprep.subr.bf16.mxu0 %v1302
    %2196 = vmatpush1.bf16.msra.mxu0 %v1301
    %2197 = vmatprep.subr.bf16.mxu0 %v1306
    %2198 = vmatpush1.bf16.msra.mxu0 %v1305
    %2199 = vmatprep.subr.bf16.mxu0 %v1310
    %2200 = vmatpush1.bf16.msra.mxu0 %v1309
    %2201 = vmatprep.subr.bf16.mxu0 %v1314
    %2202 = vmatpush1.bf16.msra.mxu0 %v1313
    %2203 = vmatprep.subr.bf16.mxu0 %v1318
    %2204 = vmatpush1.bf16.msra.mxu0 %v1317
    %2205 = vmatprep.mubr.bf16.mxu0 %v502
    %2206 = vmatmul.mubr.bf16.gmra.mrb[0].mxu0 %v501
    %v2207 = vpop.f32.mrb[0].mxu0
    %v2208 = vadd.f32 %v2095, %v2207
    %v2209 = vpop.f32.mrb[0].mxu0
    %v2210 = vadd.f32 %v2097, %v2209
    %v2211 = vpop.f32.mrb[0].mxu0
    %v2212 = vadd.f32 %v2099, %v2211
    %v2213 = vpop.f32.mrb[0].mxu0
    %v2214 = vadd.f32 %v2101, %v2213
    %2215 = vmatprep.mubr.bf16.mxu0 %v509
    %2216 = vmatmul.mubr.bf16.gmra.mrb[0].mxu0 %v508
    %v2217 = vpop.f32.mrb[0].mxu0
    %v2218 = vadd.f32 %v2105, %v2217
    %v2219 = vpop.f32.mrb[0].mxu0
    %v2220 = vadd.f32 %v2107, %v2219
    %v2221 = vpop.f32.mrb[0].mxu0
    %v2222 = vadd.f32 %v2109, %v2221
    %v2223 = vpop.f32.mrb[0].mxu0
    %v2224 = vadd.f32 %v2111, %v2223
    %2225 = vmatprep.mubr.bf16.mxu0 %v516
    %2226 = vmatmul.mubr.bf16.gmra.mrb[0].mxu0 %v515
    %v2227 = vpop.f32.mrb[0].mxu0
    %v2228 = vadd.f32 %v2115, %v2227
    %v2229 = vpop.f32.mrb[0].mxu0
    %v2230 = vadd.f32 %v2117, %v2229
    %v2231 = vpop.f32.mrb[0].mxu0
    %v2232 = vadd.f32 %v2119, %v2231
    %v2233 = vpop.f32.mrb[0].mxu0
    %v2234 = vadd.f32 %v2121, %v2233
    %2235 = vmatprep.mubr.bf16.mxu0 %v523
    %2236 = vmatmul.mubr.bf16.gmra.mrb[0].mxu0 %v522
    %v2237 = vpop.f32.mrb[0].mxu0
    %v2238 = vadd.f32 %v2125, %v2237
    %v2239 = vpop.f32.mrb[0].mxu0
    %v2240 = vadd.f32 %v2127, %v2239
    %v2241 = vpop.f32.mrb[0].mxu0
    %v2242 = vadd.f32 %v2129, %v2241
    %v2243 = vpop.f32.mrb[0].mxu0
    %v2244 = vadd.f32 %v2131, %v2243
    %2245 = vmatprep.mubr.bf16.mxu0 %v530
    %2246 = vmatmul.mubr.bf16.gmra.mrb[0].mxu0 %v529
    %v2247 = vpop.f32.mrb[0].mxu0
    %v2248 = vadd.f32 %v2135, %v2247
    %v2249 = vpop.f32.mrb[0].mxu0
    %v2250 = vadd.f32 %v2137, %v2249
    %v2251 = vpop.f32.mrb[0].mxu0
    %v2252 = vadd.f32 %v2139, %v2251
    %v2253 = vpop.f32.mrb[0].mxu0
    %v2254 = vadd.f32 %v2141, %v2253
    %2255 = vmatprep.mubr.bf16.mxu0 %v537
    %2256 = vmatmul.mubr.bf16.gmra.mrb[0].mxu0 %v536
    %v2257 = vpop.f32.mrb[0].mxu0
    %v2258 = vadd.f32 %v2145, %v2257
    %v2259 = vpop.f32.mrb[0].mxu0
    %v2260 = vadd.f32 %v2147, %v2259
    %v2261 = vpop.f32.mrb[0].mxu0
    %v2262 = vadd.f32 %v2149, %v2261
    %v2263 = vpop.f32.mrb[0].mxu0
    %v2264 = vadd.f32 %v2151, %v2263
    %2265 = vmatprep.mubr.bf16.mxu0 %v544
    %2266 = vmatmul.mubr.bf16.gmra.mrb[0].mxu0 %v543
    %v2267 = vpop.f32.mrb[0].mxu0
    %v2268 = vadd.f32 %v2155, %v2267
    %v2269 = vpop.f32.mrb[0].mxu0
    %v2270 = vadd.f32 %v2157, %v2269
    %v2271 = vpop.f32.mrb[0].mxu0
    %v2272 = vadd.f32 %v2159, %v2271
    %v2273 = vpop.f32.mrb[0].mxu0
    %v2274 = vadd.f32 %v2161, %v2273
    %2275 = vmatprep.mubr.bf16.mxu0 %v551
    %2276 = vmatmul.mubr.bf16.gmra.mrb[0].mxu0 %v550
    %v2277 = vpop.f32.mrb[0].mxu0
    %v2278 = vadd.f32 %v2165, %v2277
    %v2279 = vpop.f32.mrb[0].mxu0
    %v2280 = vadd.f32 %v2167, %v2279
    %v2281 = vpop.f32.mrb[0].mxu0
    %v2282 = vadd.f32 %v2169, %v2281
    %v2283 = vpop.f32.mrb[0].mxu0
    %v2284 = vadd.f32 %v2171, %v2283
    %2285 = vdwg.mxu0
    %2286 = vmatprep.subr.bf16.mxu0 %v1322
    %2287 = vmatpush1.bf16.msra.mxu0 %v1321
    %2288 = vmatprep.subr.bf16.mxu0 %v1326
    %2289 = vmatpush1.bf16.msra.mxu0 %v1325
    %2290 = vmatprep.subr.bf16.mxu0 %v1330
    %2291 = vmatpush1.bf16.msra.mxu0 %v1329
    %2292 = vmatprep.subr.bf16.mxu0 %v1334
    %2293 = vmatpush1.bf16.msra.mxu0 %v1333
    %2294 = vmatprep.subr.bf16.mxu0 %v1338
    %2295 = vmatpush1.bf16.msra.mxu0 %v1337
    %2296 = vmatprep.subr.bf16.mxu0 %v1342
    %2297 = vmatpush1.bf16.msra.mxu0 %v1341
    %2298 = vmatprep.subr.bf16.mxu0 %v1346
    %2299 = vmatpush1.bf16.msra.mxu0 %v1345
    %2300 = vmatprep.subr.bf16.mxu0 %v1350
    %2301 = vmatpush1.bf16.msra.mxu0 %v1349
    %2302 = vmatprep.subr.bf16.mxu0 %v1354
    %2303 = vmatpush1.bf16.msra.mxu0 %v1353
    %2304 = vmatprep.subr.bf16.mxu0 %v1358
    %2305 = vmatpush1.bf16.msra.mxu0 %v1357
    %2306 = vmatprep.subr.bf16.mxu0 %v1362
    %2307 = vmatpush1.bf16.msra.mxu0 %v1361
    %2308 = vmatprep.subr.bf16.mxu0 %v1366
    %2309 = vmatpush1.bf16.msra.mxu0 %v1365
    %2310 = vmatprep.subr.bf16.mxu0 %v1370
    %2311 = vmatpush1.bf16.msra.mxu0 %v1369
    %2312 = vmatprep.subr.bf16.mxu0 %v1374
    %2313 = vmatpush1.bf16.msra.mxu0 %v1373
    %2314 = vmatprep.subr.bf16.mxu0 %v1378
    %2315 = vmatpush1.bf16.msra.mxu0 %v1377
    %2316 = vmatprep.subr.bf16.mxu0 %v1382
    %2317 = vmatpush1.bf16.msra.mxu0 %v1381
    %2318 = vmatprep.mubr.bf16.mxu0 %v504
    %2319 = vmatmul.mubr.bf16.gmra.mrb[0].mxu0 %v503
    %v2320 = vpop.f32.mrb[0].mxu0
    %v2321 = vadd.f32 %v2208, %v2320
    %v2322 = vpop.f32.mrb[0].mxu0
    %v2323 = vadd.f32 %v2210, %v2322
    %v2324 = vpop.f32.mrb[0].mxu0
    %v2325 = vadd.f32 %v2212, %v2324
    %v2326 = vpop.f32.mrb[0].mxu0
    %v2327 = vadd.f32 %v2214, %v2326
    %2328 = vmatprep.mubr.bf16.mxu0 %v511
    %2329 = vmatmul.mubr.bf16.gmra.mrb[0].mxu0 %v510
    %v2330 = vpop.f32.mrb[0].mxu0
    %v2331 = vadd.f32 %v2218, %v2330
    %v2332 = vpop.f32.mrb[0].mxu0
    %v2333 = vadd.f32 %v2220, %v2332
    %v2334 = vpop.f32.mrb[0].mxu0
    %v2335 = vadd.f32 %v2222, %v2334
    %v2336 = vpop.f32.mrb[0].mxu0
    %v2337 = vadd.f32 %v2224, %v2336
    %2338 = vmatprep.mubr.bf16.mxu0 %v518
    %2339 = vmatmul.mubr.bf16.gmra.mrb[0].mxu0 %v517
    %v2340 = vpop.f32.mrb[0].mxu0
    %v2341 = vadd.f32 %v2228, %v2340
    %v2342 = vpop.f32.mrb[0].mxu0
    %v2343 = vadd.f32 %v2230, %v2342
    %v2344 = vpop.f32.mrb[0].mxu0
    %v2345 = vadd.f32 %v2232, %v2344
    %v2346 = vpop.f32.mrb[0].mxu0
    %v2347 = vadd.f32 %v2234, %v2346
    %2348 = vmatprep.mubr.bf16.mxu0 %v525
    %2349 = vmatmul.mubr.bf16.gmra.mrb[0].mxu0 %v524
    %v2350 = vpop.f32.mrb[0].mxu0
    %v2351 = vadd.f32 %v2238, %v2350
    %v2352 = vpop.f32.mrb[0].mxu0
    %v2353 = vadd.f32 %v2240, %v2352
    %v2354 = vpop.f32.mrb[0].mxu0
    %v2355 = vadd.f32 %v2242, %v2354
    %v2356 = vpop.f32.mrb[0].mxu0
    %v2357 = vadd.f32 %v2244, %v2356
    %2358 = vmatprep.mubr.bf16.mxu0 %v532
    %2359 = vmatmul.mubr.bf16.gmra.mrb[0].mxu0 %v531
    %v2360 = vpop.f32.mrb[0].mxu0
    %v2361 = vadd.f32 %v2248, %v2360
    %v2362 = vpop.f32.mrb[0].mxu0
    %v2363 = vadd.f32 %v2250, %v2362
    %v2364 = vpop.f32.mrb[0].mxu0
    %v2365 = vadd.f32 %v2252, %v2364
    %v2366 = vpop.f32.mrb[0].mxu0
    %v2367 = vadd.f32 %v2254, %v2366
    %2368 = vmatprep.mubr.bf16.mxu0 %v539
    %2369 = vmatmul.mubr.bf16.gmra.mrb[0].mxu0 %v538
    %v2370 = vpop.f32.mrb[0].mxu0
    %v2371 = vadd.f32 %v2258, %v2370
    %v2372 = vpop.f32.mrb[0].mxu0
    %v2373 = vadd.f32 %v2260, %v2372
    %v2374 = vpop.f32.mrb[0].mxu0
    %v2375 = vadd.f32 %v2262, %v2374
    %v2376 = vpop.f32.mrb[0].mxu0
    %v2377 = vadd.f32 %v2264, %v2376
    %2378 = vmatprep.mubr.bf16.mxu0 %v546
    %2379 = vmatmul.mubr.bf16.gmra.mrb[0].mxu0 %v545
    %v2380 = vpop.f32.mrb[0].mxu0
    %v2381 = vadd.f32 %v2268, %v2380
    %v2382 = vpop.f32.mrb[0].mxu0
    %v2383 = vadd.f32 %v2270, %v2382
    %v2384 = vpop.f32.mrb[0].mxu0
    %v2385 = vadd.f32 %v2272, %v2384
    %v2386 = vpop.f32.mrb[0].mxu0
    %v2387 = vadd.f32 %v2274, %v2386
    %2388 = vmatprep.mubr.bf16.mxu0 %v553
    %2389 = vmatmul.mubr.bf16.gmra.mrb[0].mxu0 %v552
    %v2390 = vpop.f32.mrb[0].mxu0
    %v2391 = vadd.f32 %v2278, %v2390
    %v2392 = vpop.f32.mrb[0].mxu0
    %v2393 = vadd.f32 %v2280, %v2392
    %v2394 = vpop.f32.mrb[0].mxu0
    %v2395 = vadd.f32 %v2282, %v2394
    %v2396 = vpop.f32.mrb[0].mxu0
    %v2397 = vadd.f32 %v2284, %v2396
    %2398 = vdwg.mxu0
    %2399 = vmatprep.subr.bf16.mxu0 %v1386
    %2400 = vmatpush1.bf16.msra.mxu0 %v1385
    %2401 = vmatprep.subr.bf16.mxu0 0
    %2402 = vmatpush1.bf16.msra.mxu0 0
    %2403 = vmatprep.subr.bf16.mxu0 0
    %2404 = vmatpush1.bf16.msra.mxu0 0
    %2405 = vmatprep.subr.bf16.mxu0 0
    %2406 = vmatpush1.bf16.msra.mxu0 0
    %2407 = vmatprep.subr.bf16.mxu0 0
    %2408 = vmatpush1.bf16.msra.mxu0 0
    %2409 = vmatprep.subr.bf16.mxu0 0
    %2410 = vmatpush1.bf16.msra.mxu0 0
    %2411 = vmatprep.subr.bf16.mxu0 0
    %2412 = vmatpush1.bf16.msra.mxu0 0
    %2413 = vmatprep.subr.bf16.mxu0 0
    %2414 = vmatpush1.bf16.msra.mxu0 0
    %2415 = vmatprep.subr.bf16.mxu0 0
    %2416 = vmatpush1.bf16.msra.mxu0 0
    %2417 = vmatprep.subr.bf16.mxu0 0
    %2418 = vmatpush1.bf16.msra.mxu0 0
    %2419 = vmatprep.subr.bf16.mxu0 0
    %2420 = vmatpush1.bf16.msra.mxu0 0
    %2421 = vmatprep.subr.bf16.mxu0 0
    %2422 = vmatpush1.bf16.msra.mxu0 0
    %2423 = vmatprep.subr.bf16.mxu0 0
    %2424 = vmatpush1.bf16.msra.mxu0 0
    %2425 = vmatprep.subr.bf16.mxu0 0
    %2426 = vmatpush1.bf16.msra.mxu0 0
    %2427 = vmatprep.subr.bf16.mxu0 0
    %2428 = vmatpush1.bf16.msra.mxu0 0
    %2429 = vmatprep.subr.bf16.mxu0 0
    %2430 = vmatpush1.bf16.msra.mxu0 0
    %2431 = vmatprep.mubr.bf16.mxu0 0
    %2432 = vmatmul.mubr.bf16.gmra.mrb[0].mxu0 %v1585
    %v2433 = vpop.f32.mrb[0].mxu0
    %v2434 = vadd.f32 %v2321, %v2433
    %v2435 = vpop.f32.mrb[0].mxu0
    %v2436 = vadd.f32 %v2323, %v2435
    %v2437 = vpop.f32.mrb[0].mxu0
    %v2438 = vadd.f32 %v2325, %v2437
    %v2439 = vpop.f32.mrb[0].mxu0
    %v2440 = vadd.f32 %v2327, %v2439
    %2441 = vmatprep.mubr.bf16.mxu0 0
    %2442 = vmatmul.mubr.bf16.gmra.mrb[0].mxu0 %v1588
    %v2443 = vpop.f32.mrb[0].mxu0
    %v2444 = vadd.f32 %v2331, %v2443
    %v2445 = vpop.f32.mrb[0].mxu0
    %v2446 = vadd.f32 %v2333, %v2445
    %v2447 = vpop.f32.mrb[0].mxu0
    %v2448 = vadd.f32 %v2335, %v2447
    %v2449 = vpop.f32.mrb[0].mxu0
    %v2450 = vadd.f32 %v2337, %v2449
    %2451 = vmatprep.mubr.bf16.mxu0 0
    %2452 = vmatmul.mubr.bf16.gmra.mrb[0].mxu0 %v1591
    %v2453 = vpop.f32.mrb[0].mxu0
    %v2454 = vadd.f32 %v2341, %v2453
    %v2455 = vpop.f32.mrb[0].mxu0
    %v2456 = vadd.f32 %v2343, %v2455
    %v2457 = vpop.f32.mrb[0].mxu0
    %v2458 = vadd.f32 %v2345, %v2457
    %v2459 = vpop.f32.mrb[0].mxu0
    %v2460 = vadd.f32 %v2347, %v2459
    %2461 = vmatprep.mubr.bf16.mxu0 0
    %2462 = vmatmul.mubr.bf16.gmra.mrb[0].mxu0 %v1594
    %v2463 = vpop.f32.mrb[0].mxu0
    %v2464 = vadd.f32 %v2351, %v2463
    %v2465 = vpop.f32.mrb[0].mxu0
    %v2466 = vadd.f32 %v2353, %v2465
    %v2467 = vpop.f32.mrb[0].mxu0
    %v2468 = vadd.f32 %v2355, %v2467
    %v2469 = vpop.f32.mrb[0].mxu0
    %v2470 = vadd.f32 %v2357, %v2469
    %2471 = vmatprep.mubr.bf16.mxu0 0
    %2472 = vmatmul.mubr.bf16.gmra.mrb[0].mxu0 %v1597
    %v2473 = vpop.f32.mrb[0].mxu0
    %v2474 = vadd.f32 %v2361, %v2473
    %v2475 = vpop.f32.mrb[0].mxu0
    %v2476 = vadd.f32 %v2363, %v2475
    %v2477 = vpop.f32.mrb[0].mxu0
    %v2478 = vadd.f32 %v2365, %v2477
    %v2479 = vpop.f32.mrb[0].mxu0
    %v2480 = vadd.f32 %v2367, %v2479
    %2481 = vmatprep.mubr.bf16.mxu0 0
    %2482 = vmatmul.mubr.bf16.gmra.mrb[0].mxu0 %v1600
    %v2483 = vpop.f32.mrb[0].mxu0
    %v2484 = vadd.f32 %v2371, %v2483
    %v2485 = vpop.f32.mrb[0].mxu0
    %v2486 = vadd.f32 %v2373, %v2485
    %v2487 = vpop.f32.mrb[0].mxu0
    %v2488 = vadd.f32 %v2375, %v2487
    %v2489 = vpop.f32.mrb[0].mxu0
    %v2490 = vadd.f32 %v2377, %v2489
    %2491 = vmatprep.mubr.bf16.mxu0 0
    %2492 = vmatmul.mubr.bf16.gmra.mrb[0].mxu0 %v1603
    %v2493 = vpop.f32.mrb[0].mxu0
    %v2494 = vadd.f32 %v2381, %v2493
    %v2495 = vpop.f32.mrb[0].mxu0
    %v2496 = vadd.f32 %v2383, %v2495
    %v2497 = vpop.f32.mrb[0].mxu0
    %v2498 = vadd.f32 %v2385, %v2497
    %v2499 = vpop.f32.mrb[0].mxu0
    %v2500 = vadd.f32 %v2387, %v2499
    %2501 = vmatprep.mubr.bf16.mxu0 0
    %2502 = vmatmul.mubr.bf16.gmra.mrb[0].mxu0 %v1606
    %v2503 = vpop.f32.mrb[0].mxu0
    %v2504 = vadd.f32 %v2391, %v2503
    %v2505 = vpop.f32.mrb[0].mxu0
    %v2506 = vadd.f32 %v2393, %v2505
    %v2507 = vpop.f32.mrb[0].mxu0
    %v2508 = vadd.f32 %v2395, %v2507
    %v2509 = vpop.f32.mrb[0].mxu0
    %v2510 = vadd.f32 %v2397, %v2509
    %2511 = vdwg.mxu0
    %vm2512 = vcmp.gt.f32.partialorder %v1982, 0.0
    %vm2513 = vcmp.gt.f32.partialorder %v1984, 0.0
    %vm2514 = vcmp.gt.f32.partialorder %v2434, 0.0
    %vm2515 = vcmp.gt.f32.partialorder %v2436, 0.0
    %vm2516 = vcmp.gt.f32.partialorder %v1986, 0.0
    %vm2517 = vcmp.gt.f32.partialorder %v1988, 0.0
    %vm2518 = vcmp.gt.f32.partialorder %v2438, 0.0
    %vm2519 = vcmp.gt.f32.partialorder %v2440, 0.0
    %vm2520 = vcmp.gt.f32.partialorder %v1992, 0.0
    %vm2521 = vcmp.gt.f32.partialorder %v1994, 0.0
    %vm2522 = vcmp.gt.f32.partialorder %v2444, 0.0
    %vm2523 = vcmp.gt.f32.partialorder %v2446, 0.0
    %vm2524 = vcmp.gt.f32.partialorder %v1996, 0.0
    %vm2525 = vcmp.gt.f32.partialorder %v1998, 0.0
    %vm2526 = vcmp.gt.f32.partialorder %v2448, 0.0
    %vm2527 = vcmp.gt.f32.partialorder %v2450, 0.0
    %vm2528 = vcmp.gt.f32.partialorder %v2002, 0.0
    %vm2529 = vcmp.gt.f32.partialorder %v2004, 0.0
    %vm2530 = vcmp.gt.f32.partialorder %v2454, 0.0
    %vm2531 = vcmp.gt.f32.partialorder %v2456, 0.0
    %vm2532 = vcmp.gt.f32.partialorder %v2006, 0.0
    %vm2533 = vcmp.gt.f32.partialorder %v2008, 0.0
    %vm2534 = vcmp.gt.f32.partialorder %v2458, 0.0
    %vm2535 = vcmp.gt.f32.partialorder %v2460, 0.0
    %vm2536 = vcmp.gt.f32.partialorder %v2012, 0.0
    %vm2537 = vcmp.gt.f32.partialorder %v2014, 0.0
    %vm2538 = vcmp.gt.f32.partialorder %v2464, 0.0
    %vm2539 = vcmp.gt.f32.partialorder %v2466, 0.0
    %vm2540 = vcmp.gt.f32.partialorder %v2016, 0.0
    %vm2541 = vcmp.gt.f32.partialorder %v2018, 0.0
    %vm2542 = vcmp.gt.f32.partialorder %v2468, 0.0
    %vm2543 = vcmp.gt.f32.partialorder %v2470, 0.0
    %vm2544 = vcmp.gt.f32.partialorder %v2022, 0.0
    %vm2545 = vcmp.gt.f32.partialorder %v2024, 0.0
    %vm2546 = vcmp.gt.f32.partialorder %v2474, 0.0
    %vm2547 = vcmp.gt.f32.partialorder %v2476, 0.0
    %vm2548 = vcmp.gt.f32.partialorder %v2026, 0.0
    %vm2549 = vcmp.gt.f32.partialorder %v2028, 0.0
    %vm2550 = vcmp.gt.f32.partialorder %v2478, 0.0
    %vm2551 = vcmp.gt.f32.partialorder %v2480, 0.0
    %vm2552 = vcmp.gt.f32.partialorder %v2032, 0.0
    %vm2553 = vcmp.gt.f32.partialorder %v2034, 0.0
    %vm2554 = vcmp.gt.f32.partialorder %v2484, 0.0
    %vm2555 = vcmp.gt.f32.partialorder %v2486, 0.0
    %vm2556 = vcmp.gt.f32.partialorder %v2036, 0.0
    %vm2557 = vcmp.gt.f32.partialorder %v2038, 0.0
    %vm2558 = vcmp.gt.f32.partialorder %v2488, 0.0
    %vm2559 = vcmp.gt.f32.partialorder %v2490, 0.0
    %vm2560 = vcmp.gt.f32.partialorder %v2042, 0.0
    %vm2561 = vcmp.gt.f32.partialorder %v2044, 0.0
    %vm2562 = vcmp.gt.f32.partialorder %v2494, 0.0
    %vm2563 = vcmp.gt.f32.partialorder %v2496, 0.0
    %vm2564 = vcmp.gt.f32.partialorder %v2046, 0.0
    %vm2565 = vcmp.gt.f32.partialorder %v2048, 0.0
    %vm2566 = vcmp.gt.f32.partialorder %v2498, 0.0
    %vm2567 = vcmp.gt.f32.partialorder %v2500, 0.0
    %vm2568 = vcmp.gt.f32.partialorder %v2052, 0.0
    %vm2569 = vcmp.gt.f32.partialorder %v2054, 0.0
    %vm2570 = vcmp.gt.f32.partialorder %v2504, 0.0
    %vm2571 = vcmp.gt.f32.partialorder %v2506, 0.0
    %vm2572 = vcmp.gt.f32.partialorder %v2056, 0.0
    %vm2573 = vcmp.gt.f32.partialorder %v2058, 0.0
    %vm2574 = vcmp.gt.f32.partialorder %v2508, 0.0
    %vm2575 = vcmp.gt.f32.partialorder %v2510, 0.0
    %v2576 = vmul.f32 %v1982, 0.2
    %v2577 = vmul.f32 %v1984, 0.2
    %v2578 = vmul.f32 %v2434, 0.2
    %v2579 = vmul.f32 %v2436, 0.2
    %v2580 = vmul.f32 %v1986, 0.2
    %v2581 = vmul.f32 %v1988, 0.2
    %v2582 = vmul.f32 %v2438, 0.2
    %v2583 = vmul.f32 %v2440, 0.2
    %v2584 = vmul.f32 %v1992, 0.2
    %v2585 = vmul.f32 %v1994, 0.2
    %v2586 = vmul.f32 %v2444, 0.2
    %v2587 = vmul.f32 %v2446, 0.2
    %v2588 = vmul.f32 %v1996, 0.2
    %v2589 = vmul.f32 %v1998, 0.2
    %v2590 = vmul.f32 %v2448, 0.2
    %v2591 = vmul.f32 %v2450, 0.2
    %v2592 = vmul.f32 %v2002, 0.2
    %v2593 = vmul.f32 %v2004, 0.2
    %v2594 = vmul.f32 %v2454, 0.2
    %v2595 = vmul.f32 %v2456, 0.2
    %v2596 = vmul.f32 %v2006, 0.2
    %v2597 = vmul.f32 %v2008, 0.2
    %v2598 = vmul.f32 %v2458, 0.2
    %v2599 = vmul.f32 %v2460, 0.2
    %v2600 = vmul.f32 %v2012, 0.2
    %v2601 = vmul.f32 %v2014, 0.2
    %v2602 = vmul.f32 %v2464, 0.2
    %v2603 = vmul.f32 %v2466, 0.2
    %v2604 = vmul.f32 %v2016, 0.2
    %v2605 = vmul.f32 %v2018, 0.2
    %v2606 = vmul.f32 %v2468, 0.2
    %v2607 = vmul.f32 %v2470, 0.2
    %v2608 = vmul.f32 %v2022, 0.2
    %v2609 = vmul.f32 %v2024, 0.2
    %v2610 = vmul.f32 %v2474, 0.2
    %v2611 = vmul.f32 %v2476, 0.2
    %v2612 = vmul.f32 %v2026, 0.2
    %v2613 = vmul.f32 %v2028, 0.2
    %v2614 = vmul.f32 %v2478, 0.2
    %v2615 = vmul.f32 %v2480, 0.2
    %v2616 = vmul.f32 %v2032, 0.2
    %v2617 = vmul.f32 %v2034, 0.2
    %v2618 = vmul.f32 %v2484, 0.2
    %v2619 = vmul.f32 %v2486, 0.2
    %v2620 = vmul.f32 %v2036, 0.2
    %v2621 = vmul.f32 %v2038, 0.2
    %v2622 = vmul.f32 %v2488, 0.2
    %v2623 = vmul.f32 %v2490, 0.2
    %v2624 = vmul.f32 %v2042, 0.2
    %v2625 = vmul.f32 %v2044, 0.2
    %v2626 = vmul.f32 %v2494, 0.2
    %v2627 = vmul.f32 %v2496, 0.2
    %v2628 = vmul.f32 %v2046, 0.2
    %v2629 = vmul.f32 %v2048, 0.2
    %v2630 = vmul.f32 %v2498, 0.2
    %v2631 = vmul.f32 %v2500, 0.2
    %v2632 = vmul.f32 %v2052, 0.2
    %v2633 = vmul.f32 %v2054, 0.2
    %v2634 = vmul.f32 %v2504, 0.2
    %v2635 = vmul.f32 %v2506, 0.2
    %v2636 = vmul.f32 %v2056, 0.2
    %v2637 = vmul.f32 %v2058, 0.2
    %v2638 = vmul.f32 %v2508, 0.2
    %v2639 = vmul.f32 %v2510, 0.2
    %v2640 = vsel %vm2512, %v1982, %v2576
    %v2641 = vsel %vm2513, %v1984, %v2577
    %v2642 = vsel %vm2514, %v2434, %v2578
    %v2643 = vsel %vm2515, %v2436, %v2579
    %v2644 = vsel %vm2516, %v1986, %v2580
    %v2645 = vsel %vm2517, %v1988, %v2581
    %v2646 = vsel %vm2518, %v2438, %v2582
    %v2647 = vsel %vm2519, %v2440, %v2583
    %v2648 = vsel %vm2520, %v1992, %v2584
    %v2649 = vsel %vm2521, %v1994, %v2585
    %v2650 = vsel %vm2522, %v2444, %v2586
    %v2651 = vsel %vm2523, %v2446, %v2587
    %v2652 = vsel %vm2524, %v1996, %v2588
    %v2653 = vsel %vm2525, %v1998, %v2589
    %v2654 = vsel %vm2526, %v2448, %v2590
    %v2655 = vsel %vm2527, %v2450, %v2591
    %v2656 = vsel %vm2528, %v2002, %v2592
    %v2657 = vsel %vm2529, %v2004, %v2593
    %v2658 = vsel %vm2530, %v2454, %v2594
    %v2659 = vsel %vm2531, %v2456, %v2595
    %v2660 = vsel %vm2532, %v2006, %v2596
    %v2661 = vsel %vm2533, %v2008, %v2597
    %v2662 = vsel %vm2534, %v2458, %v2598
    %v2663 = vsel %vm2535, %v2460, %v2599
    %v2664 = vsel %vm2536, %v2012, %v2600
    %v2665 = vsel %vm2537, %v2014, %v2601
    %v2666 = vsel %vm2538, %v2464, %v2602
    %v2667 = vsel %vm2539, %v2466, %v2603
    %v2668 = vsel %vm2540, %v2016, %v2604
    %v2669 = vsel %vm2541, %v2018, %v2605
    %v2670 = vsel %vm2542, %v2468, %v2606
    %v2671 = vsel %vm2543, %v2470, %v2607
    %v2672 = vsel %vm2544, %v2022, %v2608
    %v2673 = vsel %vm2545, %v2024, %v2609
    %v2674 = vsel %vm2546, %v2474, %v2610
    %v2675 = vsel %vm2547, %v2476, %v2611
    %v2676 = vsel %vm2548, %v2026, %v2612
    %v2677 = vsel %vm2549, %v2028, %v2613
    %v2678 = vsel %vm2550, %v2478, %v2614
    %v2679 = vsel %vm2551, %v2480, %v2615
    %v2680 = vsel %vm2552, %v2032, %v2616
    %v2681 = vsel %vm2553, %v2034, %v2617
    %v2682 = vsel %vm2554, %v2484, %v2618
    %v2683 = vsel %vm2555, %v2486, %v2619
    %v2684 = vsel %vm2556, %v2036, %v2620
    %v2685 = vsel %vm2557, %v2038, %v2621
    %v2686 = vsel %vm2558, %v2488, %v2622
    %v2687 = vsel %vm2559, %v2490, %v2623
    %v2688 = vsel %vm2560, %v2042, %v2624
    %v2689 = vsel %vm2561, %v2044, %v2625
    %v2690 = vsel %vm2562, %v2494, %v2626
    %v2691 = vsel %vm2563, %v2496, %v2627
    %v2692 = vsel %vm2564, %v2046, %v2628
    %v2693 = vsel %vm2565, %v2048, %v2629
    %v2694 = vsel %vm2566, %v2498, %v2630
    %v2695 = vsel %vm2567, %v2500, %v2631
    %v2696 = vsel %vm2568, %v2052, %v2632
    %v2697 = vsel %vm2569, %v2054, %v2633
    %v2698 = vsel %vm2570, %v2504, %v2634
    %v2699 = vsel %vm2571, %v2506, %v2635
    %v2700 = vsel %vm2572, %v2056, %v2636
    %v2701 = vsel %vm2573, %v2058, %v2637
    %v2702 = vsel %vm2574, %v2508, %v2638
    %v2703 = vsel %vm2575, %v2510, %v2639
    %v2704 = vpack.c.bf16 %v2644, %v2640
    %v2705 = vpack.c.bf16 %v2645, %v2641
    %v2706 = vpack.c.bf16 %v2646, %v2642
    %v2707 = vpack.c.bf16 %v2647, %v2643
    %v2708 = vpack.c.bf16 %v2652, %v2648
    %v2709 = vpack.c.bf16 %v2653, %v2649
    %v2710 = vpack.c.bf16 %v2654, %v2650
    %v2711 = vpack.c.bf16 %v2655, %v2651
    %v2712 = vpack.c.bf16 %v2660, %v2656
    %v2713 = vpack.c.bf16 %v2661, %v2657
    %v2714 = vpack.c.bf16 %v2662, %v2658
    %v2715 = vpack.c.bf16 %v2663, %v2659
    %v2716 = vpack.c.bf16 %v2668, %v2664
    %v2717 = vpack.c.bf16 %v2669, %v2665
    %v2718 = vpack.c.bf16 %v2670, %v2666
    %v2719 = vpack.c.bf16 %v2671, %v2667
    %v2720 = vpack.c.bf16 %v2676, %v2672
    %v2721 = vpack.c.bf16 %v2677, %v2673
    %v2722 = vpack.c.bf16 %v2678, %v2674
    %v2723 = vpack.c.bf16 %v2679, %v2675
    %v2724 = vpack.c.bf16 %v2684, %v2680
    %v2725 = vpack.c.bf16 %v2685, %v2681
    %v2726 = vpack.c.bf16 %v2686, %v2682
    %v2727 = vpack.c.bf16 %v2687, %v2683
    %v2728 = vpack.c.bf16 %v2692, %v2688
    %v2729 = vpack.c.bf16 %v2693, %v2689
    %v2730 = vpack.c.bf16 %v2694, %v2690
    %v2731 = vpack.c.bf16 %v2695, %v2691
    %v2732 = vpack.c.bf16 %v2700, %v2696
    %v2733 = vpack.c.bf16 %v2701, %v2697
    %v2734 = vpack.c.bf16 %v2702, %v2698
    %v2735 = vpack.c.bf16 %v2703, %v2699
    %v2736 = vld [vmem:[%s3] sm:$0xff]
    %v2737 = vld [vmem:[%s3 + $0x8] sm:$0xff]
    %v2738 = vld [vmem:[%s3 + $0x10] sm:$0xff]
    %v2739 = vld [vmem:[%s3 + $0x18] sm:$0xff]
    %v2740 = vld [vmem:[%s3 + $0x20] sm:$0xff]
    %v2741 = vld [vmem:[%s3 + $0x28] sm:$0xff]
    %v2742 = vld [vmem:[%s3 + $0x30] sm:$0xff]
    %v2743 = vld [vmem:[%s3 + $0x38] sm:$0xff]
    %v2744 = vld [vmem:[%s3 + $0x40] sm:$0xff]
    %v2745 = vld [vmem:[%s3 + $0x48] sm:$0xff]
    %v2746 = vld [vmem:[%s3 + $0x50] sm:$0xff]
    %v2747 = vld [vmem:[%s3 + $0x58] sm:$0xff]
    %v2748 = vld [vmem:[%s3 + $0x60] sm:$0xff]
    %v2749 = vld [vmem:[%s3 + $0x68] sm:$0xff]
    %v2750 = vld [vmem:[%s3 + $0x70] sm:$0xff]
    %v2751 = vld [vmem:[%s3 + $0x78] sm:$0xff]
    %v2752 = vld [vmem:[%s3 + $0x80] sm:$0xff]
    %v2753 = vld [vmem:[%s3 + $0x88] sm:$0xff]
    %v2754 = vld [vmem:[%s3 + $0x90] sm:$0xff]
    %v2755 = vld [vmem:[%s3 + $0x98] sm:$0xff]
    %v2756 = vld [vmem:[%s3 + $0xa0] sm:$0xff]
    %v2757 = vld [vmem:[%s3 + $0xa8] sm:$0xff]
    %v2758 = vld [vmem:[%s3 + $0xb0] sm:$0xff]
    %v2759 = vld [vmem:[%s3 + $0xb8] sm:$0xff]
    %v2760 = vld [vmem:[%s3 + $0xc0] sm:$0xff]
    %v2761 = vld [vmem:[%s3 + $0xc8] sm:$0xff]
    %v2762 = vld [vmem:[%s3 + $0xd0] sm:$0xff]
    %v2763 = vld [vmem:[%s3 + $0xd8] sm:$0xff]
    %v2764 = vld [vmem:[%s3 + $0xe0] sm:$0xff]
    %v2765 = vld [vmem:[%s3 + $0xe8] sm:$0xff]
    %v2766 = vld [vmem:[%s3 + $0xf0] sm:$0xff]
    %v2767 = vld [vmem:[%s3 + $0xf8] sm:$0xff]
    %v2768 = vld [vmem:[%s3 + $0x100] sm:$0xff]
    %v2769 = vld [vmem:[%s3 + $0x108] sm:$0xff]
    %v2770 = vld [vmem:[%s3 + $0x110] sm:$0xff]
    %v2771 = vld [vmem:[%s3 + $0x118] sm:$0xff]
    %v2772 = vld [vmem:[%s3 + $0x120] sm:$0xff]
    %v2773 = vld [vmem:[%s3 + $0x128] sm:$0xff]
    %v2774 = vld [vmem:[%s3 + $0x130] sm:$0xff]
    %v2775 = vld [vmem:[%s3 + $0x138] sm:$0xff]
    %v2776 = vld [vmem:[%s3 + $0x140] sm:$0xff]
    %v2777 = vld [vmem:[%s3 + $0x148] sm:$0xff]
    %v2778 = vld [vmem:[%s3 + $0x150] sm:$0xff]
    %v2779 = vld [vmem:[%s3 + $0x158] sm:$0xff]
    %v2780 = vld [vmem:[%s3 + $0x160] sm:$0xff]
    %v2781 = vld [vmem:[%s3 + $0x168] sm:$0xff]
    %v2782 = vld [vmem:[%s3 + $0x170] sm:$0xff]
    %v2783 = vld [vmem:[%s3 + $0x178] sm:$0xff]
    %v2784 = vld [vmem:[%s3 + $0x180] sm:$0xff]
    %v2785 = vld [vmem:[%s3 + $0x188] sm:$0xff]
    %v2786 = vld [vmem:[%s3 + $0x190] sm:$0xff]
    %v2787 = vld [vmem:[%s3 + $0x198] sm:$0xff]
    %v2788 = vld [vmem:[%s3 + $0x1a0] sm:$0xff]
    %v2789 = vld [vmem:[%s3 + $0x1a8] sm:$0xff]
    %v2790 = vld [vmem:[%s3 + $0x1b0] sm:$0xff]
    %v2791 = vld [vmem:[%s3 + $0x1b8] sm:$0xff]
    %v2792 = vld [vmem:[%s3 + $0x1c0] sm:$0xff]
    %v2793 = vld [vmem:[%s3 + $0x1c8] sm:$0xff]
    %v2794 = vld [vmem:[%s3 + $0x1d0] sm:$0xff]
    %v2795 = vld [vmem:[%s3 + $0x1d8] sm:$0xff]
    %v2796 = vld [vmem:[%s3 + $0x1e0] sm:$0xff]
    %v2797 = vld [vmem:[%s3 + $0x1e8] sm:$0xff]
    %v2798 = vld [vmem:[%s3 + $0x1f0] sm:$0xff]
    %v2799 = vld [vmem:[%s3 + $0x1f8] sm:$0xff]
    %v2800 = vld [vmem:[%s4] sm:$0x3]
    %v2802 = vlaneseq
    %v2803 = vshrl.u32 %v2802, 7
    %v2804 = vsub.s32 0, %v2803
    %v2805 = vrot.slane %v2800, %v2804
    %v2806 = vlaneseq
    %v2807 = vshrl.u32 %v2806, 7
    %v2808 = vsub.s32 1, %v2807
    %v2809 = vrot.slane %v2800, %v2808
    %v2876 = vunpack.c.l.b16 %v2736
    %v2877 = vunpack.c.h.b16 %v2736
    %v2878 = vunpack.c.l.b16 %v2737
    %v2879 = vunpack.c.h.b16 %v2737
    %v2880 = vunpack.c.l.b16 %v2738
    %v2881 = vunpack.c.h.b16 %v2738
    %v2882 = vunpack.c.l.b16 %v2739
    %v2883 = vunpack.c.h.b16 %v2739
    %v2884 = vunpack.c.l.b16 %v2740
    %v2885 = vunpack.c.h.b16 %v2740
    %v2886 = vunpack.c.l.b16 %v2741
    %v2887 = vunpack.c.h.b16 %v2741
    %v2888 = vunpack.c.l.b16 %v2742
    %v2889 = vunpack.c.h.b16 %v2742
    %v2890 = vunpack.c.l.b16 %v2743
    %v2891 = vunpack.c.h.b16 %v2743
    %v2892 = vunpack.c.l.b16 %v2744
    %v2893 = vunpack.c.h.b16 %v2744
    %v2894 = vunpack.c.l.b16 %v2745
    %v2895 = vunpack.c.h.b16 %v2745
    %v2896 = vunpack.c.l.b16 %v2746
    %v2897 = vunpack.c.h.b16 %v2746
    %v2898 = vunpack.c.l.b16 %v2747
    %v2899 = vunpack.c.h.b16 %v2747
    %v2900 = vunpack.c.l.b16 %v2748
    %v2901 = vunpack.c.h.b16 %v2748
    %v2902 = vunpack.c.l.b16 %v2749
    %v2903 = vunpack.c.h.b16 %v2749
    %v2904 = vunpack.c.l.b16 %v2750
    %v2905 = vunpack.c.h.b16 %v2750
    %v2906 = vunpack.c.l.b16 %v2751
    %v2907 = vunpack.c.h.b16 %v2751
    %v2908 = vunpack.c.l.b16 %v2752
    %v2909 = vunpack.c.h.b16 %v2752
    %v2910 = vunpack.c.l.b16 %v2753
    %v2911 = vunpack.c.h.b16 %v2753
    %v2912 = vunpack.c.l.b16 %v2754
    %v2913 = vunpack.c.h.b16 %v2754
    %v2914 = vunpack.c.l.b16 %v2755
    %v2915 = vunpack.c.h.b16 %v2755
    %v2916 = vunpack.c.l.b16 %v2756
    %v2917 = vunpack.c.h.b16 %v2756
    %v2918 = vunpack.c.l.b16 %v2757
    %v2919 = vunpack.c.h.b16 %v2757
    %v2920 = vunpack.c.l.b16 %v2758
    %v2921 = vunpack.c.h.b16 %v2758
    %v2922 = vunpack.c.l.b16 %v2759
    %v2923 = vunpack.c.h.b16 %v2759
    %v2924 = vunpack.c.l.b16 %v2760
    %v2925 = vunpack.c.h.b16 %v2760
    %v2926 = vunpack.c.l.b16 %v2761
    %v2927 = vunpack.c.h.b16 %v2761
    %v2928 = vunpack.c.l.b16 %v2762
    %v2929 = vunpack.c.h.b16 %v2762
    %v2930 = vunpack.c.l.b16 %v2763
    %v2931 = vunpack.c.h.b16 %v2763
    %v2932 = vunpack.c.l.b16 %v2764
    %v2933 = vunpack.c.h.b16 %v2764
    %v2934 = vunpack.c.l.b16 %v2765
    %v2935 = vunpack.c.h.b16 %v2765
    %v2936 = vunpack.c.l.b16 %v2766
    %v2937 = vunpack.c.h.b16 %v2766
    %v2938 = vunpack.c.l.b16 %v2767
    %v2939 = vunpack.c.h.b16 %v2767
    %v2940 = vunpack.c.l.b16 %v2768
    %v2941 = vunpack.c.h.b16 %v2768
    %v2942 = vunpack.c.l.b16 %v2769
    %v2943 = vunpack.c.h.b16 %v2769
    %v2944 = vunpack.c.l.b16 %v2770
    %v2945 = vunpack.c.h.b16 %v2770
    %v2946 = vunpack.c.l.b16 %v2771
    %v2947 = vunpack.c.h.b16 %v2771
    %v2948 = vunpack.c.l.b16 %v2772
    %v2949 = vunpack.c.h.b16 %v2772
    %v2950 = vunpack.c.l.b16 %v2773
    %v2951 = vunpack.c.h.b16 %v2773
    %v2952 = vunpack.c.l.b16 %v2774
    %v2953 = vunpack.c.h.b16 %v2774
    %v2954 = vunpack.c.l.b16 %v2775
    %v2955 = vunpack.c.h.b16 %v2775
    %v2956 = vunpack.c.l.b16 %v2776
    %v2957 = vunpack.c.h.b16 %v2776
    %v2958 = vunpack.c.l.b16 %v2777
    %v2959 = vunpack.c.h.b16 %v2777
    %v2960 = vunpack.c.l.b16 %v2778
    %v2961 = vunpack.c.h.b16 %v2778
    %v2962 = vunpack.c.l.b16 %v2779
    %v2963 = vunpack.c.h.b16 %v2779
    %v2964 = vunpack.c.l.b16 %v2780
    %v2965 = vunpack.c.h.b16 %v2780
    %v2966 = vunpack.c.l.b16 %v2781
    %v2967 = vunpack.c.h.b16 %v2781
    %v2968 = vunpack.c.l.b16 %v2782
    %v2969 = vunpack.c.h.b16 %v2782
    %v2970 = vunpack.c.l.b16 %v2783
    %v2971 = vunpack.c.h.b16 %v2783
    %v2972 = vunpack.c.l.b16 %v2784
    %v2973 = vunpack.c.h.b16 %v2784
    %v2974 = vunpack.c.l.b16 %v2785
    %v2975 = vunpack.c.h.b16 %v2785
    %v2976 = vunpack.c.l.b16 %v2786
    %v2977 = vunpack.c.h.b16 %v2786
    %v2978 = vunpack.c.l.b16 %v2787
    %v2979 = vunpack.c.h.b16 %v2787
    %v2980 = vunpack.c.l.b16 %v2788
    %v2981 = vunpack.c.h.b16 %v2788
    %v2982 = vunpack.c.l.b16 %v2789
    %v2983 = vunpack.c.h.b16 %v2789
    %v2984 = vunpack.c.l.b16 %v2790
    %v2985 = vunpack.c.h.b16 %v2790
    %v2986 = vunpack.c.l.b16 %v2791
    %v2987 = vunpack.c.h.b16 %v2791
    %v2988 = vunpack.c.l.b16 %v2792
    %v2989 = vunpack.c.h.b16 %v2792
    %v2990 = vunpack.c.l.b16 %v2793
    %v2991 = vunpack.c.h.b16 %v2793
    %v2992 = vunpack.c.l.b16 %v2794
    %v2993 = vunpack.c.h.b16 %v2794
    %v2994 = vunpack.c.l.b16 %v2795
    %v2995 = vunpack.c.h.b16 %v2795
    %v2996 = vunpack.c.l.b16 %v2796
    %v2997 = vunpack.c.h.b16 %v2796
    %v2998 = vunpack.c.l.b16 %v2797
    %v2999 = vunpack.c.h.b16 %v2797
    %v3000 = vunpack.c.l.b16 %v2798
    %v3001 = vunpack.c.h.b16 %v2798
    %v3002 = vunpack.c.l.b16 %v2799
    %v3003 = vunpack.c.h.b16 %v2799
    %v3004 = vpack.c.b16 %v2878, %v2876
    %v3005 = vpack.c.b16 %v2879, %v2877
    %v3006 = vpack.c.b16 %v2882, %v2880
    %v3007 = vpack.c.b16 %v2883, %v2881
    %v3008 = vpack.c.b16 %v2886, %v2884
    %v3009 = vpack.c.b16 %v2887, %v2885
    %v3010 = vpack.c.b16 %v2890, %v2888
    %v3011 = vpack.c.b16 %v2891, %v2889
    %v3012 = vpack.c.b16 %v2894, %v2892
    %v3013 = vpack.c.b16 %v2895, %v2893
    %v3014 = vpack.c.b16 %v2898, %v2896
    %v3015 = vpack.c.b16 %v2899, %v2897
    %v3016 = vpack.c.b16 %v2902, %v2900
    %v3017 = vpack.c.b16 %v2903, %v2901
    %v3018 = vpack.c.b16 %v2906, %v2904
    %v3019 = vpack.c.b16 %v2907, %v2905
    %v3020 = vpack.c.b16 %v2910, %v2908
    %v3021 = vpack.c.b16 %v2911, %v2909
    %v3022 = vpack.c.b16 %v2914, %v2912
    %v3023 = vpack.c.b16 %v2915, %v2913
    %v3024 = vpack.c.b16 %v2918, %v2916
    %v3025 = vpack.c.b16 %v2919, %v2917
    %v3026 = vpack.c.b16 %v2922, %v2920
    %v3027 = vpack.c.b16 %v2923, %v2921
    %v3028 = vpack.c.b16 %v2926, %v2924
    %v3029 = vpack.c.b16 %v2927, %v2925
    %v3030 = vpack.c.b16 %v2930, %v2928
    %v3031 = vpack.c.b16 %v2931, %v2929
    %v3032 = vpack.c.b16 %v2934, %v2932
    %v3033 = vpack.c.b16 %v2935, %v2933
    %v3034 = vpack.c.b16 %v2938, %v2936
    %v3035 = vpack.c.b16 %v2939, %v2937
    %v3036 = vpack.c.b16 %v2942, %v2940
    %v3037 = vpack.c.b16 %v2943, %v2941
    %v3038 = vpack.c.b16 %v2946, %v2944
    %v3039 = vpack.c.b16 %v2947, %v2945
    %v3040 = vpack.c.b16 %v2950, %v2948
    %v3041 = vpack.c.b16 %v2951, %v2949
    %v3042 = vpack.c.b16 %v2954, %v2952
    %v3043 = vpack.c.b16 %v2955, %v2953
    %v3044 = vpack.c.b16 %v2958, %v2956
    %v3045 = vpack.c.b16 %v2959, %v2957
    %v3046 = vpack.c.b16 %v2962, %v2960
    %v3047 = vpack.c.b16 %v2963, %v2961
    %v3048 = vpack.c.b16 %v2966, %v2964
    %v3049 = vpack.c.b16 %v2967, %v2965
    %v3050 = vpack.c.b16 %v2970, %v2968
    %v3051 = vpack.c.b16 %v2971, %v2969
    %v3052 = vpack.c.b16 %v2974, %v2972
    %v3053 = vpack.c.b16 %v2975, %v2973
    %v3054 = vpack.c.b16 %v2978, %v2976
    %v3055 = vpack.c.b16 %v2979, %v2977
    %v3056 = vpack.c.b16 %v2982, %v2980
    %v3057 = vpack.c.b16 %v2983, %v2981
    %v3058 = vpack.c.b16 %v2986, %v2984
    %v3059 = vpack.c.b16 %v2987, %v2985
    %v3060 = vpack.c.b16 %v2990, %v2988
    %v3061 = vpack.c.b16 %v2991, %v2989
    %v3062 = vpack.c.b16 %v2994, %v2992
    %v3063 = vpack.c.b16 %v2995, %v2993
    %v3064 = vpack.c.b16 %v2998, %v2996
    %v3065 = vpack.c.b16 %v2999, %v2997
    %v3066 = vpack.c.b16 %v3002, %v3000
    %v3067 = vpack.c.b16 %v3003, %v3001
    %3132 = vmatprep.subr.bf16.mxu0 %v3005
    %3133 = vmatpush1.bf16.msra.mxu0 %v3004
    %3134 = vmatprep.subr.bf16.mxu0 %v3007
    %3135 = vmatpush1.bf16.msra.mxu0 %v3006
    %3136 = vmatprep.subr.bf16.mxu0 %v3009
    %3137 = vmatpush1.bf16.msra.mxu0 %v3008
    %3138 = vmatprep.subr.bf16.mxu0 %v3011
    %3139 = vmatpush1.bf16.msra.mxu0 %v3010
    %3140 = vmatprep.subr.bf16.mxu0 %v3013
    %3141 = vmatpush1.bf16.msra.mxu0 %v3012
    %3142 = vmatprep.subr.bf16.mxu0 %v3015
    %3143 = vmatpush1.bf16.msra.mxu0 %v3014
    %3144 = vmatprep.subr.bf16.mxu0 %v3017
    %3145 = vmatpush1.bf16.msra.mxu0 %v3016
    %3146 = vmatprep.subr.bf16.mxu0 %v3019
    %3147 = vmatpush1.bf16.msra.mxu0 %v3018
    %3148 = vmatprep.subr.bf16.mxu0 %v3021
    %3149 = vmatpush1.bf16.msra.mxu0 %v3020
    %3150 = vmatprep.subr.bf16.mxu0 %v3023
    %3151 = vmatpush1.bf16.msra.mxu0 %v3022
    %3152 = vmatprep.subr.bf16.mxu0 %v3025
    %3153 = vmatpush1.bf16.msra.mxu0 %v3024
    %3154 = vmatprep.subr.bf16.mxu0 %v3027
    %3155 = vmatpush1.bf16.msra.mxu0 %v3026
    %3156 = vmatprep.subr.bf16.mxu0 %v3029
    %3157 = vmatpush1.bf16.msra.mxu0 %v3028
    %3158 = vmatprep.subr.bf16.mxu0 %v3031
    %3159 = vmatpush1.bf16.msra.mxu0 %v3030
    %3160 = vmatprep.subr.bf16.mxu0 %v3033
    %3161 = vmatpush1.bf16.msra.mxu0 %v3032
    %3162 = vmatprep.subr.bf16.mxu0 %v3035
    %3163 = vmatpush1.bf16.msra.mxu0 %v3034
    %3164 = vmatprep.mubr.bf16.mxu0 %v2705
    %3165 = vmatmul.mubr.bf16.gmra.mrb[0].mxu0 %v2704
    %v3166 = vpop.f32.mrb[0].mxu0
    %v3167 = vadd.f32 %v2805, %v3166
    %v3168 = vpop.f32.mrb[0].mxu0
    %v3169 = vadd.f32 %v2809, %v3168
    %v3170 = vpop.f32.mrb[0].mxu0
    %v3171 = vadd.f32 %v2805, %v3170
    %v3172 = vpop.f32.mrb[0].mxu0
    %v3173 = vadd.f32 %v2809, %v3172
    %3174 = vmatprep.mubr.bf16.mxu0 %v2709
    %3175 = vmatmul.mubr.bf16.gmra.mrb[0].mxu0 %v2708
    %v3176 = vpop.f32.mrb[0].mxu0
    %v3177 = vadd.f32 %v2805, %v3176
    %v3178 = vpop.f32.mrb[0].mxu0
    %v3179 = vadd.f32 %v2809, %v3178
    %v3180 = vpop.f32.mrb[0].mxu0
    %v3181 = vadd.f32 %v2805, %v3180
    %v3182 = vpop.f32.mrb[0].mxu0
    %v3183 = vadd.f32 %v2809, %v3182
    %3184 = vmatprep.mubr.bf16.mxu0 %v2713
    %3185 = vmatmul.mubr.bf16.gmra.mrb[0].mxu0 %v2712
    %v3186 = vpop.f32.mrb[0].mxu0
    %v3187 = vadd.f32 %v2805, %v3186
    %v3188 = vpop.f32.mrb[0].mxu0
    %v3189 = vadd.f32 %v2809, %v3188
    %v3190 = vpop.f32.mrb[0].mxu0
    %v3191 = vadd.f32 %v2805, %v3190
    %v3192 = vpop.f32.mrb[0].mxu0
    %v3193 = vadd.f32 %v2809, %v3192
    %3194 = vmatprep.mubr.bf16.mxu0 %v2717
    %3195 = vmatmul.mubr.bf16.gmra.mrb[0].mxu0 %v2716
    %v3196 = vpop.f32.mrb[0].mxu0
    %v3197 = vadd.f32 %v2805, %v3196
    %v3198 = vpop.f32.mrb[0].mxu0
    %v3199 = vadd.f32 %v2809, %v3198
    %v3200 = vpop.f32.mrb[0].mxu0
    %v3201 = vadd.f32 %v2805, %v3200
    %v3202 = vpop.f32.mrb[0].mxu0
    %v3203 = vadd.f32 %v2809, %v3202
    %3204 = vmatprep.mubr.bf16.mxu0 %v2721
    %3205 = vmatmul.mubr.bf16.gmra.mrb[0].mxu0 %v2720
    %v3206 = vpop.f32.mrb[0].mxu0
    %v3207 = vadd.f32 %v2805, %v3206
    %v3208 = vpop.f32.mrb[0].mxu0
    %v3209 = vadd.f32 %v2809, %v3208
    %v3210 = vpop.f32.mrb[0].mxu0
    %v3211 = vadd.f32 %v2805, %v3210
    %v3212 = vpop.f32.mrb[0].mxu0
    %v3213 = vadd.f32 %v2809, %v3212
    %3214 = vmatprep.mubr.bf16.mxu0 %v2725
    %3215 = vmatmul.mubr.bf16.gmra.mrb[0].mxu0 %v2724
    %v3216 = vpop.f32.mrb[0].mxu0
    %v3217 = vadd.f32 %v2805, %v3216
    %v3218 = vpop.f32.mrb[0].mxu0
    %v3219 = vadd.f32 %v2809, %v3218
    %v3220 = vpop.f32.mrb[0].mxu0
    %v3221 = vadd.f32 %v2805, %v3220
    %v3222 = vpop.f32.mrb[0].mxu0
    %v3223 = vadd.f32 %v2809, %v3222
    %3224 = vmatprep.mubr.bf16.mxu0 %v2729
    %3225 = vmatmul.mubr.bf16.gmra.mrb[0].mxu0 %v2728
    %v3226 = vpop.f32.mrb[0].mxu0
    %v3227 = vadd.f32 %v2805, %v3226
    %v3228 = vpop.f32.mrb[0].mxu0
    %v3229 = vadd.f32 %v2809, %v3228
    %v3230 = vpop.f32.mrb[0].mxu0
    %v3231 = vadd.f32 %v2805, %v3230
    %v3232 = vpop.f32.mrb[0].mxu0
    %v3233 = vadd.f32 %v2809, %v3232
    %3234 = vmatprep.mubr.bf16.mxu0 %v2733
    %3235 = vmatmul.mubr.bf16.gmra.mrb[0].mxu0 %v2732
    %v3236 = vpop.f32.mrb[0].mxu0
    %v3237 = vadd.f32 %v2805, %v3236
    %v3238 = vpop.f32.mrb[0].mxu0
    %v3239 = vadd.f32 %v2809, %v3238
    %v3240 = vpop.f32.mrb[0].mxu0
    %v3241 = vadd.f32 %v2805, %v3240
    %v3242 = vpop.f32.mrb[0].mxu0
    %v3243 = vadd.f32 %v2809, %v3242
    %3244 = vdwg.mxu0
    %3245 = vmatprep.subr.bf16.mxu0 %v3037
    %3246 = vmatpush1.bf16.msra.mxu0 %v3036
    %3247 = vmatprep.subr.bf16.mxu0 %v3039
    %3248 = vmatpush1.bf16.msra.mxu0 %v3038
    %3249 = vmatprep.subr.bf16.mxu0 %v3041
    %3250 = vmatpush1.bf16.msra.mxu0 %v3040
    %3251 = vmatprep.subr.bf16.mxu0 %v3043
    %3252 = vmatpush1.bf16.msra.mxu0 %v3042
    %3253 = vmatprep.subr.bf16.mxu0 %v3045
    %3254 = vmatpush1.bf16.msra.mxu0 %v3044
    %3255 = vmatprep.subr.bf16.mxu0 %v3047
    %3256 = vmatpush1.bf16.msra.mxu0 %v3046
    %3257 = vmatprep.subr.bf16.mxu0 %v3049
    %3258 = vmatpush1.bf16.msra.mxu0 %v3048
    %3259 = vmatprep.subr.bf16.mxu0 %v3051
    %3260 = vmatpush1.bf16.msra.mxu0 %v3050
    %3261 = vmatprep.subr.bf16.mxu0 %v3053
    %3262 = vmatpush1.bf16.msra.mxu0 %v3052
    %3263 = vmatprep.subr.bf16.mxu0 %v3055
    %3264 = vmatpush1.bf16.msra.mxu0 %v3054
    %3265 = vmatprep.subr.bf16.mxu0 %v3057
    %3266 = vmatpush1.bf16.msra.mxu0 %v3056
    %3267 = vmatprep.subr.bf16.mxu0 %v3059
    %3268 = vmatpush1.bf16.msra.mxu0 %v3058
    %3269 = vmatprep.subr.bf16.mxu0 %v3061
    %3270 = vmatpush1.bf16.msra.mxu0 %v3060
    %3271 = vmatprep.subr.bf16.mxu0 %v3063
    %3272 = vmatpush1.bf16.msra.mxu0 %v3062
    %3273 = vmatprep.subr.bf16.mxu0 %v3065
    %3274 = vmatpush1.bf16.msra.mxu0 %v3064
    %3275 = vmatprep.subr.bf16.mxu0 %v3067
    %3276 = vmatpush1.bf16.msra.mxu0 %v3066
    %3277 = vmatprep.mubr.bf16.mxu0 %v2707
    %3278 = vmatmul.mubr.bf16.gmra.mrb[0].mxu0 %v2706
    %v3279 = vpop.f32.mrb[0].mxu0
    %v3280 = vadd.f32 %v3167, %v3279
    %v3281 = vpop.f32.mrb[0].mxu0
    %v3282 = vadd.f32 %v3169, %v3281
    %v3283 = vpop.f32.mrb[0].mxu0
    %v3284 = vadd.f32 %v3171, %v3283
    %v3285 = vpop.f32.mrb[0].mxu0
    %v3286 = vadd.f32 %v3173, %v3285
    %3287 = vmatprep.mubr.bf16.mxu0 %v2711
    %3288 = vmatmul.mubr.bf16.gmra.mrb[0].mxu0 %v2710
    %v3289 = vpop.f32.mrb[0].mxu0
    %v3290 = vadd.f32 %v3177, %v3289
    %v3291 = vpop.f32.mrb[0].mxu0
    %v3292 = vadd.f32 %v3179, %v3291
    %v3293 = vpop.f32.mrb[0].mxu0
    %v3294 = vadd.f32 %v3181, %v3293
    %v3295 = vpop.f32.mrb[0].mxu0
    %v3296 = vadd.f32 %v3183, %v3295
    %3297 = vmatprep.mubr.bf16.mxu0 %v2715
    %3298 = vmatmul.mubr.bf16.gmra.mrb[0].mxu0 %v2714
    %v3299 = vpop.f32.mrb[0].mxu0
    %v3300 = vadd.f32 %v3187, %v3299
    %v3301 = vpop.f32.mrb[0].mxu0
    %v3302 = vadd.f32 %v3189, %v3301
    %v3303 = vpop.f32.mrb[0].mxu0
    %v3304 = vadd.f32 %v3191, %v3303
    %v3305 = vpop.f32.mrb[0].mxu0
    %v3306 = vadd.f32 %v3193, %v3305
    %3307 = vmatprep.mubr.bf16.mxu0 %v2719
    %3308 = vmatmul.mubr.bf16.gmra.mrb[0].mxu0 %v2718
    %v3309 = vpop.f32.mrb[0].mxu0
    %v3310 = vadd.f32 %v3197, %v3309
    %v3311 = vpop.f32.mrb[0].mxu0
    %v3312 = vadd.f32 %v3199, %v3311
    %v3313 = vpop.f32.mrb[0].mxu0
    %v3314 = vadd.f32 %v3201, %v3313
    %v3315 = vpop.f32.mrb[0].mxu0
    %v3316 = vadd.f32 %v3203, %v3315
    %3317 = vmatprep.mubr.bf16.mxu0 %v2723
    %3318 = vmatmul.mubr.bf16.gmra.mrb[0].mxu0 %v2722
    %v3319 = vpop.f32.mrb[0].mxu0
    %v3320 = vadd.f32 %v3207, %v3319
    %v3321 = vpop.f32.mrb[0].mxu0
    %v3322 = vadd.f32 %v3209, %v3321
    %v3323 = vpop.f32.mrb[0].mxu0
    %v3324 = vadd.f32 %v3211, %v3323
    %v3325 = vpop.f32.mrb[0].mxu0
    %v3326 = vadd.f32 %v3213, %v3325
    %3327 = vmatprep.mubr.bf16.mxu0 %v2727
    %3328 = vmatmul.mubr.bf16.gmra.mrb[0].mxu0 %v2726
    %v3329 = vpop.f32.mrb[0].mxu0
    %v3330 = vadd.f32 %v3217, %v3329
    %v3331 = vpop.f32.mrb[0].mxu0
    %v3332 = vadd.f32 %v3219, %v3331
    %v3333 = vpop.f32.mrb[0].mxu0
    %v3334 = vadd.f32 %v3221, %v3333
    %v3335 = vpop.f32.mrb[0].mxu0
    %v3336 = vadd.f32 %v3223, %v3335
    %3337 = vmatprep.mubr.bf16.mxu0 %v2731
    %3338 = vmatmul.mubr.bf16.gmra.mrb[0].mxu0 %v2730
    %v3339 = vpop.f32.mrb[0].mxu0
    %v3340 = vadd.f32 %v3227, %v3339
    %v3341 = vpop.f32.mrb[0].mxu0
    %v3342 = vadd.f32 %v3229, %v3341
    %v3343 = vpop.f32.mrb[0].mxu0
    %v3344 = vadd.f32 %v3231, %v3343
    %v3345 = vpop.f32.mrb[0].mxu0
    %v3346 = vadd.f32 %v3233, %v3345
    %3347 = vmatprep.mubr.bf16.mxu0 %v2735
    %3348 = vmatmul.mubr.bf16.gmra.mrb[0].mxu0 %v2734
    %v3349 = vpop.f32.mrb[0].mxu0
    %v3350 = vadd.f32 %v3237, %v3349
    %v3351 = vpop.f32.mrb[0].mxu0
    %v3352 = vadd.f32 %v3239, %v3351
    %v3353 = vpop.f32.mrb[0].mxu0
    %v3354 = vadd.f32 %v3241, %v3353
    %v3355 = vpop.f32.mrb[0].mxu0
    %v3356 = vadd.f32 %v3243, %v3355
    %3357 = vdwg.mxu0
    %vm3358 = vcmp.gt.f32.partialorder %v3280, 0.0
    %vm3359 = vcmp.gt.f32.partialorder %v3282, 0.0
    %vm3360 = vcmp.gt.f32.partialorder %v3284, 0.0
    %vm3361 = vcmp.gt.f32.partialorder %v3286, 0.0
    %vm3362 = vcmp.gt.f32.partialorder %v3290, 0.0
    %vm3363 = vcmp.gt.f32.partialorder %v3292, 0.0
    %vm3364 = vcmp.gt.f32.partialorder %v3294, 0.0
    %vm3365 = vcmp.gt.f32.partialorder %v3296, 0.0
    %vm3366 = vcmp.gt.f32.partialorder %v3300, 0.0
    %vm3367 = vcmp.gt.f32.partialorder %v3302, 0.0
    %vm3368 = vcmp.gt.f32.partialorder %v3304, 0.0
    %vm3369 = vcmp.gt.f32.partialorder %v3306, 0.0
    %vm3370 = vcmp.gt.f32.partialorder %v3310, 0.0
    %vm3371 = vcmp.gt.f32.partialorder %v3312, 0.0
    %vm3372 = vcmp.gt.f32.partialorder %v3314, 0.0
    %vm3373 = vcmp.gt.f32.partialorder %v3316, 0.0
    %vm3374 = vcmp.gt.f32.partialorder %v3320, 0.0
    %vm3375 = vcmp.gt.f32.partialorder %v3322, 0.0
    %vm3376 = vcmp.gt.f32.partialorder %v3324, 0.0
    %vm3377 = vcmp.gt.f32.partialorder %v3326, 0.0
    %vm3378 = vcmp.gt.f32.partialorder %v3330, 0.0
    %vm3379 = vcmp.gt.f32.partialorder %v3332, 0.0
    %vm3380 = vcmp.gt.f32.partialorder %v3334, 0.0
    %vm3381 = vcmp.gt.f32.partialorder %v3336, 0.0
    %vm3382 = vcmp.gt.f32.partialorder %v3340, 0.0
    %vm3383 = vcmp.gt.f32.partialorder %v3342, 0.0
    %vm3384 = vcmp.gt.f32.partialorder %v3344, 0.0
    %vm3385 = vcmp.gt.f32.partialorder %v3346, 0.0
    %vm3386 = vcmp.gt.f32.partialorder %v3350, 0.0
    %vm3387 = vcmp.gt.f32.partialorder %v3352, 0.0
    %vm3388 = vcmp.gt.f32.partialorder %v3354, 0.0
    %vm3389 = vcmp.gt.f32.partialorder %v3356, 0.0
    %v3390 = vmul.f32 %v3280, 0.2
    %v3391 = vmul.f32 %v3282, 0.2
    %v3392 = vmul.f32 %v3284, 0.2
    %v3393 = vmul.f32 %v3286, 0.2
    %v3394 = vmul.f32 %v3290, 0.2
    %v3395 = vmul.f32 %v3292, 0.2
    %v3396 = vmul.f32 %v3294, 0.2
    %v3397 = vmul.f32 %v3296, 0.2
    %v3398 = vmul.f32 %v3300, 0.2
    %v3399 = vmul.f32 %v3302, 0.2
    %v3400 = vmul.f32 %v3304, 0.2
    %v3401 = vmul.f32 %v3306, 0.2
    %v3402 = vmul.f32 %v3310, 0.2
    %v3403 = vmul.f32 %v3312, 0.2
    %v3404 = vmul.f32 %v3314, 0.2
    %v3405 = vmul.f32 %v3316, 0.2
    %v3406 = vmul.f32 %v3320, 0.2
    %v3407 = vmul.f32 %v3322, 0.2
    %v3408 = vmul.f32 %v3324, 0.2
    %v3409 = vmul.f32 %v3326, 0.2
    %v3410 = vmul.f32 %v3330, 0.2
    %v3411 = vmul.f32 %v3332, 0.2
    %v3412 = vmul.f32 %v3334, 0.2
    %v3413 = vmul.f32 %v3336, 0.2
    %v3414 = vmul.f32 %v3340, 0.2
    %v3415 = vmul.f32 %v3342, 0.2
    %v3416 = vmul.f32 %v3344, 0.2
    %v3417 = vmul.f32 %v3346, 0.2
    %v3418 = vmul.f32 %v3350, 0.2
    %v3419 = vmul.f32 %v3352, 0.2
    %v3420 = vmul.f32 %v3354, 0.2
    %v3421 = vmul.f32 %v3356, 0.2
    %v3422 = vsel %vm3358, %v3280, %v3390
    %v3423 = vsel %vm3359, %v3282, %v3391
    %v3424 = vsel %vm3360, %v3284, %v3392
    %v3425 = vsel %vm3361, %v3286, %v3393
    %v3426 = vsel %vm3362, %v3290, %v3394
    %v3427 = vsel %vm3363, %v3292, %v3395
    %v3428 = vsel %vm3364, %v3294, %v3396
    %v3429 = vsel %vm3365, %v3296, %v3397
    %v3430 = vsel %vm3366, %v3300, %v3398
    %v3431 = vsel %vm3367, %v3302, %v3399
    %v3432 = vsel %vm3368, %v3304, %v3400
    %v3433 = vsel %vm3369, %v3306, %v3401
    %v3434 = vsel %vm3370, %v3310, %v3402
    %v3435 = vsel %vm3371, %v3312, %v3403
    %v3436 = vsel %vm3372, %v3314, %v3404
    %v3437 = vsel %vm3373, %v3316, %v3405
    %v3438 = vsel %vm3374, %v3320, %v3406
    %v3439 = vsel %vm3375, %v3322, %v3407
    %v3440 = vsel %vm3376, %v3324, %v3408
    %v3441 = vsel %vm3377, %v3326, %v3409
    %v3442 = vsel %vm3378, %v3330, %v3410
    %v3443 = vsel %vm3379, %v3332, %v3411
    %v3444 = vsel %vm3380, %v3334, %v3412
    %v3445 = vsel %vm3381, %v3336, %v3413
    %v3446 = vsel %vm3382, %v3340, %v3414
    %v3447 = vsel %vm3383, %v3342, %v3415
    %v3448 = vsel %vm3384, %v3344, %v3416
    %v3449 = vsel %vm3385, %v3346, %v3417
    %v3450 = vsel %vm3386, %v3350, %v3418
    %v3451 = vsel %vm3387, %v3352, %v3419
    %v3452 = vsel %vm3388, %v3354, %v3420
    %v3453 = vsel %vm3389, %v3356, %v3421
    %v3454 = vpack.c.bf16 %v3424, %v3422
    %v3455 = vpack.c.bf16 %v3425, %v3423
    %v3456 = vpack.c.bf16 %v3428, %v3426
    %v3457 = vpack.c.bf16 %v3429, %v3427
    %v3458 = vpack.c.bf16 %v3432, %v3430
    %v3459 = vpack.c.bf16 %v3433, %v3431
    %v3460 = vpack.c.bf16 %v3436, %v3434
    %v3461 = vpack.c.bf16 %v3437, %v3435
    %v3462 = vpack.c.bf16 %v3440, %v3438
    %v3463 = vpack.c.bf16 %v3441, %v3439
    %v3464 = vpack.c.bf16 %v3444, %v3442
    %v3465 = vpack.c.bf16 %v3445, %v3443
    %v3466 = vpack.c.bf16 %v3448, %v3446
    %v3467 = vpack.c.bf16 %v3449, %v3447
    %v3468 = vpack.c.bf16 %v3452, %v3450
    %v3469 = vpack.c.bf16 %v3453, %v3451
    %v3470 = vld [vmem:[%s5] sm:$0xf]
    %v3471 = vld [vmem:[%s5 + $0x4] sm:$0xf]
    %v3472 = vld [vmem:[%s5 + $0x8] sm:$0xf]
    %v3473 = vld [vmem:[%s5 + $0xc] sm:$0xf]
    %v3474 = vld [vmem:[%s5 + $0x10] sm:$0xf]
    %v3475 = vld [vmem:[%s5 + $0x14] sm:$0xf]
    %v3476 = vld [vmem:[%s5 + $0x18] sm:$0xf]
    %v3477 = vld [vmem:[%s5 + $0x1c] sm:$0xf]
    %v3478 = vld [vmem:[%s5 + $0x20] sm:$0xf]
    %v3479 = vld [vmem:[%s5 + $0x24] sm:$0xf]
    %v3480 = vld [vmem:[%s5 + $0x28] sm:$0xf]
    %v3481 = vld [vmem:[%s5 + $0x2c] sm:$0xf]
    %v3482 = vld [vmem:[%s5 + $0x30] sm:$0xf]
    %v3483 = vld [vmem:[%s5 + $0x34] sm:$0xf]
    %v3484 = vld [vmem:[%s5 + $0x38] sm:$0xf]
    %v3485 = vld [vmem:[%s5 + $0x3c] sm:$0xf]
    %v3486 = vld [vmem:[%s5 + $0x40] sm:$0xf]
    %v3487 = vld [vmem:[%s5 + $0x44] sm:$0xf]
    %v3488 = vld [vmem:[%s5 + $0x48] sm:$0xf]
    %v3489 = vld [vmem:[%s5 + $0x4c] sm:$0xf]
    %v3490 = vld [vmem:[%s5 + $0x50] sm:$0xf]
    %v3491 = vld [vmem:[%s5 + $0x54] sm:$0xf]
    %v3492 = vld [vmem:[%s5 + $0x58] sm:$0xf]
    %v3493 = vld [vmem:[%s5 + $0x5c] sm:$0xf]
    %v3494 = vld [vmem:[%s5 + $0x60] sm:$0xf]
    %v3495 = vld [vmem:[%s5 + $0x64] sm:$0xf]
    %v3496 = vld [vmem:[%s5 + $0x68] sm:$0xf]
    %v3497 = vld [vmem:[%s5 + $0x6c] sm:$0xf]
    %v3498 = vld [vmem:[%s5 + $0x70] sm:$0xf]
    %v3499 = vld [vmem:[%s5 + $0x74] sm:$0xf]
    %v3500 = vld [vmem:[%s5 + $0x78] sm:$0xf]
    %v3501 = vld [vmem:[%s5 + $0x7c] sm:$0xf]
    %v3502 = vld [vmem:[%s6] sm:$0x1]
    %v3504 = vlaneseq
    %v3505 = vshrl.u32 %v3504, 7
    %v3506 = vsub.s32 0, %v3505
    %v3507 = vrot.slane %v3502, %v3506
    %v3541 = vunpack.c.l.b16 %v3470
    %v3542 = vunpack.c.l.b16 %v3471
    %v3543 = vunpack.c.l.b16 %v3472
    %v3544 = vunpack.c.l.b16 %v3473
    %v3545 = vunpack.c.l.b16 %v3474
    %v3546 = vunpack.c.l.b16 %v3475
    %v3547 = vunpack.c.l.b16 %v3476
    %v3548 = vunpack.c.l.b16 %v3477
    %v3549 = vunpack.c.l.b16 %v3478
    %v3550 = vunpack.c.l.b16 %v3479
    %v3551 = vunpack.c.l.b16 %v3480
    %v3552 = vunpack.c.l.b16 %v3481
    %v3553 = vunpack.c.l.b16 %v3482
    %v3554 = vunpack.c.l.b16 %v3483
    %v3555 = vunpack.c.l.b16 %v3484
    %v3556 = vunpack.c.l.b16 %v3485
    %v3557 = vunpack.c.l.b16 %v3486
    %v3558 = vunpack.c.l.b16 %v3487
    %v3559 = vunpack.c.l.b16 %v3488
    %v3560 = vunpack.c.l.b16 %v3489
    %v3561 = vunpack.c.l.b16 %v3490
    %v3562 = vunpack.c.l.b16 %v3491
    %v3563 = vunpack.c.l.b16 %v3492
    %v3564 = vunpack.c.l.b16 %v3493
    %v3565 = vunpack.c.l.b16 %v3494
    %v3566 = vunpack.c.l.b16 %v3495
    %v3567 = vunpack.c.l.b16 %v3496
    %v3568 = vunpack.c.l.b16 %v3497
    %v3569 = vunpack.c.l.b16 %v3498
    %v3570 = vunpack.c.l.b16 %v3499
    %v3571 = vunpack.c.l.b16 %v3500
    %v3572 = vunpack.c.l.b16 %v3501
    %v3573 = vpack.c.b16 %v3542, %v3541
    %v3574 = vpack.c.b16 %v3544, %v3543
    %v3575 = vpack.c.b16 %v3546, %v3545
    %v3576 = vpack.c.b16 %v3548, %v3547
    %v3577 = vpack.c.b16 %v3550, %v3549
    %v3578 = vpack.c.b16 %v3552, %v3551
    %v3579 = vpack.c.b16 %v3554, %v3553
    %v3580 = vpack.c.b16 %v3556, %v3555
    %v3581 = vpack.c.b16 %v3558, %v3557
    %v3582 = vpack.c.b16 %v3560, %v3559
    %v3583 = vpack.c.b16 %v3562, %v3561
    %v3584 = vpack.c.b16 %v3564, %v3563
    %v3585 = vpack.c.b16 %v3566, %v3565
    %v3586 = vpack.c.b16 %v3568, %v3567
    %v3587 = vpack.c.b16 %v3570, %v3569
    %v3588 = vpack.c.b16 %v3572, %v3571
    %3605 = vmatprep.subr.bf16.mxu0 0
    %3606 = vmatpush1.bf16.msra.mxu0 %v3573
    %3607 = vmatprep.subr.bf16.mxu0 0
    %3608 = vmatpush1.bf16.msra.mxu0 %v3574
    %3609 = vmatprep.subr.bf16.mxu0 0
    %3610 = vmatpush1.bf16.msra.mxu0 %v3575
    %3611 = vmatprep.subr.bf16.mxu0 0
    %3612 = vmatpush1.bf16.msra.mxu0 %v3576
    %3613 = vmatprep.subr.bf16.mxu0 0
    %3614 = vmatpush1.bf16.msra.mxu0 %v3577
    %3615 = vmatprep.subr.bf16.mxu0 0
    %3616 = vmatpush1.bf16.msra.mxu0 %v3578
    %3617 = vmatprep.subr.bf16.mxu0 0
    %3618 = vmatpush1.bf16.msra.mxu0 %v3579
    %3619 = vmatprep.subr.bf16.mxu0 0
    %3620 = vmatpush1.bf16.msra.mxu0 %v3580
    %3621 = vmatprep.subr.bf16.mxu0 0
    %3622 = vmatpush1.bf16.msra.mxu0 %v3581
    %3623 = vmatprep.subr.bf16.mxu0 0
    %3624 = vmatpush1.bf16.msra.mxu0 %v3582
    %3625 = vmatprep.subr.bf16.mxu0 0
    %3626 = vmatpush1.bf16.msra.mxu0 %v3583
    %3627 = vmatprep.subr.bf16.mxu0 0
    %3628 = vmatpush1.bf16.msra.mxu0 %v3584
    %3629 = vmatprep.subr.bf16.mxu0 0
    %3630 = vmatpush1.bf16.msra.mxu0 %v3585
    %3631 = vmatprep.subr.bf16.mxu0 0
    %3632 = vmatpush1.bf16.msra.mxu0 %v3586
    %3633 = vmatprep.subr.bf16.mxu0 0
    %3634 = vmatpush1.bf16.msra.mxu0 %v3587
    %3635 = vmatprep.subr.bf16.mxu0 0
    %3636 = vmatpush1.bf16.msra.mxu0 %v3588
    %3637 = vmatprep.mubr.bf16.mxu0 %v3455
    %3638 = vmatmul.mubr.bf16.gmra.mrb[0].mxu0 %v3454
    %v3639 = vpop.f32.mrb[0].mxu0
    %v3640 = vadd.f32 %v3507, %v3639
    %v3641 = vpop.f32.mrb[0].mxu0
    %v3642 = vpop.f32.mrb[0].mxu0
    %v3643 = vadd.f32 %v3507, %v3642
    %v3644 = vpop.f32.mrb[0].mxu0
    %3645 = vmatprep.mubr.bf16.mxu0 %v3457
    %3646 = vmatmul.mubr.bf16.gmra.mrb[0].mxu0 %v3456
    %v3647 = vpop.f32.mrb[0].mxu0
    %v3648 = vadd.f32 %v3507, %v3647
    %v3649 = vpop.f32.mrb[0].mxu0
    %v3650 = vpop.f32.mrb[0].mxu0
    %v3651 = vadd.f32 %v3507, %v3650
    %v3652 = vpop.f32.mrb[0].mxu0
    %3653 = vmatprep.mubr.bf16.mxu0 %v3459
    %3654 = vmatmul.mubr.bf16.gmra.mrb[0].mxu0 %v3458
    %v3655 = vpop.f32.mrb[0].mxu0
    %v3656 = vadd.f32 %v3507, %v3655
    %v3657 = vpop.f32.mrb[0].mxu0
    %v3658 = vpop.f32.mrb[0].mxu0
    %v3659 = vadd.f32 %v3507, %v3658
    %v3660 = vpop.f32.mrb[0].mxu0
    %3661 = vmatprep.mubr.bf16.mxu0 %v3461
    %3662 = vmatmul.mubr.bf16.gmra.mrb[0].mxu0 %v3460
    %v3663 = vpop.f32.mrb[0].mxu0
    %v3664 = vadd.f32 %v3507, %v3663
    %v3665 = vpop.f32.mrb[0].mxu0
    %v3666 = vpop.f32.mrb[0].mxu0
    %v3667 = vadd.f32 %v3507, %v3666
    %v3668 = vpop.f32.mrb[0].mxu0
    %3669 = vmatprep.mubr.bf16.mxu0 %v3463
    %3670 = vmatmul.mubr.bf16.gmra.mrb[0].mxu0 %v3462
    %v3671 = vpop.f32.mrb[0].mxu0
    %v3672 = vadd.f32 %v3507, %v3671
    %v3673 = vpop.f32.mrb[0].mxu0
    %v3674 = vpop.f32.mrb[0].mxu0
    %v3675 = vadd.f32 %v3507, %v3674
    %v3676 = vpop.f32.mrb[0].mxu0
    %3677 = vmatprep.mubr.bf16.mxu0 %v3465
    %3678 = vmatmul.mubr.bf16.gmra.mrb[0].mxu0 %v3464
    %v3679 = vpop.f32.mrb[0].mxu0
    %v3680 = vadd.f32 %v3507, %v3679
    %v3681 = vpop.f32.mrb[0].mxu0
    %v3682 = vpop.f32.mrb[0].mxu0
    %v3683 = vadd.f32 %v3507, %v3682
    %v3684 = vpop.f32.mrb[0].mxu0
    %3685 = vmatprep.mubr.bf16.mxu0 %v3467
    %3686 = vmatmul.mubr.bf16.gmra.mrb[0].mxu0 %v3466
    %v3687 = vpop.f32.mrb[0].mxu0
    %v3688 = vadd.f32 %v3507, %v3687
    %v3689 = vpop.f32.mrb[0].mxu0
    %v3690 = vpop.f32.mrb[0].mxu0
    %v3691 = vadd.f32 %v3507, %v3690
    %v3692 = vpop.f32.mrb[0].mxu0
    %3693 = vmatprep.mubr.bf16.mxu0 %v3469
    %3694 = vmatmul.mubr.bf16.gmra.mrb[0].mxu0 %v3468
    %v3695 = vpop.f32.mrb[0].mxu0
    %v3696 = vadd.f32 %v3507, %v3695
    %v3697 = vpop.f32.mrb[0].mxu0
    %v3698 = vpop.f32.mrb[0].mxu0
    %v3699 = vadd.f32 %v3507, %v3698
    %v3700 = vpop.f32.mrb[0].mxu0
    %3701 = vdwg.mxu0
    %v3702 = vxor.u32 %v3640, 2147483648
    %v3703 = vxor.u32 %v3643, 2147483648
    %v3704 = vxor.u32 %v3648, 2147483648
    %v3705 = vxor.u32 %v3651, 2147483648
    %v3706 = vxor.u32 %v3656, 2147483648
    %v3707 = vxor.u32 %v3659, 2147483648
    %v3708 = vxor.u32 %v3664, 2147483648
    %v3709 = vxor.u32 %v3667, 2147483648
    %v3710 = vxor.u32 %v3672, 2147483648
    %v3711 = vxor.u32 %v3675, 2147483648
    %v3712 = vxor.u32 %v3680, 2147483648
    %v3713 = vxor.u32 %v3683, 2147483648
    %v3714 = vxor.u32 %v3688, 2147483648
    %v3715 = vxor.u32 %v3691, 2147483648
    %v3716 = vxor.u32 %v3696, 2147483648
    %v3717 = vxor.u32 %v3699, 2147483648
    %v3718 = vmul.f32 %v3702, 1.442695
    %v3719 = vpow.pop %v3718
    %v3720 = vmul.f32 %v3703, 1.442695
    %v3721 = vpow.pop %v3720
    %v3722 = vmul.f32 %v3704, 1.442695
    %v3723 = vpow.pop %v3722
    %v3724 = vmul.f32 %v3705, 1.442695
    %v3725 = vpow.pop %v3724
    %v3726 = vmul.f32 %v3706, 1.442695
    %v3727 = vpow.pop %v3726
    %v3728 = vmul.f32 %v3707, 1.442695
    %v3729 = vpow.pop %v3728
    %v3730 = vmul.f32 %v3708, 1.442695
    %v3731 = vpow.pop %v3730
    %v3732 = vmul.f32 %v3709, 1.442695
    %v3733 = vpow.pop %v3732
    %v3734 = vmul.f32 %v3710, 1.442695
    %v3735 = vpow.pop %v3734
    %v3736 = vmul.f32 %v3711, 1.442695
    %v3737 = vpow.pop %v3736
    %v3738 = vmul.f32 %v3712, 1.442695
    %v3739 = vpow.pop %v3738
    %v3740 = vmul.f32 %v3713, 1.442695
    %v3741 = vpow.pop %v3740
    %v3742 = vmul.f32 %v3714, 1.442695
    %v3743 = vpow.pop %v3742
    %v3744 = vmul.f32 %v3715, 1.442695
    %v3745 = vpow.pop %v3744
    %v3746 = vmul.f32 %v3716, 1.442695
    %v3747 = vpow.pop %v3746
    %v3748 = vmul.f32 %v3717, 1.442695
    %v3749 = vpow.pop %v3748
    %v3750 = vadd.f32 %v3719, 1.0
    %v3751 = vadd.f32 %v3721, 1.0
    %v3752 = vadd.f32 %v3723, 1.0
    %v3753 = vadd.f32 %v3725, 1.0
    %v3754 = vadd.f32 %v3727, 1.0
    %v3755 = vadd.f32 %v3729, 1.0
    %v3756 = vadd.f32 %v3731, 1.0
    %v3757 = vadd.f32 %v3733, 1.0
    %v3758 = vadd.f32 %v3735, 1.0
    %v3759 = vadd.f32 %v3737, 1.0
    %v3760 = vadd.f32 %v3739, 1.0
    %v3761 = vadd.f32 %v3741, 1.0
    %v3762 = vadd.f32 %v3743, 1.0
    %v3763 = vadd.f32 %v3745, 1.0
    %v3764 = vadd.f32 %v3747, 1.0
    %v3765 = vadd.f32 %v3749, 1.0
    %v3766 = vrcp.pop %v3750
    %v3767 = vmul.f32 1.0, %v3766
    %v3768 = vrcp.pop %v3751
    %v3769 = vmul.f32 1.0, %v3768
    %v3770 = vrcp.pop %v3752
    %v3771 = vmul.f32 1.0, %v3770
    %v3772 = vrcp.pop %v3753
    %v3773 = vmul.f32 1.0, %v3772
    %v3774 = vrcp.pop %v3754
    %v3775 = vmul.f32 1.0, %v3774
    %v3776 = vrcp.pop %v3755
    %v3777 = vmul.f32 1.0, %v3776
    %v3778 = vrcp.pop %v3756
    %v3779 = vmul.f32 1.0, %v3778
    %v3780 = vrcp.pop %v3757
    %v3781 = vmul.f32 1.0, %v3780
    %v3782 = vrcp.pop %v3758
    %v3783 = vmul.f32 1.0, %v3782
    %v3784 = vrcp.pop %v3759
    %v3785 = vmul.f32 1.0, %v3784
    %v3786 = vrcp.pop %v3760
    %v3787 = vmul.f32 1.0, %v3786
    %v3788 = vrcp.pop %v3761
    %v3789 = vmul.f32 1.0, %v3788
    %v3790 = vrcp.pop %v3762
    %v3791 = vmul.f32 1.0, %v3790
    %v3792 = vrcp.pop %v3763
    %v3793 = vmul.f32 1.0, %v3792
    %v3794 = vrcp.pop %v3764
    %v3795 = vmul.f32 1.0, %v3794
    %v3796 = vrcp.pop %v3765
    %v3797 = vmul.f32 1.0, %v3796
    %vm3798 = vcmask 7168
    %3799 = vst.msk [vmem:[%s7] sm:$0xff] %vm3798, %v3767
    %3800 = vst.msk [vmem:[%s7 + $0x8] sm:$0xff] %vm3798, %v3769
    %3801 = vst.msk [vmem:[%s7 + $0x10] sm:$0xff] %vm3798, %v3771
    %3802 = vst.msk [vmem:[%s7 + $0x18] sm:$0xff] %vm3798, %v3773
    %3803 = vst.msk [vmem:[%s7 + $0x20] sm:$0xff] %vm3798, %v3775
    %3804 = vst.msk [vmem:[%s7 + $0x28] sm:$0xff] %vm3798, %v3777
    %3805 = vst.msk [vmem:[%s7 + $0x30] sm:$0xff] %vm3798, %v3779
    %3806 = vst.msk [vmem:[%s7 + $0x38] sm:$0xff] %vm3798, %v3781
    %3807 = vst.msk [vmem:[%s7 + $0x40] sm:$0xff] %vm3798, %v3783
    %3808 = vst.msk [vmem:[%s7 + $0x48] sm:$0xff] %vm3798, %v3785
    %3809 = vst.msk [vmem:[%s7 + $0x50] sm:$0xff] %vm3798, %v3787
    %3810 = vst.msk [vmem:[%s7 + $0x58] sm:$0xff] %vm3798, %v3789
    %3811 = vst.msk [vmem:[%s7 + $0x60] sm:$0xff] %vm3798, %v3791
    %3812 = vst.msk [vmem:[%s7 + $0x68] sm:$0xff] %vm3798, %v3793
    %3813 = vst.msk [vmem:[%s7 + $0x70] sm:$0xff] %vm3798, %v3795
    %3814 = vst.msk [vmem:[%s7 + $0x78] sm:$0xff] %vm3798, %v3797
    // Predicated region
    $region34: #{tpu_custom_call.1} parent=1 // pred_check
      _
    $region35: #{tpu_custom_call.1} parent=1 // pred_check_branch
      %3816 = sbr.rel (0) target = $region37
    $region36: #{tpu_custom_call.1} parent=1 // pred_region
      _
    $region37: #{tpu_custom_call.1} parent=1 // pred_fallthru
      _
    // Predicated region
    $region38: #{tpu_custom_call.1} parent=1 // pred_check
      _
    $region39: #{tpu_custom_call.1} parent=1 // pred_check_branch
      %3818 = sbr.rel (0) target = $region41
    $region40: #{tpu_custom_call.1} parent=1 // pred_region
      _
    $region41: #{tpu_custom_call.1} parent=1 // pred_fallthru
      _
    %3819 = vsyncpa [#allocation3], 1

</llo_original>
